<compile_context>
chip_gen: v6e
topology: v6e:2x2x1
jax: 0.10.0
libtpu: 0.0.40
codegen_flags: <defaults>
</compile_context>

<pallas_src>
import jax
import jax.numpy as jnp
from jax.experimental import pallas as pl
from jax.experimental.pallas import tpu as pltpu

IN_FEATURES = 512
OUT_FEATURES = 1024


def _round_up(x, m):
    return ((x + m - 1) // m) * m


def _fused_group_linear_kernel(x_ref, x2_ref, w0_ref, w1_ref, w2_ref, o_ref):
    # linear0 + relu. Park the result in o_ref right away so only one of the
    # [tm, 1024] f32 temporaries stays live across the remaining two matmuls.
    h0 = jnp.dot(x_ref[...], w0_ref[...], preferred_element_type=jnp.float32)
    o_ref[...] = jnp.maximum(h0, 0.0).astype(o_ref.dtype)

    # linear1 + silu  (silu(x) = x * sigmoid(x); the exp runs on the EUP slot).
    h1 = jnp.dot(x2_ref[...], w1_ref[...], preferred_element_type=jnp.float32)
    tmp2 = (h1 * jax.nn.sigmoid(h1)).astype(w2_ref.dtype)

    # linear2 on tmp2, then residual add of the parked relu result.
    h2 = jnp.dot(tmp2, w2_ref[...], preferred_element_type=jnp.float32)
    o_ref[...] = (o_ref[...].astype(jnp.float32) + h2).astype(o_ref.dtype)


def _choose_batch_tile(B, tm):
    """Sublane-aligned batch tile.

    * >= 2 grid steps whenever B allows (v7x has 2 TensorCores that only get
      work when the 'parallel' grid axis has more than one step); cap at 128
      rows for B <= 512 so mid-size batches get 4+ steps.
    * tiles are balanced so the padded last tile isn't nearly empty (the MXU
      still does full-tile matmuls on padding rows).
    """
    B_pad = _round_up(B, 8)
    tile = max(8, min(tm, B_pad))
    if B <= 512:
        tile = min(tile, 128)
    tile = max(8, min(tile, _round_up(pl.cdiv(B_pad, 2), 8)))  # >=2 steps if possible
    n_steps = pl.cdiv(B, tile)
    tile = max(8, _round_up(pl.cdiv(B, n_steps), 8))           # balance the tiles
    return tile


def _blockspec(shape, index_map, buffers=None):
    """BlockSpec with an optional multi-buffer request.

    Falls back to the default (double-buffered) spec if this jax version does
    not accept the pipeline_mode kwarg / pl.Buffered (construction-time check,
    so the fallback works regardless of jit).
    """
    if buffers is not None and buffers != 2:
        try:
            return pl.BlockSpec(shape, index_map, pipeline_mode=pl.Buffered(buffers))
        except (TypeError, AttributeError):
            pass
    return pl.BlockSpec(shape, index_map)


def group_linear(x, x2, w0, w1, w2, *, tm=256,
                 compute_dtype=jnp.bfloat16,
                 out_dtype=jnp.float32,
                 act_buffers=3):
    """Fused relu(x@W0^T) + silu(x2@W1^T)@W2^T.

    x, x2: [B, IN] activations (float32).
    w0, w1: [OUT, IN], w2: [OUT, OUT]  (torch.nn.Linear weight layout).
    Returns [B, OUT] in out_dtype (float32 by default; bf16 halves the output
    store stream, which is the binding stream on v6e at large B).
    """
    B, IN = x.shape
    OUT, IN_w = w0.shape
    assert IN == IN_w and w1.shape == (OUT, IN) and w2.shape == (OUT, OUT)
    assert x2.shape == (B, IN)

    # Cast to the MXU compute dtype at the boundary (bf16 halves weight DMA /
    # VMEM); weights are pre-transposed to [in, out] so the kernel does plain
    # row-major matmuls. Accumulation stays in f32.
    x_c = x.astype(compute_dtype)
    x2_c = x2.astype(compute_dtype)
    w0_t = w0.T.astype(compute_dtype)
    w1_t = w1.T.astype(compute_dtype)
    w2_t = w2.T.astype(compute_dtype)

    tm_eff = _choose_batch_tile(B, tm)
    grid = (pl.cdiv(B, tm_eff),)
    n_steps = grid[0]

    # Only ask for >2 activation buffers when the grid is deep enough for the
    # extra pipelining to matter.
    use_bufs = act_buffers if (act_buffers and act_buffers > 2 and n_steps > 2) else None

    # VMEM budget: weights (counted double-buffered for safety even though the
    # constant index_map means they are DMA'd once), multi-buffered activation
    # tiles, double-buffered output tile, the f32 intermediates the compiler
    # keeps as internal scratch at tm rows, plus headroom. Capped at 64 MiB
    # (v7x physical VMEM per TensorCore).
    itemsize = jnp.dtype(compute_dtype).itemsize
    out_itemsize = jnp.dtype(out_dtype).itemsize
    w_bytes = (2 * IN * OUT + OUT * OUT) * itemsize
    act_bytes = 2 * max(2, act_buffers) * tm_eff * IN * itemsize
    out_bytes = 2 * tm_eff * OUT * out_itemsize
    inter_bytes = 4 * tm_eff * OUT * 4
    vmem_limit = min(2 * w_bytes + act_bytes + out_bytes + inter_bytes + (8 << 20),
                     64 << 20)

    cost = pl.CostEstimate(
        flops=2 * B * (2 * IN * OUT + OUT * OUT),
        transcendentals=B * OUT,                     # exp inside sigmoid
        bytes_accessed=(x_c.size + x2_c.size) * itemsize + w_bytes
                       + B * OUT * out_itemsize,
    )

    return pl.pallas_call(
        _fused_group_linear_kernel,
        out_shape=jax.ShapeDtypeStruct((B, OUT), out_dtype),
        grid_spec=pltpu.PrefetchScalarGridSpec(
            num_scalar_prefetch=0,
            grid=grid,
            in_specs=[
                _blockspec((tm_eff, IN), lambda i: (i, 0), use_bufs),   # x tile
                _blockspec((tm_eff, IN), lambda i: (i, 0), use_bufs),   # x2 tile
                pl.BlockSpec((IN, OUT), lambda i: (0, 0)),    # W0^T (grid-invariant)
                pl.BlockSpec((IN, OUT), lambda i: (0, 0)),    # W1^T (grid-invariant)
                pl.BlockSpec((OUT, OUT), lambda i: (0, 0)),   # W2^T (grid-invariant)
            ],
            out_specs=pl.BlockSpec((tm_eff, OUT), lambda i: (i, 0)),
        ),
        compiler_params=pltpu.CompilerParams(
            dimension_semantics=("parallel",),
            vmem_limit_bytes=vmem_limit,
        ),
        cost_estimate=cost,
    )(x_c, x2_c, w0_t, w1_t, w2_t)


def _reference(x, x2, w0, w1, w2):
    tmp1 = jnp.maximum(x @ w0.T, 0.0)
    h1 = x2 @ w1.T
    tmp2 = h1 * jax.nn.sigmoid(h1)
    return tmp1 + tmp2 @ w2.T


if __name__ == "__main__":
    key = jax.random.PRNGKey(0)
    k_x, k_x2, k_w0, k_w1, k_w2 = jax.random.split(key, 5)

    B = 8  # small demo batch; feature dims fixed by the module (512 -> 1024)
    x = jax.random.normal(k_x, (B, IN_FEATURES), dtype=jnp.float32)
    x2 = jax.random.normal(k_x2, (B, IN_FEATURES), dtype=jnp.float32)

    # torch.nn.Linear-style weights (bias=False), layout [out_features, in_features].
    s_in = 1.0 / jnp.sqrt(IN_FEATURES)
    s_out = 1.0 / jnp.sqrt(OUT_FEATURES)
    w0 = jax.random.uniform(k_w0, (OUT_FEATURES, IN_FEATURES),
                            minval=-s_in, maxval=s_in, dtype=jnp.float32)
    w1 = jax.random.uniform(k_w1, (OUT_FEATURES, IN_FEATURES),
                            minval=-s_in, maxval=s_in, dtype=jnp.float32)
    w2 = jax.random.uniform(k_w2, (OUT_FEATURES, OUT_FEATURES),
                            minval=-s_out, maxval=s_out, dtype=jnp.float32)

    ref = _reference(x, x2, w0, w1, w2)

    # 1) Default path (bf16 compute, f32 accumulate, f32 output).
    out = jax.block_until_ready(group_linear(x, x2, w0, w1, w2))
    assert out.shape == (B, OUT_FEATURES) and out.dtype == jnp.float32
    assert jnp.allclose(out, ref, atol=3e-2, rtol=3e-2), "bf16-compute kernel mismatch"

    # 2) f32 compute path (tolerance loose enough to cover the MXU's default
    #    matmul precision for f32 operands).
    out_f32 = jax.block_until_ready(
        group_linear(x, x2, w0, w1, w2, compute_dtype=jnp.float32))
    assert jnp.allclose(out_f32, ref, atol=1e-2, rtol=1e-2), "f32 kernel mismatch"

    # 3) bf16 output path (v6e store-bandwidth saving).
    out_bf16 = jax.block_until_ready(
        group_linear(x, x2, w0, w1, w2, out_dtype=jnp.bfloat16))
    assert out_bf16.dtype == jnp.bfloat16
    assert jnp.allclose(out_bf16.astype(jnp.float32), ref,
                        atol=5e-2, rtol=5e-2), "bf16-output kernel mismatch"

    # 4) Batch not divisible by the tile: cdiv grid + balanced tiles; padding
    #    rows in the last block are row-local and never committed.
    B2 = 72
    xb = jax.random.normal(jax.random.PRNGKey(1), (B2, IN_FEATURES), jnp.float32)
    x2b = jax.random.normal(jax.random.PRNGKey(2), (B2, IN_FEATURES), jnp.float32)
    out_tail = jax.block_until_ready(group_linear(xb, x2b, w0, w1, w2, tm=32))
    ref_tail = _reference(xb, x2b, w0, w1, w2)
    assert out_tail.shape == (B2, OUT_FEATURES)
    assert jnp.allclose(out_tail, ref_tail, atol=3e-2, rtol=3e-2), "tail mismatch"

    print("KERNEL_OK")
</pallas_src>

<mosaic_0001>
module attributes {stable_mosaic.version = 11 : i64} {
  func.func @_fused_group_linear_kernel(%arg0: i32, %arg1: memref<8x512xbf16, #tpu.memory_space<vmem>>, %arg2: memref<8x512xbf16, #tpu.memory_space<vmem>>, %arg3: memref<512x1024xbf16, #tpu.memory_space<vmem>>, %arg4: memref<512x1024xbf16, #tpu.memory_space<vmem>>, %arg5: memref<1024x1024xbf16, #tpu.memory_space<vmem>>, %arg6: memref<8x1024xf32, #tpu.memory_space<vmem>>) attributes {dimension_semantics = [#tpu.dimension_semantics<parallel>], iteration_bounds = array<i64: 1>, scalar_prefetch = 0 : i64, scratch_operands = 0 : i64, tpu.core_type = #tpu.core_type<tc>, window_params = [{transform_indices = @transform_0, window_bounds = array<i64: 8, 512>}, {transform_indices = @transform_1, window_bounds = array<i64: 8, 512>}, {pipeline_mode = #tpu.pipeline_mode<synchronous>, transform_indices = @transform_2, window_bounds = array<i64: 512, 1024>}, {pipeline_mode = #tpu.pipeline_mode<synchronous>, transform_indices = @transform_3, window_bounds = array<i64: 512, 1024>}, {pipeline_mode = #tpu.pipeline_mode<synchronous>, transform_indices = @transform_4, window_bounds = array<i64: 1024, 1024>}, {transform_indices = @transform_5, window_bounds = array<i64: 8, 1024>}]} {
    %c0 = arith.constant 0 : index
    %c0_0 = arith.constant 0 : index
    %0 = vector.load %arg1[%c0, %c0_0] : memref<8x512xbf16, #tpu.memory_space<vmem>>, vector<8x512xbf16>
    %c0_1 = arith.constant 0 : index
    %c0_2 = arith.constant 0 : index
    %1 = vector.load %arg3[%c0_1, %c0_2] : memref<512x1024xbf16, #tpu.memory_space<vmem>>, vector<512x1024xbf16>
    %cst = arith.constant dense<0.000000e+00> : vector<8x1024xf32>
    %2 = tpu.matmul %0, %1, %cst {dimension_numbers = #tpu.dot_dimension_numbers<[1], [0], [0], [1], [0, 0, 1, 1], [], []>} : vector<8x512xbf16>, vector<512x1024xbf16>, vector<8x1024xf32> -> vector<8x1024xf32>
    %cst_3 = arith.constant 0.000000e+00 : f32
    %3 = vector.broadcast %cst_3 : f32 to vector<8x1024xf32>
    %4 = arith.maximumf %2, %3 : vector<8x1024xf32>
    %c0_4 = arith.constant 0 : index
    %c0_5 = arith.constant 0 : index
    %5 = vector.load %arg6[%c0_4, %c0_5] : memref<8x1024xf32, #tpu.memory_space<vmem>>, vector<8x1024xf32>
    tpu.vector_store %arg6[%c0_4, %c0_5], %4 {strides = array<i32>} : memref<8x1024xf32, #tpu.memory_space<vmem>>, vector<8x1024xf32>,
    %c0_6 = arith.constant 0 : index
    %c0_7 = arith.constant 0 : index
    %6 = vector.load %arg2[%c0_6, %c0_7] : memref<8x512xbf16, #tpu.memory_space<vmem>>, vector<8x512xbf16>
    %c0_8 = arith.constant 0 : index
    %c0_9 = arith.constant 0 : index
    %7 = vector.load %arg4[%c0_8, %c0_9] : memref<512x1024xbf16, #tpu.memory_space<vmem>>, vector<512x1024xbf16>
    %cst_10 = arith.constant dense<0.000000e+00> : vector<8x1024xf32>
    %8 = tpu.matmul %6, %7, %cst_10 {dimension_numbers = #tpu.dot_dimension_numbers<[1], [0], [0], [1], [0, 0, 1, 1], [], []>} : vector<8x512xbf16>, vector<512x1024xbf16>, vector<8x1024xf32> -> vector<8x1024xf32>
    %9 = arith.negf %8 : vector<8x1024xf32>
    %10 = math.exp %9 : vector<8x1024xf32>
    %cst_11 = arith.constant 1.000000e+00 : f32
    %11 = vector.broadcast %cst_11 : f32 to vector<8x1024xf32>
    %12 = arith.addf %11, %10 : vector<8x1024xf32>
    %13 = arith.divf %11, %12 : vector<8x1024xf32>
    %14 = arith.mulf %8, %13 : vector<8x1024xf32>
    %15 = arith.truncf %14 : vector<8x1024xf32> to vector<8x1024xbf16>
    %c0_12 = arith.constant 0 : index
    %c0_13 = arith.constant 0 : index
    %16 = vector.load %arg5[%c0_12, %c0_13] : memref<1024x1024xbf16, #tpu.memory_space<vmem>>, vector<1024x1024xbf16>
    %cst_14 = arith.constant dense<0.000000e+00> : vector<8x1024xf32>
    %17 = tpu.matmul %15, %16, %cst_14 {dimension_numbers = #tpu.dot_dimension_numbers<[1], [0], [0], [1], [0, 0, 1, 1], [], []>} : vector<8x1024xbf16>, vector<1024x1024xbf16>, vector<8x1024xf32> -> vector<8x1024xf32>
    %c0_15 = arith.constant 0 : index
    %c0_16 = arith.constant 0 : index
    %18 = vector.load %arg6[%c0_15, %c0_16] : memref<8x1024xf32, #tpu.memory_space<vmem>>, vector<8x1024xf32>
    %19 = arith.addf %18, %17 : vector<8x1024xf32>
    %c0_17 = arith.constant 0 : index
    %c0_18 = arith.constant 0 : index
    %20 = vector.load %arg6[%c0_17, %c0_18] : memref<8x1024xf32, #tpu.memory_space<vmem>>, vector<8x1024xf32>
    tpu.vector_store %arg6[%c0_17, %c0_18], %19 {strides = array<i32>} : memref<8x1024xf32, #tpu.memory_space<vmem>>, vector<8x1024xf32>,
    return
  }
  func.func @transform_0(%arg0: i32) -> (i32, i32) {
    %c0_i32 = arith.constant 0 : i32
    %c0_i32_0 = arith.constant 0 : i32
    return %arg0, %c0_i32 : i32, i32
  }
  func.func @transform_1(%arg0: i32) -> (i32, i32) {
    %c0_i32 = arith.constant 0 : i32
    %c0_i32_0 = arith.constant 0 : i32
    return %arg0, %c0_i32 : i32, i32
  }
  func.func @transform_2(%arg0: i32) -> (i32, i32) {
    %c0_i32 = arith.constant 0 : i32
    %c0_i32_0 = arith.constant 0 : i32
    %c0_i32_1 = arith.constant 0 : i32
    return %c0_i32, %c0_i32_0 : i32, i32
  }
  func.func @transform_3(%arg0: i32) -> (i32, i32) {
    %c0_i32 = arith.constant 0 : i32
    %c0_i32_0 = arith.constant 0 : i32
    %c0_i32_1 = arith.constant 0 : i32
    return %c0_i32, %c0_i32_0 : i32, i32
  }
  func.func @transform_4(%arg0: i32) -> (i32, i32) {
    %c0_i32 = arith.constant 0 : i32
    %c0_i32_0 = arith.constant 0 : i32
    %c0_i32_1 = arith.constant 0 : i32
    return %c0_i32, %c0_i32_0 : i32, i32
  }
  func.func @transform_5(%arg0: i32) -> (i32, i32) {
    %c0_i32 = arith.constant 0 : i32
    %c0_i32_0 = arith.constant 0 : i32
    return %arg0, %c0_i32 : i32, i32
  }
}

</mosaic_0001>

<llo_original>
// kernel: tpu_custom_call.1
$region0: #{tpu_custom_call.1}
  #allocation0 [shape = 'u32[]', space=smem, size = 0x4, offset = 0x4, fixed_abs, tag = 'smem constant byte address 0x4 - core index']
  #allocation1 [shape = 'u32[144,128]{1,0:T(1,128)}', space=vmem, size = 0x12000, scoped, tag = 'internal scratch']
  %s0 = inlined_call_operand.hbm [shape: bf16[8,512], index: 0, kind: input, shape index: {}]
  %s1 = inlined_call_operand.hbm [shape: bf16[8,512], index: 1, kind: input, shape index: {}]
  %s2 = inlined_call_operand.hbm [shape: bf16[512,1024], index: 2, kind: input, shape index: {}]
  %s3 = inlined_call_operand.hbm [shape: bf16[512,1024], index: 3, kind: input, shape index: {}]
  %s4 = inlined_call_operand.hbm [shape: bf16[1024,1024], index: 4, kind: input, shape index: {}]
  %s5 = inlined_call_operand.hbm [shape: f32[8,1024], index: 5, kind: output, shape index: {}]
  %s6 = sld [smem:[#allocation0]]
  $region50: #{tpu_custom_call.1} parent=0
    _
  %s8 = ssub.s32 1, %s6
  %s9 = scalar_select 0, %s8, %s6
  $region1: #{tpu_custom_call.1} parent=0
    #allocation2 [shape = 'u8[8192]{0}', space=vmem, size = 0x2000, scoped, tag = 'input window, operand 0, single buffered']
    #allocation3 [shape = 's32[1]{0}', space=sflag, size = 0x4, scoped, tag = 'scoped memory for tpu_custom_call.1']
    #allocation4 [shape = 's32[1]{0}', space=sflag, size = 0x4, scoped, tag = 'scoped memory for tpu_custom_call.1']
    #allocation5 [shape = 'u8[8192]{0}', space=vmem, size = 0x2000, scoped, tag = 'input window, operand 1, single buffered']
    #allocation6 [shape = 's32[1]{0}', space=sflag, size = 0x4, scoped, tag = 'scoped memory for tpu_custom_call.1']
    #allocation7 [shape = 'u8[1048576]{0}', space=vmem, size = 0x100000, scoped, tag = 'input window, operand 2, single buffered']
    #allocation8 [shape = 'u8[1048576]{0}', space=vmem, size = 0x100000, scoped, tag = 'input window, operand 3, single buffered']
    #allocation9 [shape = 's32[1]{0}', space=sflag, size = 0x4, scoped, tag = 'scoped memory for tpu_custom_call.1']
    #allocation10 [shape = 'u8[2097152]{0}', space=vmem, size = 0x200000, scoped, tag = 'input window, operand 4, single buffered']
    #allocation11 [shape = 'u8[32768]{0}', space=vmem, size = 0x8000, scoped, tag = 'output window, operand 0, single buffered']
    %10 = vsyncpa [#allocation3], 0
    %11 = vsyncpa [#allocation6], 0
    %12 = vsyncpa [#allocation9], 0
    %13 = vsyncpa [#allocation4], 0
    // Predicated region
    $region2: #{tpu_custom_call.1} parent=1 // pred_check
      _
    $region3: #{tpu_custom_call.1} parent=1 // pred_check_branch
      %15 = sbr.rel (0) target = $region5
    $region4: #{tpu_custom_call.1} parent=1 // pred_region
      %s17 = ssub.s32 256, 256
      %18 = vsyncadd [#allocation3], %s17
      %s20 = sshll.u32 [#allocation2], 4
      %s21 = int_to_ptr.vmem [resolvable:$true] %s20
      %23 = dma.hbm_to_vmem [thread:$0]  %s0, 256, %s21, [#allocation3]
    $region5: #{tpu_custom_call.1} parent=1 // pred_fallthru
      _
    // Predicated region
    $region6: #{tpu_custom_call.1} parent=1 // pred_check
      _
    $region7: #{tpu_custom_call.1} parent=1 // pred_check_branch
      %25 = sbr.rel (0) target = $region9
    $region8: #{tpu_custom_call.1} parent=1 // pred_region
      %s27 = ssub.s32 256, 256
      %28 = vsyncadd [#allocation6], %s27
      %s30 = sshll.u32 [#allocation5], 4
      %s31 = int_to_ptr.vmem [resolvable:$true] %s30
      %33 = dma.hbm_to_vmem [thread:$0]  %s1, 256, %s31, [#allocation6]
    $region9: #{tpu_custom_call.1} parent=1 // pred_fallthru
      _
    // Predicated region
    $region10: #{tpu_custom_call.1} parent=1 // pred_check
      _
    $region11: #{tpu_custom_call.1} parent=1 // pred_check_branch
      %35 = sbr.rel (0) target = $region13
    $region12: #{tpu_custom_call.1} parent=1 // pred_region
      %s37 = ssub.s32 32768, 32768
      %38 = vsyncadd [#allocation6], %s37
      %s39 = sshll.u32 [#allocation7], 4
      %s40 = int_to_ptr.vmem [resolvable:$true] %s39
      %45 = dma.hbm_to_vmem [thread:$0]  %s2, 32768, %s40, [#allocation6], 512, 512, 32
    $region13: #{tpu_custom_call.1} parent=1 // pred_fallthru
      _
    // Predicated region
    $region14: #{tpu_custom_call.1} parent=1 // pred_check
      _
    $region15: #{tpu_custom_call.1} parent=1 // pred_check_branch
      %47 = sbr.rel (0) target = $region17
    $region16: #{tpu_custom_call.1} parent=1 // pred_region
      %s49 = ssub.s32 32768, 32768
      %50 = vsyncadd [#allocation9], %s49
      %s51 = sshll.u32 [#allocation8], 4
      %s52 = int_to_ptr.vmem [resolvable:$true] %s51
      %57 = dma.hbm_to_vmem [thread:$0]  %s3, 32768, %s52, [#allocation9], 512, 512, 32
    $region17: #{tpu_custom_call.1} parent=1 // pred_fallthru
      _
    // Predicated region
    $region18: #{tpu_custom_call.1} parent=1 // pred_check
      _
    $region19: #{tpu_custom_call.1} parent=1 // pred_check_branch
      %59 = sbr.rel (0) target = $region21
    $region20: #{tpu_custom_call.1} parent=1 // pred_region
      %s61 = ssub.s32 65536, 65536
      %62 = vsyncadd [#allocation9], %s61
      %s63 = sshll.u32 [#allocation10], 4
      %s64 = int_to_ptr.vmem [resolvable:$true] %s63
      %69 = dma.hbm_to_vmem [thread:$0]  %s4, 65536, %s64, [#allocation9], 512, 512, 32
    $region21: #{tpu_custom_call.1} parent=1 // pred_fallthru
      _
    // Predicated region
    $region22: #{tpu_custom_call.1} parent=1 // pred_check
      _
    $region23: #{tpu_custom_call.1} parent=1 // pred_check_branch
      %71 = sbr.rel (0) target = $region25
    $region24: #{tpu_custom_call.1} parent=1 // pred_region
      %72 = dma.done [#allocation3], 256
    $region25: #{tpu_custom_call.1} parent=1 // pred_fallthru
      _
    // Predicated region
    $region26: #{tpu_custom_call.1} parent=1 // pred_check
      _
    $region27: #{tpu_custom_call.1} parent=1 // pred_check_branch
      %74 = sbr.rel (0) target = $region29
    $region28: #{tpu_custom_call.1} parent=1 // pred_region
      %75 = dma.done [#allocation6], 256
    $region29: #{tpu_custom_call.1} parent=1 // pred_fallthru
      _
    // Predicated region
    $region30: #{tpu_custom_call.1} parent=1 // pred_check
      _
    $region31: #{tpu_custom_call.1} parent=1 // pred_check_branch
      %77 = sbr.rel (0) target = $region33
    $region32: #{tpu_custom_call.1} parent=1 // pred_region
      %78 = dma.done [#allocation6], 32768
    $region33: #{tpu_custom_call.1} parent=1 // pred_fallthru
      _
    // Predicated region
    $region34: #{tpu_custom_call.1} parent=1 // pred_check
      _
    $region35: #{tpu_custom_call.1} parent=1 // pred_check_branch
      %80 = sbr.rel (0) target = $region37
    $region36: #{tpu_custom_call.1} parent=1 // pred_region
      %81 = dma.done [#allocation9], 32768
    $region37: #{tpu_custom_call.1} parent=1 // pred_fallthru
      _
    // Predicated region
    $region38: #{tpu_custom_call.1} parent=1 // pred_check
      _
    $region39: #{tpu_custom_call.1} parent=1 // pred_check_branch
      %83 = sbr.rel (0) target = $region41
    $region40: #{tpu_custom_call.1} parent=1 // pred_region
      %84 = dma.done [#allocation9], 65536
    $region41: #{tpu_custom_call.1} parent=1 // pred_fallthru
      _
    %v85 = vld [vmem:[#allocation2] sm:$0xff]
    %v86 = vld [vmem:[#allocation2 + $0x8] sm:$0xff]
    %v87 = vld [vmem:[#allocation7] sm:$0xff]
    %v88 = vld [vmem:[#allocation7 + $0x8] sm:$0xff]
    %v89 = vld [vmem:[#allocation7 + $0x10] sm:$0xff]
    %v90 = vld [vmem:[#allocation7 + $0x18] sm:$0xff]
    %v91 = vld [vmem:[#allocation7 + $0x20] sm:$0xff]
    %v92 = vld [vmem:[#allocation7 + $0x28] sm:$0xff]
    %v93 = vld [vmem:[#allocation7 + $0x30] sm:$0xff]
    %v94 = vld [vmem:[#allocation7 + $0x38] sm:$0xff]
    %v95 = vld [vmem:[#allocation7 + $0x40] sm:$0xff]
    %v96 = vld [vmem:[#allocation7 + $0x48] sm:$0xff]
    %v97 = vld [vmem:[#allocation7 + $0x50] sm:$0xff]
    %v98 = vld [vmem:[#allocation7 + $0x58] sm:$0xff]
    %v99 = vld [vmem:[#allocation7 + $0x60] sm:$0xff]
    %v100 = vld [vmem:[#allocation7 + $0x68] sm:$0xff]
    %v101 = vld [vmem:[#allocation7 + $0x70] sm:$0xff]
    %v102 = vld [vmem:[#allocation7 + $0x78] sm:$0xff]
    %v103 = vld [vmem:[#allocation7 + $0x80] sm:$0xff]
    %v104 = vld [vmem:[#allocation7 + $0x88] sm:$0xff]
    %v105 = vld [vmem:[#allocation7 + $0x90] sm:$0xff]
    %v106 = vld [vmem:[#allocation7 + $0x98] sm:$0xff]
    %v107 = vld [vmem:[#allocation7 + $0xa0] sm:$0xff]
    %v108 = vld [vmem:[#allocation7 + $0xa8] sm:$0xff]
    %v109 = vld [vmem:[#allocation7 + $0xb0] sm:$0xff]
    %v110 = vld [vmem:[#allocation7 + $0xb8] sm:$0xff]
    %v111 = vld [vmem:[#allocation7 + $0xc0] sm:$0xff]
    %v112 = vld [vmem:[#allocation7 + $0xc8] sm:$0xff]
    %v113 = vld [vmem:[#allocation7 + $0xd0] sm:$0xff]
    %v114 = vld [vmem:[#allocation7 + $0xd8] sm:$0xff]
    %v115 = vld [vmem:[#allocation7 + $0xe0] sm:$0xff]
    %v116 = vld [vmem:[#allocation7 + $0xe8] sm:$0xff]
    %v117 = vld [vmem:[#allocation7 + $0xf0] sm:$0xff]
    %v118 = vld [vmem:[#allocation7 + $0xf8] sm:$0xff]
    %v119 = vld [vmem:[#allocation7 + $0x100] sm:$0xff]
    %v120 = vld [vmem:[#allocation7 + $0x108] sm:$0xff]
    %v121 = vld [vmem:[#allocation7 + $0x110] sm:$0xff]
    %v122 = vld [vmem:[#allocation7 + $0x118] sm:$0xff]
    %v123 = vld [vmem:[#allocation7 + $0x120] sm:$0xff]
    %v124 = vld [vmem:[#allocation7 + $0x128] sm:$0xff]
    %v125 = vld [vmem:[#allocation7 + $0x130] sm:$0xff]
    %v126 = vld [vmem:[#allocation7 + $0x138] sm:$0xff]
    %v127 = vld [vmem:[#allocation7 + $0x140] sm:$0xff]
    %v128 = vld [vmem:[#allocation7 + $0x148] sm:$0xff]
    %v129 = vld [vmem:[#allocation7 + $0x150] sm:$0xff]
    %v130 = vld [vmem:[#allocation7 + $0x158] sm:$0xff]
    %v131 = vld [vmem:[#allocation7 + $0x160] sm:$0xff]
    %v132 = vld [vmem:[#allocation7 + $0x168] sm:$0xff]
    %v133 = vld [vmem:[#allocation7 + $0x170] sm:$0xff]
    %v134 = vld [vmem:[#allocation7 + $0x178] sm:$0xff]
    %v135 = vld [vmem:[#allocation7 + $0x180] sm:$0xff]
    %v136 = vld [vmem:[#allocation7 + $0x188] sm:$0xff]
    %v137 = vld [vmem:[#allocation7 + $0x190] sm:$0xff]
    %v138 = vld [vmem:[#allocation7 + $0x198] sm:$0xff]
    %v139 = vld [vmem:[#allocation7 + $0x1a0] sm:$0xff]
    %v140 = vld [vmem:[#allocation7 + $0x1a8] sm:$0xff]
    %v141 = vld [vmem:[#allocation7 + $0x1b0] sm:$0xff]
    %v142 = vld [vmem:[#allocation7 + $0x1b8] sm:$0xff]
    %v143 = vld [vmem:[#allocation7 + $0x1c0] sm:$0xff]
    %v144 = vld [vmem:[#allocation7 + $0x1c8] sm:$0xff]
    %v145 = vld [vmem:[#allocation7 + $0x1d0] sm:$0xff]
    %v146 = vld [vmem:[#allocation7 + $0x1d8] sm:$0xff]
    %v147 = vld [vmem:[#allocation7 + $0x1e0] sm:$0xff]
    %v148 = vld [vmem:[#allocation7 + $0x1e8] sm:$0xff]
    %v149 = vld [vmem:[#allocation7 + $0x1f0] sm:$0xff]
    %v150 = vld [vmem:[#allocation7 + $0x1f8] sm:$0xff]
    %v151 = vld [vmem:[#allocation7 + $0x200] sm:$0xff]
    %v152 = vld [vmem:[#allocation7 + $0x208] sm:$0xff]
    %v153 = vld [vmem:[#allocation7 + $0x210] sm:$0xff]
    %v154 = vld [vmem:[#allocation7 + $0x218] sm:$0xff]
    %v155 = vld [vmem:[#allocation7 + $0x220] sm:$0xff]
    %v156 = vld [vmem:[#allocation7 + $0x228] sm:$0xff]
    %v157 = vld [vmem:[#allocation7 + $0x230] sm:$0xff]
    %v158 = vld [vmem:[#allocation7 + $0x238] sm:$0xff]
    %v159 = vld [vmem:[#allocation7 + $0x240] sm:$0xff]
    %v160 = vld [vmem:[#allocation7 + $0x248] sm:$0xff]
    %v161 = vld [vmem:[#allocation7 + $0x250] sm:$0xff]
    %v162 = vld [vmem:[#allocation7 + $0x258] sm:$0xff]
    %v163 = vld [vmem:[#allocation7 + $0x260] sm:$0xff]
    %v164 = vld [vmem:[#allocation7 + $0x268] sm:$0xff]
    %v165 = vld [vmem:[#allocation7 + $0x270] sm:$0xff]
    %v166 = vld [vmem:[#allocation7 + $0x278] sm:$0xff]
    %v167 = vld [vmem:[#allocation7 + $0x280] sm:$0xff]
    %v168 = vld [vmem:[#allocation7 + $0x288] sm:$0xff]
    %v169 = vld [vmem:[#allocation7 + $0x290] sm:$0xff]
    %v170 = vld [vmem:[#allocation7 + $0x298] sm:$0xff]
    %v171 = vld [vmem:[#allocation7 + $0x2a0] sm:$0xff]
    %v172 = vld [vmem:[#allocation7 + $0x2a8] sm:$0xff]
    %v173 = vld [vmem:[#allocation7 + $0x2b0] sm:$0xff]
    %v174 = vld [vmem:[#allocation7 + $0x2b8] sm:$0xff]
    %v175 = vld [vmem:[#allocation7 + $0x2c0] sm:$0xff]
    %v176 = vld [vmem:[#allocation7 + $0x2c8] sm:$0xff]
    %v177 = vld [vmem:[#allocation7 + $0x2d0] sm:$0xff]
    %v178 = vld [vmem:[#allocation7 + $0x2d8] sm:$0xff]
    %v179 = vld [vmem:[#allocation7 + $0x2e0] sm:$0xff]
    %v180 = vld [vmem:[#allocation7 + $0x2e8] sm:$0xff]
    %v181 = vld [vmem:[#allocation7 + $0x2f0] sm:$0xff]
    %v182 = vld [vmem:[#allocation7 + $0x2f8] sm:$0xff]
    %v183 = vld [vmem:[#allocation7 + $0x300] sm:$0xff]
    %v184 = vld [vmem:[#allocation7 + $0x308] sm:$0xff]
    %v185 = vld [vmem:[#allocation7 + $0x310] sm:$0xff]
    %v186 = vld [vmem:[#allocation7 + $0x318] sm:$0xff]
    %v187 = vld [vmem:[#allocation7 + $0x320] sm:$0xff]
    %v188 = vld [vmem:[#allocation7 + $0x328] sm:$0xff]
    %v189 = vld [vmem:[#allocation7 + $0x330] sm:$0xff]
    %v190 = vld [vmem:[#allocation7 + $0x338] sm:$0xff]
    %v191 = vld [vmem:[#allocation7 + $0x340] sm:$0xff]
    %v192 = vld [vmem:[#allocation7 + $0x348] sm:$0xff]
    %v193 = vld [vmem:[#allocation7 + $0x350] sm:$0xff]
    %v194 = vld [vmem:[#allocation7 + $0x358] sm:$0xff]
    %v195 = vld [vmem:[#allocation7 + $0x360] sm:$0xff]
    %v196 = vld [vmem:[#allocation7 + $0x368] sm:$0xff]
    %v197 = vld [vmem:[#allocation7 + $0x370] sm:$0xff]
    %v198 = vld [vmem:[#allocation7 + $0x378] sm:$0xff]
    %v199 = vld [vmem:[#allocation7 + $0x380] sm:$0xff]
    %v200 = vld [vmem:[#allocation7 + $0x388] sm:$0xff]
    %v201 = vld [vmem:[#allocation7 + $0x390] sm:$0xff]
    %v202 = vld [vmem:[#allocation7 + $0x398] sm:$0xff]
    %v203 = vld [vmem:[#allocation7 + $0x3a0] sm:$0xff]
    %v204 = vld [vmem:[#allocation7 + $0x3a8] sm:$0xff]
    %v205 = vld [vmem:[#allocation7 + $0x3b0] sm:$0xff]
    %v206 = vld [vmem:[#allocation7 + $0x3b8] sm:$0xff]
    %v207 = vld [vmem:[#allocation7 + $0x3c0] sm:$0xff]
    %v208 = vld [vmem:[#allocation7 + $0x3c8] sm:$0xff]
    %v209 = vld [vmem:[#allocation7 + $0x3d0] sm:$0xff]
    %v210 = vld [vmem:[#allocation7 + $0x3d8] sm:$0xff]
    %v211 = vld [vmem:[#allocation7 + $0x3e0] sm:$0xff]
    %v212 = vld [vmem:[#allocation7 + $0x3e8] sm:$0xff]
    %v213 = vld [vmem:[#allocation7 + $0x3f0] sm:$0xff]
    %v214 = vld [vmem:[#allocation7 + $0x3f8] sm:$0xff]
    %v215 = vld [vmem:[#allocation7 + $0x400] sm:$0xff]
    %v216 = vld [vmem:[#allocation7 + $0x408] sm:$0xff]
    %v217 = vld [vmem:[#allocation7 + $0x410] sm:$0xff]
    %v218 = vld [vmem:[#allocation7 + $0x418] sm:$0xff]
    %v219 = vld [vmem:[#allocation7 + $0x420] sm:$0xff]
    %v220 = vld [vmem:[#allocation7 + $0x428] sm:$0xff]
    %v221 = vld [vmem:[#allocation7 + $0x430] sm:$0xff]
    %v222 = vld [vmem:[#allocation7 + $0x438] sm:$0xff]
    %v223 = vld [vmem:[#allocation7 + $0x440] sm:$0xff]
    %v224 = vld [vmem:[#allocation7 + $0x448] sm:$0xff]
    %v225 = vld [vmem:[#allocation7 + $0x450] sm:$0xff]
    %v226 = vld [vmem:[#allocation7 + $0x458] sm:$0xff]
    %v227 = vld [vmem:[#allocation7 + $0x460] sm:$0xff]
    %v228 = vld [vmem:[#allocation7 + $0x468] sm:$0xff]
    %v229 = vld [vmem:[#allocation7 + $0x470] sm:$0xff]
    %v230 = vld [vmem:[#allocation7 + $0x478] sm:$0xff]
    %v231 = vld [vmem:[#allocation7 + $0x480] sm:$0xff]
    %v232 = vld [vmem:[#allocation7 + $0x488] sm:$0xff]
    %v233 = vld [vmem:[#allocation7 + $0x490] sm:$0xff]
    %v234 = vld [vmem:[#allocation7 + $0x498] sm:$0xff]
    %v235 = vld [vmem:[#allocation7 + $0x4a0] sm:$0xff]
    %v236 = vld [vmem:[#allocation7 + $0x4a8] sm:$0xff]
    %v237 = vld [vmem:[#allocation7 + $0x4b0] sm:$0xff]
    %v238 = vld [vmem:[#allocation7 + $0x4b8] sm:$0xff]
    %v239 = vld [vmem:[#allocation7 + $0x4c0] sm:$0xff]
    %v240 = vld [vmem:[#allocation7 + $0x4c8] sm:$0xff]
    %v241 = vld [vmem:[#allocation7 + $0x4d0] sm:$0xff]
    %v242 = vld [vmem:[#allocation7 + $0x4d8] sm:$0xff]
    %v243 = vld [vmem:[#allocation7 + $0x4e0] sm:$0xff]
    %v244 = vld [vmem:[#allocation7 + $0x4e8] sm:$0xff]
    %v245 = vld [vmem:[#allocation7 + $0x4f0] sm:$0xff]
    %v246 = vld [vmem:[#allocation7 + $0x4f8] sm:$0xff]
    %v247 = vld [vmem:[#allocation7 + $0x500] sm:$0xff]
    %v248 = vld [vmem:[#allocation7 + $0x508] sm:$0xff]
    %v249 = vld [vmem:[#allocation7 + $0x510] sm:$0xff]
    %v250 = vld [vmem:[#allocation7 + $0x518] sm:$0xff]
    %v251 = vld [vmem:[#allocation7 + $0x520] sm:$0xff]
    %v252 = vld [vmem:[#allocation7 + $0x528] sm:$0xff]
    %v253 = vld [vmem:[#allocation7 + $0x530] sm:$0xff]
    %v254 = vld [vmem:[#allocation7 + $0x538] sm:$0xff]
    %v255 = vld [vmem:[#allocation7 + $0x540] sm:$0xff]
    %v256 = vld [vmem:[#allocation7 + $0x548] sm:$0xff]
    %v257 = vld [vmem:[#allocation7 + $0x550] sm:$0xff]
    %v258 = vld [vmem:[#allocation7 + $0x558] sm:$0xff]
    %v259 = vld [vmem:[#allocation7 + $0x560] sm:$0xff]
    %v260 = vld [vmem:[#allocation7 + $0x568] sm:$0xff]
    %v261 = vld [vmem:[#allocation7 + $0x570] sm:$0xff]
    %v262 = vld [vmem:[#allocation7 + $0x578] sm:$0xff]
    %v263 = vld [vmem:[#allocation7 + $0x580] sm:$0xff]
    %v264 = vld [vmem:[#allocation7 + $0x588] sm:$0xff]
    %v265 = vld [vmem:[#allocation7 + $0x590] sm:$0xff]
    %v266 = vld [vmem:[#allocation7 + $0x598] sm:$0xff]
    %v267 = vld [vmem:[#allocation7 + $0x5a0] sm:$0xff]
    %v268 = vld [vmem:[#allocation7 + $0x5a8] sm:$0xff]
    %v269 = vld [vmem:[#allocation7 + $0x5b0] sm:$0xff]
    %v270 = vld [vmem:[#allocation7 + $0x5b8] sm:$0xff]
    %v271 = vld [vmem:[#allocation7 + $0x5c0] sm:$0xff]
    %v272 = vld [vmem:[#allocation7 + $0x5c8] sm:$0xff]
    %v273 = vld [vmem:[#allocation7 + $0x5d0] sm:$0xff]
    %v274 = vld [vmem:[#allocation7 + $0x5d8] sm:$0xff]
    %v275 = vld [vmem:[#allocation7 + $0x5e0] sm:$0xff]
    %v276 = vld [vmem:[#allocation7 + $0x5e8] sm:$0xff]
    %v277 = vld [vmem:[#allocation7 + $0x5f0] sm:$0xff]
    %v278 = vld [vmem:[#allocation7 + $0x5f8] sm:$0xff]
    %v279 = vld [vmem:[#allocation7 + $0x600] sm:$0xff]
    %v280 = vld [vmem:[#allocation7 + $0x608] sm:$0xff]
    %v281 = vld [vmem:[#allocation7 + $0x610] sm:$0xff]
    %v282 = vld [vmem:[#allocation7 + $0x618] sm:$0xff]
    %v283 = vld [vmem:[#allocation7 + $0x620] sm:$0xff]
    %v284 = vld [vmem:[#allocation7 + $0x628] sm:$0xff]
    %v285 = vld [vmem:[#allocation7 + $0x630] sm:$0xff]
    %v286 = vld [vmem:[#allocation7 + $0x638] sm:$0xff]
    %v287 = vld [vmem:[#allocation7 + $0x640] sm:$0xff]
    %v288 = vld [vmem:[#allocation7 + $0x648] sm:$0xff]
    %v289 = vld [vmem:[#allocation7 + $0x650] sm:$0xff]
    %v290 = vld [vmem:[#allocation7 + $0x658] sm:$0xff]
    %v291 = vld [vmem:[#allocation7 + $0x660] sm:$0xff]
    %v292 = vld [vmem:[#allocation7 + $0x668] sm:$0xff]
    %v293 = vld [vmem:[#allocation7 + $0x670] sm:$0xff]
    %v294 = vld [vmem:[#allocation7 + $0x678] sm:$0xff]
    %v295 = vld [vmem:[#allocation7 + $0x680] sm:$0xff]
    %v296 = vld [vmem:[#allocation7 + $0x688] sm:$0xff]
    %v297 = vld [vmem:[#allocation7 + $0x690] sm:$0xff]
    %v298 = vld [vmem:[#allocation7 + $0x698] sm:$0xff]
    %v299 = vld [vmem:[#allocation7 + $0x6a0] sm:$0xff]
    %v300 = vld [vmem:[#allocation7 + $0x6a8] sm:$0xff]
    %v301 = vld [vmem:[#allocation7 + $0x6b0] sm:$0xff]
    %v302 = vld [vmem:[#allocation7 + $0x6b8] sm:$0xff]
    %v303 = vld [vmem:[#allocation7 + $0x6c0] sm:$0xff]
    %v304 = vld [vmem:[#allocation7 + $0x6c8] sm:$0xff]
    %v305 = vld [vmem:[#allocation7 + $0x6d0] sm:$0xff]
    %v306 = vld [vmem:[#allocation7 + $0x6d8] sm:$0xff]
    %v307 = vld [vmem:[#allocation7 + $0x6e0] sm:$0xff]
    %v308 = vld [vmem:[#allocation7 + $0x6e8] sm:$0xff]
    %v309 = vld [vmem:[#allocation7 + $0x6f0] sm:$0xff]
    %v310 = vld [vmem:[#allocation7 + $0x6f8] sm:$0xff]
    %v311 = vld [vmem:[#allocation7 + $0x700] sm:$0xff]
    %v312 = vld [vmem:[#allocation7 + $0x708] sm:$0xff]
    %v313 = vld [vmem:[#allocation7 + $0x710] sm:$0xff]
    %v314 = vld [vmem:[#allocation7 + $0x718] sm:$0xff]
    %v315 = vld [vmem:[#allocation7 + $0x720] sm:$0xff]
    %v316 = vld [vmem:[#allocation7 + $0x728] sm:$0xff]
    %v317 = vld [vmem:[#allocation7 + $0x730] sm:$0xff]
    %v318 = vld [vmem:[#allocation7 + $0x738] sm:$0xff]
    %v319 = vld [vmem:[#allocation7 + $0x740] sm:$0xff]
    %v320 = vld [vmem:[#allocation7 + $0x748] sm:$0xff]
    %v321 = vld [vmem:[#allocation7 + $0x750] sm:$0xff]
    %v322 = vld [vmem:[#allocation7 + $0x758] sm:$0xff]
    %v323 = vld [vmem:[#allocation7 + $0x760] sm:$0xff]
    %v324 = vld [vmem:[#allocation7 + $0x768] sm:$0xff]
    %v325 = vld [vmem:[#allocation7 + $0x770] sm:$0xff]
    %v326 = vld [vmem:[#allocation7 + $0x778] sm:$0xff]
    %v327 = vld [vmem:[#allocation7 + $0x780] sm:$0xff]
    %v328 = vld [vmem:[#allocation7 + $0x788] sm:$0xff]
    %v329 = vld [vmem:[#allocation7 + $0x790] sm:$0xff]
    %v330 = vld [vmem:[#allocation7 + $0x798] sm:$0xff]
    %v331 = vld [vmem:[#allocation7 + $0x7a0] sm:$0xff]
    %v332 = vld [vmem:[#allocation7 + $0x7a8] sm:$0xff]
    %v333 = vld [vmem:[#allocation7 + $0x7b0] sm:$0xff]
    %v334 = vld [vmem:[#allocation7 + $0x7b8] sm:$0xff]
    %v335 = vld [vmem:[#allocation7 + $0x7c0] sm:$0xff]
    %v336 = vld [vmem:[#allocation7 + $0x7c8] sm:$0xff]
    %v337 = vld [vmem:[#allocation7 + $0x7d0] sm:$0xff]
    %v338 = vld [vmem:[#allocation7 + $0x7d8] sm:$0xff]
    %v339 = vld [vmem:[#allocation7 + $0x7e0] sm:$0xff]
    %v340 = vld [vmem:[#allocation7 + $0x7e8] sm:$0xff]
    %v341 = vld [vmem:[#allocation7 + $0x7f0] sm:$0xff]
    %v342 = vld [vmem:[#allocation7 + $0x7f8] sm:$0xff]
    %v345 = vunpack.c.l.b16 %v85
    %v346 = vunpack.c.h.b16 %v85
    %v347 = vunpack.c.l.b16 %v86
    %v348 = vunpack.c.h.b16 %v86
    %v349 = vpack.c.b16 %v345, %v345
    %v350 = vpack.c.b16 %v346, %v346
    %v351 = vpack.c.b16 %v347, %v347
    %v352 = vpack.c.b16 %v348, %v348
    %v613 = vunpack.c.l.b16 %v87
    %v614 = vunpack.c.h.b16 %v87
    %v615 = vunpack.c.l.b16 %v88
    %v616 = vunpack.c.h.b16 %v88
    %v617 = vunpack.c.l.b16 %v89
    %v618 = vunpack.c.h.b16 %v89
    %v619 = vunpack.c.l.b16 %v90
    %v620 = vunpack.c.h.b16 %v90
    %v621 = vunpack.c.l.b16 %v91
    %v622 = vunpack.c.h.b16 %v91
    %v623 = vunpack.c.l.b16 %v92
    %v624 = vunpack.c.h.b16 %v92
    %v625 = vunpack.c.l.b16 %v93
    %v626 = vunpack.c.h.b16 %v93
    %v627 = vunpack.c.l.b16 %v94
    %v628 = vunpack.c.h.b16 %v94
    %v629 = vunpack.c.l.b16 %v95
    %v630 = vunpack.c.h.b16 %v95
    %v631 = vunpack.c.l.b16 %v96
    %v632 = vunpack.c.h.b16 %v96
    %v633 = vunpack.c.l.b16 %v97
    %v634 = vunpack.c.h.b16 %v97
    %v635 = vunpack.c.l.b16 %v98
    %v636 = vunpack.c.h.b16 %v98
    %v637 = vunpack.c.l.b16 %v99
    %v638 = vunpack.c.h.b16 %v99
    %v639 = vunpack.c.l.b16 %v100
    %v640 = vunpack.c.h.b16 %v100
    %v641 = vunpack.c.l.b16 %v101
    %v642 = vunpack.c.h.b16 %v101
    %v643 = vunpack.c.l.b16 %v102
    %v644 = vunpack.c.h.b16 %v102
    %v645 = vunpack.c.l.b16 %v103
    %v646 = vunpack.c.h.b16 %v103
    %v647 = vunpack.c.l.b16 %v104
    %v648 = vunpack.c.h.b16 %v104
    %v649 = vunpack.c.l.b16 %v105
    %v650 = vunpack.c.h.b16 %v105
    %v651 = vunpack.c.l.b16 %v106
    %v652 = vunpack.c.h.b16 %v106
    %v653 = vunpack.c.l.b16 %v107
    %v654 = vunpack.c.h.b16 %v107
    %v655 = vunpack.c.l.b16 %v108
    %v656 = vunpack.c.h.b16 %v108
    %v657 = vunpack.c.l.b16 %v109
    %v658 = vunpack.c.h.b16 %v109
    %v659 = vunpack.c.l.b16 %v110
    %v660 = vunpack.c.h.b16 %v110
    %v661 = vunpack.c.l.b16 %v111
    %v662 = vunpack.c.h.b16 %v111
    %v663 = vunpack.c.l.b16 %v112
    %v664 = vunpack.c.h.b16 %v112
    %v665 = vunpack.c.l.b16 %v113
    %v666 = vunpack.c.h.b16 %v113
    %v667 = vunpack.c.l.b16 %v114
    %v668 = vunpack.c.h.b16 %v114
    %v669 = vunpack.c.l.b16 %v115
    %v670 = vunpack.c.h.b16 %v115
    %v671 = vunpack.c.l.b16 %v116
    %v672 = vunpack.c.h.b16 %v116
    %v673 = vunpack.c.l.b16 %v117
    %v674 = vunpack.c.h.b16 %v117
    %v675 = vunpack.c.l.b16 %v118
    %v676 = vunpack.c.h.b16 %v118
    %v677 = vunpack.c.l.b16 %v119
    %v678 = vunpack.c.h.b16 %v119
    %v679 = vunpack.c.l.b16 %v120
    %v680 = vunpack.c.h.b16 %v120
    %v681 = vunpack.c.l.b16 %v121
    %v682 = vunpack.c.h.b16 %v121
    %v683 = vunpack.c.l.b16 %v122
    %v684 = vunpack.c.h.b16 %v122
    %v685 = vunpack.c.l.b16 %v123
    %v686 = vunpack.c.h.b16 %v123
    %v687 = vunpack.c.l.b16 %v124
    %v688 = vunpack.c.h.b16 %v124
    %v689 = vunpack.c.l.b16 %v125
    %v690 = vunpack.c.h.b16 %v125
    %v691 = vunpack.c.l.b16 %v126
    %v692 = vunpack.c.h.b16 %v126
    %v693 = vunpack.c.l.b16 %v127
    %v694 = vunpack.c.h.b16 %v127
    %v695 = vunpack.c.l.b16 %v128
    %v696 = vunpack.c.h.b16 %v128
    %v697 = vunpack.c.l.b16 %v129
    %v698 = vunpack.c.h.b16 %v129
    %v699 = vunpack.c.l.b16 %v130
    %v700 = vunpack.c.h.b16 %v130
    %v701 = vunpack.c.l.b16 %v131
    %v702 = vunpack.c.h.b16 %v131
    %v703 = vunpack.c.l.b16 %v132
    %v704 = vunpack.c.h.b16 %v132
    %v705 = vunpack.c.l.b16 %v133
    %v706 = vunpack.c.h.b16 %v133
    %v707 = vunpack.c.l.b16 %v134
    %v708 = vunpack.c.h.b16 %v134
    %v709 = vunpack.c.l.b16 %v135
    %v710 = vunpack.c.h.b16 %v135
    %v711 = vunpack.c.l.b16 %v136
    %v712 = vunpack.c.h.b16 %v136
    %v713 = vunpack.c.l.b16 %v137
    %v714 = vunpack.c.h.b16 %v137
    %v715 = vunpack.c.l.b16 %v138
    %v716 = vunpack.c.h.b16 %v138
    %v717 = vunpack.c.l.b16 %v139
    %v718 = vunpack.c.h.b16 %v139
    %v719 = vunpack.c.l.b16 %v140
    %v720 = vunpack.c.h.b16 %v140
    %v721 = vunpack.c.l.b16 %v141
    %v722 = vunpack.c.h.b16 %v141
    %v723 = vunpack.c.l.b16 %v142
    %v724 = vunpack.c.h.b16 %v142
    %v725 = vunpack.c.l.b16 %v143
    %v726 = vunpack.c.h.b16 %v143
    %v727 = vunpack.c.l.b16 %v144
    %v728 = vunpack.c.h.b16 %v144
    %v729 = vunpack.c.l.b16 %v145
    %v730 = vunpack.c.h.b16 %v145
    %v731 = vunpack.c.l.b16 %v146
    %v732 = vunpack.c.h.b16 %v146
    %v733 = vunpack.c.l.b16 %v147
    %v734 = vunpack.c.h.b16 %v147
    %v735 = vunpack.c.l.b16 %v148
    %v736 = vunpack.c.h.b16 %v148
    %v737 = vunpack.c.l.b16 %v149
    %v738 = vunpack.c.h.b16 %v149
    %v739 = vunpack.c.l.b16 %v150
    %v740 = vunpack.c.h.b16 %v150
    %v741 = vunpack.c.l.b16 %v151
    %v742 = vunpack.c.h.b16 %v151
    %v743 = vunpack.c.l.b16 %v152
    %v744 = vunpack.c.h.b16 %v152
    %v745 = vunpack.c.l.b16 %v153
    %v746 = vunpack.c.h.b16 %v153
    %v747 = vunpack.c.l.b16 %v154
    %v748 = vunpack.c.h.b16 %v154
    %v749 = vunpack.c.l.b16 %v155
    %v750 = vunpack.c.h.b16 %v155
    %v751 = vunpack.c.l.b16 %v156
    %v752 = vunpack.c.h.b16 %v156
    %v753 = vunpack.c.l.b16 %v157
    %v754 = vunpack.c.h.b16 %v157
    %v755 = vunpack.c.l.b16 %v158
    %v756 = vunpack.c.h.b16 %v158
    %v757 = vunpack.c.l.b16 %v159
    %v758 = vunpack.c.h.b16 %v159
    %v759 = vunpack.c.l.b16 %v160
    %v760 = vunpack.c.h.b16 %v160
    %v761 = vunpack.c.l.b16 %v161
    %v762 = vunpack.c.h.b16 %v161
    %v763 = vunpack.c.l.b16 %v162
    %v764 = vunpack.c.h.b16 %v162
    %v765 = vunpack.c.l.b16 %v163
    %v766 = vunpack.c.h.b16 %v163
    %v767 = vunpack.c.l.b16 %v164
    %v768 = vunpack.c.h.b16 %v164
    %v769 = vunpack.c.l.b16 %v165
    %v770 = vunpack.c.h.b16 %v165
    %v771 = vunpack.c.l.b16 %v166
    %v772 = vunpack.c.h.b16 %v166
    %v773 = vunpack.c.l.b16 %v167
    %v774 = vunpack.c.h.b16 %v167
    %v775 = vunpack.c.l.b16 %v168
    %v776 = vunpack.c.h.b16 %v168
    %v777 = vunpack.c.l.b16 %v169
    %v778 = vunpack.c.h.b16 %v169
    %v779 = vunpack.c.l.b16 %v170
    %v780 = vunpack.c.h.b16 %v170
    %v781 = vunpack.c.l.b16 %v171
    %v782 = vunpack.c.h.b16 %v171
    %v783 = vunpack.c.l.b16 %v172
    %v784 = vunpack.c.h.b16 %v172
    %v785 = vunpack.c.l.b16 %v173
    %v786 = vunpack.c.h.b16 %v173
    %v787 = vunpack.c.l.b16 %v174
    %v788 = vunpack.c.h.b16 %v174
    %v789 = vunpack.c.l.b16 %v175
    %v790 = vunpack.c.h.b16 %v175
    %v791 = vunpack.c.l.b16 %v176
    %v792 = vunpack.c.h.b16 %v176
    %v793 = vunpack.c.l.b16 %v177
    %v794 = vunpack.c.h.b16 %v177
    %v795 = vunpack.c.l.b16 %v178
    %v796 = vunpack.c.h.b16 %v178
    %v797 = vunpack.c.l.b16 %v179
    %v798 = vunpack.c.h.b16 %v179
    %v799 = vunpack.c.l.b16 %v180
    %v800 = vunpack.c.h.b16 %v180
    %v801 = vunpack.c.l.b16 %v181
    %v802 = vunpack.c.h.b16 %v181
    %v803 = vunpack.c.l.b16 %v182
    %v804 = vunpack.c.h.b16 %v182
    %v805 = vunpack.c.l.b16 %v183
    %v806 = vunpack.c.h.b16 %v183
    %v807 = vunpack.c.l.b16 %v184
    %v808 = vunpack.c.h.b16 %v184
    %v809 = vunpack.c.l.b16 %v185
    %v810 = vunpack.c.h.b16 %v185
    %v811 = vunpack.c.l.b16 %v186
    %v812 = vunpack.c.h.b16 %v186
    %v813 = vunpack.c.l.b16 %v187
    %v814 = vunpack.c.h.b16 %v187
    %v815 = vunpack.c.l.b16 %v188
    %v816 = vunpack.c.h.b16 %v188
    %v817 = vunpack.c.l.b16 %v189
    %v818 = vunpack.c.h.b16 %v189
    %v819 = vunpack.c.l.b16 %v190
    %v820 = vunpack.c.h.b16 %v190
    %v821 = vunpack.c.l.b16 %v191
    %v822 = vunpack.c.h.b16 %v191
    %v823 = vunpack.c.l.b16 %v192
    %v824 = vunpack.c.h.b16 %v192
    %v825 = vunpack.c.l.b16 %v193
    %v826 = vunpack.c.h.b16 %v193
    %v827 = vunpack.c.l.b16 %v194
    %v828 = vunpack.c.h.b16 %v194
    %v829 = vunpack.c.l.b16 %v195
    %v830 = vunpack.c.h.b16 %v195
    %v831 = vunpack.c.l.b16 %v196
    %v832 = vunpack.c.h.b16 %v196
    %v833 = vunpack.c.l.b16 %v197
    %v834 = vunpack.c.h.b16 %v197
    %v835 = vunpack.c.l.b16 %v198
    %v836 = vunpack.c.h.b16 %v198
    %v837 = vunpack.c.l.b16 %v199
    %v838 = vunpack.c.h.b16 %v199
    %v839 = vunpack.c.l.b16 %v200
    %v840 = vunpack.c.h.b16 %v200
    %v841 = vunpack.c.l.b16 %v201
    %v842 = vunpack.c.h.b16 %v201
    %v843 = vunpack.c.l.b16 %v202
    %v844 = vunpack.c.h.b16 %v202
    %v845 = vunpack.c.l.b16 %v203
    %v846 = vunpack.c.h.b16 %v203
    %v847 = vunpack.c.l.b16 %v204
    %v848 = vunpack.c.h.b16 %v204
    %v849 = vunpack.c.l.b16 %v205
    %v850 = vunpack.c.h.b16 %v205
    %v851 = vunpack.c.l.b16 %v206
    %v852 = vunpack.c.h.b16 %v206
    %v853 = vunpack.c.l.b16 %v207
    %v854 = vunpack.c.h.b16 %v207
    %v855 = vunpack.c.l.b16 %v208
    %v856 = vunpack.c.h.b16 %v208
    %v857 = vunpack.c.l.b16 %v209
    %v858 = vunpack.c.h.b16 %v209
    %v859 = vunpack.c.l.b16 %v210
    %v860 = vunpack.c.h.b16 %v210
    %v861 = vunpack.c.l.b16 %v211
    %v862 = vunpack.c.h.b16 %v211
    %v863 = vunpack.c.l.b16 %v212
    %v864 = vunpack.c.h.b16 %v212
    %v865 = vunpack.c.l.b16 %v213
    %v866 = vunpack.c.h.b16 %v213
    %v867 = vunpack.c.l.b16 %v214
    %v868 = vunpack.c.h.b16 %v214
    %v869 = vunpack.c.l.b16 %v215
    %v870 = vunpack.c.h.b16 %v215
    %v871 = vunpack.c.l.b16 %v216
    %v872 = vunpack.c.h.b16 %v216
    %v873 = vunpack.c.l.b16 %v217
    %v874 = vunpack.c.h.b16 %v217
    %v875 = vunpack.c.l.b16 %v218
    %v876 = vunpack.c.h.b16 %v218
    %v877 = vunpack.c.l.b16 %v219
    %v878 = vunpack.c.h.b16 %v219
    %v879 = vunpack.c.l.b16 %v220
    %v880 = vunpack.c.h.b16 %v220
    %v881 = vunpack.c.l.b16 %v221
    %v882 = vunpack.c.h.b16 %v221
    %v883 = vunpack.c.l.b16 %v222
    %v884 = vunpack.c.h.b16 %v222
    %v885 = vunpack.c.l.b16 %v223
    %v886 = vunpack.c.h.b16 %v223
    %v887 = vunpack.c.l.b16 %v224
    %v888 = vunpack.c.h.b16 %v224
    %v889 = vunpack.c.l.b16 %v225
    %v890 = vunpack.c.h.b16 %v225
    %v891 = vunpack.c.l.b16 %v226
    %v892 = vunpack.c.h.b16 %v226
    %v893 = vunpack.c.l.b16 %v227
    %v894 = vunpack.c.h.b16 %v227
    %v895 = vunpack.c.l.b16 %v228
    %v896 = vunpack.c.h.b16 %v228
    %v897 = vunpack.c.l.b16 %v229
    %v898 = vunpack.c.h.b16 %v229
    %v899 = vunpack.c.l.b16 %v230
    %v900 = vunpack.c.h.b16 %v230
    %v901 = vunpack.c.l.b16 %v231
    %v902 = vunpack.c.h.b16 %v231
    %v903 = vunpack.c.l.b16 %v232
    %v904 = vunpack.c.h.b16 %v232
    %v905 = vunpack.c.l.b16 %v233
    %v906 = vunpack.c.h.b16 %v233
    %v907 = vunpack.c.l.b16 %v234
    %v908 = vunpack.c.h.b16 %v234
    %v909 = vunpack.c.l.b16 %v235
    %v910 = vunpack.c.h.b16 %v235
    %v911 = vunpack.c.l.b16 %v236
    %v912 = vunpack.c.h.b16 %v236
    %v913 = vunpack.c.l.b16 %v237
    %v914 = vunpack.c.h.b16 %v237
    %v915 = vunpack.c.l.b16 %v238
    %v916 = vunpack.c.h.b16 %v238
    %v917 = vunpack.c.l.b16 %v239
    %v918 = vunpack.c.h.b16 %v239
    %v919 = vunpack.c.l.b16 %v240
    %v920 = vunpack.c.h.b16 %v240
    %v921 = vunpack.c.l.b16 %v241
    %v922 = vunpack.c.h.b16 %v241
    %v923 = vunpack.c.l.b16 %v242
    %v924 = vunpack.c.h.b16 %v242
    %v925 = vunpack.c.l.b16 %v243
    %v926 = vunpack.c.h.b16 %v243
    %v927 = vunpack.c.l.b16 %v244
    %v928 = vunpack.c.h.b16 %v244
    %v929 = vunpack.c.l.b16 %v245
    %v930 = vunpack.c.h.b16 %v245
    %v931 = vunpack.c.l.b16 %v246
    %v932 = vunpack.c.h.b16 %v246
    %v933 = vunpack.c.l.b16 %v247
    %v934 = vunpack.c.h.b16 %v247
    %v935 = vunpack.c.l.b16 %v248
    %v936 = vunpack.c.h.b16 %v248
    %v937 = vunpack.c.l.b16 %v249
    %v938 = vunpack.c.h.b16 %v249
    %v939 = vunpack.c.l.b16 %v250
    %v940 = vunpack.c.h.b16 %v250
    %v941 = vunpack.c.l.b16 %v251
    %v942 = vunpack.c.h.b16 %v251
    %v943 = vunpack.c.l.b16 %v252
    %v944 = vunpack.c.h.b16 %v252
    %v945 = vunpack.c.l.b16 %v253
    %v946 = vunpack.c.h.b16 %v253
    %v947 = vunpack.c.l.b16 %v254
    %v948 = vunpack.c.h.b16 %v254
    %v949 = vunpack.c.l.b16 %v255
    %v950 = vunpack.c.h.b16 %v255
    %v951 = vunpack.c.l.b16 %v256
    %v952 = vunpack.c.h.b16 %v256
    %v953 = vunpack.c.l.b16 %v257
    %v954 = vunpack.c.h.b16 %v257
    %v955 = vunpack.c.l.b16 %v258
    %v956 = vunpack.c.h.b16 %v258
    %v957 = vunpack.c.l.b16 %v259
    %v958 = vunpack.c.h.b16 %v259
    %v959 = vunpack.c.l.b16 %v260
    %v960 = vunpack.c.h.b16 %v260
    %v961 = vunpack.c.l.b16 %v261
    %v962 = vunpack.c.h.b16 %v261
    %v963 = vunpack.c.l.b16 %v262
    %v964 = vunpack.c.h.b16 %v262
    %v965 = vunpack.c.l.b16 %v263
    %v966 = vunpack.c.h.b16 %v263
    %v967 = vunpack.c.l.b16 %v264
    %v968 = vunpack.c.h.b16 %v264
    %v969 = vunpack.c.l.b16 %v265
    %v970 = vunpack.c.h.b16 %v265
    %v971 = vunpack.c.l.b16 %v266
    %v972 = vunpack.c.h.b16 %v266
    %v973 = vunpack.c.l.b16 %v267
    %v974 = vunpack.c.h.b16 %v267
    %v975 = vunpack.c.l.b16 %v268
    %v976 = vunpack.c.h.b16 %v268
    %v977 = vunpack.c.l.b16 %v269
    %v978 = vunpack.c.h.b16 %v269
    %v979 = vunpack.c.l.b16 %v270
    %v980 = vunpack.c.h.b16 %v270
    %v981 = vunpack.c.l.b16 %v271
    %v982 = vunpack.c.h.b16 %v271
    %v983 = vunpack.c.l.b16 %v272
    %v984 = vunpack.c.h.b16 %v272
    %v985 = vunpack.c.l.b16 %v273
    %v986 = vunpack.c.h.b16 %v273
    %v987 = vunpack.c.l.b16 %v274
    %v988 = vunpack.c.h.b16 %v274
    %v989 = vunpack.c.l.b16 %v275
    %v990 = vunpack.c.h.b16 %v275
    %v991 = vunpack.c.l.b16 %v276
    %v992 = vunpack.c.h.b16 %v276
    %v993 = vunpack.c.l.b16 %v277
    %v994 = vunpack.c.h.b16 %v277
    %v995 = vunpack.c.l.b16 %v278
    %v996 = vunpack.c.h.b16 %v278
    %v997 = vunpack.c.l.b16 %v279
    %v998 = vunpack.c.h.b16 %v279
    %v999 = vunpack.c.l.b16 %v280
    %v1000 = vunpack.c.h.b16 %v280
    %v1001 = vunpack.c.l.b16 %v281
    %v1002 = vunpack.c.h.b16 %v281
    %v1003 = vunpack.c.l.b16 %v282
    %v1004 = vunpack.c.h.b16 %v282
    %v1005 = vunpack.c.l.b16 %v283
    %v1006 = vunpack.c.h.b16 %v283
    %v1007 = vunpack.c.l.b16 %v284
    %v1008 = vunpack.c.h.b16 %v284
    %v1009 = vunpack.c.l.b16 %v285
    %v1010 = vunpack.c.h.b16 %v285
    %v1011 = vunpack.c.l.b16 %v286
    %v1012 = vunpack.c.h.b16 %v286
    %v1013 = vunpack.c.l.b16 %v287
    %v1014 = vunpack.c.h.b16 %v287
    %v1015 = vunpack.c.l.b16 %v288
    %v1016 = vunpack.c.h.b16 %v288
    %v1017 = vunpack.c.l.b16 %v289
    %v1018 = vunpack.c.h.b16 %v289
    %v1019 = vunpack.c.l.b16 %v290
    %v1020 = vunpack.c.h.b16 %v290
    %v1021 = vunpack.c.l.b16 %v291
    %v1022 = vunpack.c.h.b16 %v291
    %v1023 = vunpack.c.l.b16 %v292
    %v1024 = vunpack.c.h.b16 %v292
    %v1025 = vunpack.c.l.b16 %v293
    %v1026 = vunpack.c.h.b16 %v293
    %v1027 = vunpack.c.l.b16 %v294
    %v1028 = vunpack.c.h.b16 %v294
    %v1029 = vunpack.c.l.b16 %v295
    %v1030 = vunpack.c.h.b16 %v295
    %v1031 = vunpack.c.l.b16 %v296
    %v1032 = vunpack.c.h.b16 %v296
    %v1033 = vunpack.c.l.b16 %v297
    %v1034 = vunpack.c.h.b16 %v297
    %v1035 = vunpack.c.l.b16 %v298
    %v1036 = vunpack.c.h.b16 %v298
    %v1037 = vunpack.c.l.b16 %v299
    %v1038 = vunpack.c.h.b16 %v299
    %v1039 = vunpack.c.l.b16 %v300
    %v1040 = vunpack.c.h.b16 %v300
    %v1041 = vunpack.c.l.b16 %v301
    %v1042 = vunpack.c.h.b16 %v301
    %v1043 = vunpack.c.l.b16 %v302
    %v1044 = vunpack.c.h.b16 %v302
    %v1045 = vunpack.c.l.b16 %v303
    %v1046 = vunpack.c.h.b16 %v303
    %v1047 = vunpack.c.l.b16 %v304
    %v1048 = vunpack.c.h.b16 %v304
    %v1049 = vunpack.c.l.b16 %v305
    %v1050 = vunpack.c.h.b16 %v305
    %v1051 = vunpack.c.l.b16 %v306
    %v1052 = vunpack.c.h.b16 %v306
    %v1053 = vunpack.c.l.b16 %v307
    %v1054 = vunpack.c.h.b16 %v307
    %v1055 = vunpack.c.l.b16 %v308
    %v1056 = vunpack.c.h.b16 %v308
    %v1057 = vunpack.c.l.b16 %v309
    %v1058 = vunpack.c.h.b16 %v309
    %v1059 = vunpack.c.l.b16 %v310
    %v1060 = vunpack.c.h.b16 %v310
    %v1061 = vunpack.c.l.b16 %v311
    %v1062 = vunpack.c.h.b16 %v311
    %v1063 = vunpack.c.l.b16 %v312
    %v1064 = vunpack.c.h.b16 %v312
    %v1065 = vunpack.c.l.b16 %v313
    %v1066 = vunpack.c.h.b16 %v313
    %v1067 = vunpack.c.l.b16 %v314
    %v1068 = vunpack.c.h.b16 %v314
    %v1069 = vunpack.c.l.b16 %v315
    %v1070 = vunpack.c.h.b16 %v315
    %v1071 = vunpack.c.l.b16 %v316
    %v1072 = vunpack.c.h.b16 %v316
    %v1073 = vunpack.c.l.b16 %v317
    %v1074 = vunpack.c.h.b16 %v317
    %v1075 = vunpack.c.l.b16 %v318
    %v1076 = vunpack.c.h.b16 %v318
    %v1077 = vunpack.c.l.b16 %v319
    %v1078 = vunpack.c.h.b16 %v319
    %v1079 = vunpack.c.l.b16 %v320
    %v1080 = vunpack.c.h.b16 %v320
    %v1081 = vunpack.c.l.b16 %v321
    %v1082 = vunpack.c.h.b16 %v321
    %v1083 = vunpack.c.l.b16 %v322
    %v1084 = vunpack.c.h.b16 %v322
    %v1085 = vunpack.c.l.b16 %v323
    %v1086 = vunpack.c.h.b16 %v323
    %v1087 = vunpack.c.l.b16 %v324
    %v1088 = vunpack.c.h.b16 %v324
    %v1089 = vunpack.c.l.b16 %v325
    %v1090 = vunpack.c.h.b16 %v325
    %v1091 = vunpack.c.l.b16 %v326
    %v1092 = vunpack.c.h.b16 %v326
    %v1093 = vunpack.c.l.b16 %v327
    %v1094 = vunpack.c.h.b16 %v327
    %v1095 = vunpack.c.l.b16 %v328
    %v1096 = vunpack.c.h.b16 %v328
    %v1097 = vunpack.c.l.b16 %v329
    %v1098 = vunpack.c.h.b16 %v329
    %v1099 = vunpack.c.l.b16 %v330
    %v1100 = vunpack.c.h.b16 %v330
    %v1101 = vunpack.c.l.b16 %v331
    %v1102 = vunpack.c.h.b16 %v331
    %v1103 = vunpack.c.l.b16 %v332
    %v1104 = vunpack.c.h.b16 %v332
    %v1105 = vunpack.c.l.b16 %v333
    %v1106 = vunpack.c.h.b16 %v333
    %v1107 = vunpack.c.l.b16 %v334
    %v1108 = vunpack.c.h.b16 %v334
    %v1109 = vunpack.c.l.b16 %v335
    %v1110 = vunpack.c.h.b16 %v335
    %v1111 = vunpack.c.l.b16 %v336
    %v1112 = vunpack.c.h.b16 %v336
    %v1113 = vunpack.c.l.b16 %v337
    %v1114 = vunpack.c.h.b16 %v337
    %v1115 = vunpack.c.l.b16 %v338
    %v1116 = vunpack.c.h.b16 %v338
    %v1117 = vunpack.c.l.b16 %v339
    %v1118 = vunpack.c.h.b16 %v339
    %v1119 = vunpack.c.l.b16 %v340
    %v1120 = vunpack.c.h.b16 %v340
    %v1121 = vunpack.c.l.b16 %v341
    %v1122 = vunpack.c.h.b16 %v341
    %v1123 = vunpack.c.l.b16 %v342
    %v1124 = vunpack.c.h.b16 %v342
    %v1125 = vpack.c.b16 %v621, %v613
    %v1126 = vpack.c.b16 %v622, %v614
    %v1127 = vpack.c.b16 %v623, %v615
    %v1128 = vpack.c.b16 %v624, %v616
    %v1129 = vpack.c.b16 %v625, %v617
    %v1130 = vpack.c.b16 %v626, %v618
    %v1131 = vpack.c.b16 %v627, %v619
    %v1132 = vpack.c.b16 %v628, %v620
    %v1133 = vpack.c.b16 %v637, %v629
    %v1134 = vpack.c.b16 %v638, %v630
    %v1135 = vpack.c.b16 %v639, %v631
    %v1136 = vpack.c.b16 %v640, %v632
    %v1137 = vpack.c.b16 %v641, %v633
    %v1138 = vpack.c.b16 %v642, %v634
    %v1139 = vpack.c.b16 %v643, %v635
    %v1140 = vpack.c.b16 %v644, %v636
    %v1141 = vpack.c.b16 %v653, %v645
    %v1142 = vpack.c.b16 %v654, %v646
    %v1143 = vpack.c.b16 %v655, %v647
    %v1144 = vpack.c.b16 %v656, %v648
    %v1145 = vpack.c.b16 %v657, %v649
    %v1146 = vpack.c.b16 %v658, %v650
    %v1147 = vpack.c.b16 %v659, %v651
    %v1148 = vpack.c.b16 %v660, %v652
    %v1149 = vpack.c.b16 %v669, %v661
    %v1150 = vpack.c.b16 %v670, %v662
    %v1151 = vpack.c.b16 %v671, %v663
    %v1152 = vpack.c.b16 %v672, %v664
    %v1153 = vpack.c.b16 %v673, %v665
    %v1154 = vpack.c.b16 %v674, %v666
    %v1155 = vpack.c.b16 %v675, %v667
    %v1156 = vpack.c.b16 %v676, %v668
    %v1157 = vpack.c.b16 %v685, %v677
    %v1158 = vpack.c.b16 %v686, %v678
    %v1159 = vpack.c.b16 %v687, %v679
    %v1160 = vpack.c.b16 %v688, %v680
    %v1161 = vpack.c.b16 %v689, %v681
    %v1162 = vpack.c.b16 %v690, %v682
    %v1163 = vpack.c.b16 %v691, %v683
    %v1164 = vpack.c.b16 %v692, %v684
    %v1165 = vpack.c.b16 %v701, %v693
    %v1166 = vpack.c.b16 %v702, %v694
    %v1167 = vpack.c.b16 %v703, %v695
    %v1168 = vpack.c.b16 %v704, %v696
    %v1169 = vpack.c.b16 %v705, %v697
    %v1170 = vpack.c.b16 %v706, %v698
    %v1171 = vpack.c.b16 %v707, %v699
    %v1172 = vpack.c.b16 %v708, %v700
    %v1173 = vpack.c.b16 %v717, %v709
    %v1174 = vpack.c.b16 %v718, %v710
    %v1175 = vpack.c.b16 %v719, %v711
    %v1176 = vpack.c.b16 %v720, %v712
    %v1177 = vpack.c.b16 %v721, %v713
    %v1178 = vpack.c.b16 %v722, %v714
    %v1179 = vpack.c.b16 %v723, %v715
    %v1180 = vpack.c.b16 %v724, %v716
    %v1181 = vpack.c.b16 %v733, %v725
    %v1182 = vpack.c.b16 %v734, %v726
    %v1183 = vpack.c.b16 %v735, %v727
    %v1184 = vpack.c.b16 %v736, %v728
    %v1185 = vpack.c.b16 %v737, %v729
    %v1186 = vpack.c.b16 %v738, %v730
    %v1187 = vpack.c.b16 %v739, %v731
    %v1188 = vpack.c.b16 %v740, %v732
    %v1189 = vpack.c.b16 %v749, %v741
    %v1190 = vpack.c.b16 %v750, %v742
    %v1191 = vpack.c.b16 %v751, %v743
    %v1192 = vpack.c.b16 %v752, %v744
    %v1193 = vpack.c.b16 %v753, %v745
    %v1194 = vpack.c.b16 %v754, %v746
    %v1195 = vpack.c.b16 %v755, %v747
    %v1196 = vpack.c.b16 %v756, %v748
    %v1197 = vpack.c.b16 %v765, %v757
    %v1198 = vpack.c.b16 %v766, %v758
    %v1199 = vpack.c.b16 %v767, %v759
    %v1200 = vpack.c.b16 %v768, %v760
    %v1201 = vpack.c.b16 %v769, %v761
    %v1202 = vpack.c.b16 %v770, %v762
    %v1203 = vpack.c.b16 %v771, %v763
    %v1204 = vpack.c.b16 %v772, %v764
    %v1205 = vpack.c.b16 %v781, %v773
    %v1206 = vpack.c.b16 %v782, %v774
    %v1207 = vpack.c.b16 %v783, %v775
    %v1208 = vpack.c.b16 %v784, %v776
    %v1209 = vpack.c.b16 %v785, %v777
    %v1210 = vpack.c.b16 %v786, %v778
    %v1211 = vpack.c.b16 %v787, %v779
    %v1212 = vpack.c.b16 %v788, %v780
    %v1213 = vpack.c.b16 %v797, %v789
    %v1214 = vpack.c.b16 %v798, %v790
    %v1215 = vpack.c.b16 %v799, %v791
    %v1216 = vpack.c.b16 %v800, %v792
    %v1217 = vpack.c.b16 %v801, %v793
    %v1218 = vpack.c.b16 %v802, %v794
    %v1219 = vpack.c.b16 %v803, %v795
    %v1220 = vpack.c.b16 %v804, %v796
    %v1221 = vpack.c.b16 %v813, %v805
    %v1222 = vpack.c.b16 %v814, %v806
    %v1223 = vpack.c.b16 %v815, %v807
    %v1224 = vpack.c.b16 %v816, %v808
    %v1225 = vpack.c.b16 %v817, %v809
    %v1226 = vpack.c.b16 %v818, %v810
    %v1227 = vpack.c.b16 %v819, %v811
    %v1228 = vpack.c.b16 %v820, %v812
    %v1229 = vpack.c.b16 %v829, %v821
    %v1230 = vpack.c.b16 %v830, %v822
    %v1231 = vpack.c.b16 %v831, %v823
    %v1232 = vpack.c.b16 %v832, %v824
    %v1233 = vpack.c.b16 %v833, %v825
    %v1234 = vpack.c.b16 %v834, %v826
    %v1235 = vpack.c.b16 %v835, %v827
    %v1236 = vpack.c.b16 %v836, %v828
    %v1237 = vpack.c.b16 %v845, %v837
    %v1238 = vpack.c.b16 %v846, %v838
    %v1239 = vpack.c.b16 %v847, %v839
    %v1240 = vpack.c.b16 %v848, %v840
    %v1241 = vpack.c.b16 %v849, %v841
    %v1242 = vpack.c.b16 %v850, %v842
    %v1243 = vpack.c.b16 %v851, %v843
    %v1244 = vpack.c.b16 %v852, %v844
    %v1245 = vpack.c.b16 %v861, %v853
    %v1246 = vpack.c.b16 %v862, %v854
    %v1247 = vpack.c.b16 %v863, %v855
    %v1248 = vpack.c.b16 %v864, %v856
    %v1249 = vpack.c.b16 %v865, %v857
    %v1250 = vpack.c.b16 %v866, %v858
    %v1251 = vpack.c.b16 %v867, %v859
    %v1252 = vpack.c.b16 %v868, %v860
    %v1253 = vpack.c.b16 %v877, %v869
    %v1254 = vpack.c.b16 %v878, %v870
    %v1255 = vpack.c.b16 %v879, %v871
    %v1256 = vpack.c.b16 %v880, %v872
    %v1257 = vpack.c.b16 %v881, %v873
    %v1258 = vpack.c.b16 %v882, %v874
    %v1259 = vpack.c.b16 %v883, %v875
    %v1260 = vpack.c.b16 %v884, %v876
    %v1261 = vpack.c.b16 %v893, %v885
    %v1262 = vpack.c.b16 %v894, %v886
    %v1263 = vpack.c.b16 %v895, %v887
    %v1264 = vpack.c.b16 %v896, %v888
    %v1265 = vpack.c.b16 %v897, %v889
    %v1266 = vpack.c.b16 %v898, %v890
    %v1267 = vpack.c.b16 %v899, %v891
    %v1268 = vpack.c.b16 %v900, %v892
    %v1269 = vpack.c.b16 %v909, %v901
    %v1270 = vpack.c.b16 %v910, %v902
    %v1271 = vpack.c.b16 %v911, %v903
    %v1272 = vpack.c.b16 %v912, %v904
    %v1273 = vpack.c.b16 %v913, %v905
    %v1274 = vpack.c.b16 %v914, %v906
    %v1275 = vpack.c.b16 %v915, %v907
    %v1276 = vpack.c.b16 %v916, %v908
    %v1277 = vpack.c.b16 %v925, %v917
    %v1278 = vpack.c.b16 %v926, %v918
    %v1279 = vpack.c.b16 %v927, %v919
    %v1280 = vpack.c.b16 %v928, %v920
    %v1281 = vpack.c.b16 %v929, %v921
    %v1282 = vpack.c.b16 %v930, %v922
    %v1283 = vpack.c.b16 %v931, %v923
    %v1284 = vpack.c.b16 %v932, %v924
    %v1285 = vpack.c.b16 %v941, %v933
    %v1286 = vpack.c.b16 %v942, %v934
    %v1287 = vpack.c.b16 %v943, %v935
    %v1288 = vpack.c.b16 %v944, %v936
    %v1289 = vpack.c.b16 %v945, %v937
    %v1290 = vpack.c.b16 %v946, %v938
    %v1291 = vpack.c.b16 %v947, %v939
    %v1292 = vpack.c.b16 %v948, %v940
    %v1293 = vpack.c.b16 %v957, %v949
    %v1294 = vpack.c.b16 %v958, %v950
    %v1295 = vpack.c.b16 %v959, %v951
    %v1296 = vpack.c.b16 %v960, %v952
    %v1297 = vpack.c.b16 %v961, %v953
    %v1298 = vpack.c.b16 %v962, %v954
    %v1299 = vpack.c.b16 %v963, %v955
    %v1300 = vpack.c.b16 %v964, %v956
    %v1301 = vpack.c.b16 %v973, %v965
    %v1302 = vpack.c.b16 %v974, %v966
    %v1303 = vpack.c.b16 %v975, %v967
    %v1304 = vpack.c.b16 %v976, %v968
    %v1305 = vpack.c.b16 %v977, %v969
    %v1306 = vpack.c.b16 %v978, %v970
    %v1307 = vpack.c.b16 %v979, %v971
    %v1308 = vpack.c.b16 %v980, %v972
    %v1309 = vpack.c.b16 %v989, %v981
    %v1310 = vpack.c.b16 %v990, %v982
    %v1311 = vpack.c.b16 %v991, %v983
    %v1312 = vpack.c.b16 %v992, %v984
    %v1313 = vpack.c.b16 %v993, %v985
    %v1314 = vpack.c.b16 %v994, %v986
    %v1315 = vpack.c.b16 %v995, %v987
    %v1316 = vpack.c.b16 %v996, %v988
    %v1317 = vpack.c.b16 %v1005, %v997
    %v1318 = vpack.c.b16 %v1006, %v998
    %v1319 = vpack.c.b16 %v1007, %v999
    %v1320 = vpack.c.b16 %v1008, %v1000
    %v1321 = vpack.c.b16 %v1009, %v1001
    %v1322 = vpack.c.b16 %v1010, %v1002
    %v1323 = vpack.c.b16 %v1011, %v1003
    %v1324 = vpack.c.b16 %v1012, %v1004
    %v1325 = vpack.c.b16 %v1021, %v1013
    %v1326 = vpack.c.b16 %v1022, %v1014
    %v1327 = vpack.c.b16 %v1023, %v1015
    %v1328 = vpack.c.b16 %v1024, %v1016
    %v1329 = vpack.c.b16 %v1025, %v1017
    %v1330 = vpack.c.b16 %v1026, %v1018
    %v1331 = vpack.c.b16 %v1027, %v1019
    %v1332 = vpack.c.b16 %v1028, %v1020
    %v1333 = vpack.c.b16 %v1037, %v1029
    %v1334 = vpack.c.b16 %v1038, %v1030
    %v1335 = vpack.c.b16 %v1039, %v1031
    %v1336 = vpack.c.b16 %v1040, %v1032
    %v1337 = vpack.c.b16 %v1041, %v1033
    %v1338 = vpack.c.b16 %v1042, %v1034
    %v1339 = vpack.c.b16 %v1043, %v1035
    %v1340 = vpack.c.b16 %v1044, %v1036
    %v1341 = vpack.c.b16 %v1053, %v1045
    %v1342 = vpack.c.b16 %v1054, %v1046
    %v1343 = vpack.c.b16 %v1055, %v1047
    %v1344 = vpack.c.b16 %v1056, %v1048
    %v1345 = vpack.c.b16 %v1057, %v1049
    %v1346 = vpack.c.b16 %v1058, %v1050
    %v1347 = vpack.c.b16 %v1059, %v1051
    %v1348 = vpack.c.b16 %v1060, %v1052
    %v1349 = vpack.c.b16 %v1069, %v1061
    %v1350 = vpack.c.b16 %v1070, %v1062
    %v1351 = vpack.c.b16 %v1071, %v1063
    %v1352 = vpack.c.b16 %v1072, %v1064
    %v1353 = vpack.c.b16 %v1073, %v1065
    %v1354 = vpack.c.b16 %v1074, %v1066
    %v1355 = vpack.c.b16 %v1075, %v1067
    %v1356 = vpack.c.b16 %v1076, %v1068
    %v1357 = vpack.c.b16 %v1085, %v1077
    %v1358 = vpack.c.b16 %v1086, %v1078
    %v1359 = vpack.c.b16 %v1087, %v1079
    %v1360 = vpack.c.b16 %v1088, %v1080
    %v1361 = vpack.c.b16 %v1089, %v1081
    %v1362 = vpack.c.b16 %v1090, %v1082
    %v1363 = vpack.c.b16 %v1091, %v1083
    %v1364 = vpack.c.b16 %v1092, %v1084
    %v1365 = vpack.c.b16 %v1101, %v1093
    %v1366 = vpack.c.b16 %v1102, %v1094
    %v1367 = vpack.c.b16 %v1103, %v1095
    %v1368 = vpack.c.b16 %v1104, %v1096
    %v1369 = vpack.c.b16 %v1105, %v1097
    %v1370 = vpack.c.b16 %v1106, %v1098
    %v1371 = vpack.c.b16 %v1107, %v1099
    %v1372 = vpack.c.b16 %v1108, %v1100
    %v1373 = vpack.c.b16 %v1117, %v1109
    %v1374 = vpack.c.b16 %v1118, %v1110
    %v1375 = vpack.c.b16 %v1119, %v1111
    %v1376 = vpack.c.b16 %v1120, %v1112
    %v1377 = vpack.c.b16 %v1121, %v1113
    %v1378 = vpack.c.b16 %v1122, %v1114
    %v1379 = vpack.c.b16 %v1123, %v1115
    %v1380 = vpack.c.b16 %v1124, %v1116
    %1637 = vmatprep.subr.bf16.mxu0 %v1182
    %1638 = vmatpush1.bf16.msra.mxu0 %v1181
    %1639 = vmatprep.subr.bf16.mxu0 %v1174
    %1640 = vmatpush1.bf16.msra.mxu0 %v1173
    %1641 = vmatprep.subr.bf16.mxu0 %v1166
    %1642 = vmatpush1.bf16.msra.mxu0 %v1165
    %1643 = vmatprep.subr.bf16.mxu0 %v1158
    %1644 = vmatpush1.bf16.msra.mxu0 %v1157
    %1645 = vmatprep.subr.bf16.mxu0 %v1150
    %1646 = vmatpush1.bf16.msra.mxu0 %v1149
    %1647 = vmatprep.subr.bf16.mxu0 %v1142
    %1648 = vmatpush1.bf16.msra.mxu0 %v1141
    %1649 = vmatprep.subr.bf16.mxu0 %v1134
    %1650 = vmatpush1.bf16.msra.mxu0 %v1133
    %1651 = vmatprep.subr.bf16.mxu0 %v1126
    %1652 = vmatpush1.bf16.msra.mxu0 %v1125
    %1653 = vmatprep.subr.bf16.mxu0 %v1246
    %1654 = vmatpush2.bf16.msra.mxu0 %v1245
    %1655 = vmatprep.subr.bf16.mxu0 %v1238
    %1656 = vmatpush2.bf16.msra.mxu0 %v1237
    %1657 = vmatprep.subr.bf16.mxu0 %v1230
    %1658 = vmatpush2.bf16.msra.mxu0 %v1229
    %1659 = vmatprep.subr.bf16.mxu0 %v1222
    %1660 = vmatpush2.bf16.msra.mxu0 %v1221
    %1661 = vmatprep.subr.bf16.mxu0 %v1214
    %1662 = vmatpush2.bf16.msra.mxu0 %v1213
    %1663 = vmatprep.subr.bf16.mxu0 %v1206
    %1664 = vmatpush2.bf16.msra.mxu0 %v1205
    %1665 = vmatprep.subr.bf16.mxu0 %v1198
    %1666 = vmatpush2.bf16.msra.mxu0 %v1197
    %1667 = vmatprep.subr.bf16.mxu0 %v1190
    %1668 = vmatpush2.bf16.msra.mxu0 %v1189
    %1669 = vmatprep.mubr.bf16.mxu0 %v350
    %1670 = vmatmul.mubr.bf16.gmra.mxu0 %v349
    %v1671 = vpop.f32.mrf.mxu0
    %v1672 = vadd.f32 0.0, %v1671
    %v1673 = vpop.f32.mrf.mxu0
    %v1674 = vadd.f32 0.0, %v1673
    %v1675 = vpop.f32.mrf.mxu0
    %v1676 = vpop.f32.mrf.mxu0
    %1677 = vdwg.mxu0
    %1678 = vmatprep.subr.bf16.mxu0 %v1310
    %1679 = vmatpush1.bf16.msra.mxu0 %v1309
    %1680 = vmatprep.subr.bf16.mxu0 %v1302
    %1681 = vmatpush1.bf16.msra.mxu0 %v1301
    %1682 = vmatprep.subr.bf16.mxu0 %v1294
    %1683 = vmatpush1.bf16.msra.mxu0 %v1293
    %1684 = vmatprep.subr.bf16.mxu0 %v1286
    %1685 = vmatpush1.bf16.msra.mxu0 %v1285
    %1686 = vmatprep.subr.bf16.mxu0 %v1278
    %1687 = vmatpush1.bf16.msra.mxu0 %v1277
    %1688 = vmatprep.subr.bf16.mxu0 %v1270
    %1689 = vmatpush1.bf16.msra.mxu0 %v1269
    %1690 = vmatprep.subr.bf16.mxu0 %v1262
    %1691 = vmatpush1.bf16.msra.mxu0 %v1261
    %1692 = vmatprep.subr.bf16.mxu0 %v1254
    %1693 = vmatpush1.bf16.msra.mxu0 %v1253
    %1694 = vmatprep.subr.bf16.mxu0 %v1374
    %1695 = vmatpush2.bf16.msra.mxu0 %v1373
    %1696 = vmatprep.subr.bf16.mxu0 %v1366
    %1697 = vmatpush2.bf16.msra.mxu0 %v1365
    %1698 = vmatprep.subr.bf16.mxu0 %v1358
    %1699 = vmatpush2.bf16.msra.mxu0 %v1357
    %1700 = vmatprep.subr.bf16.mxu0 %v1350
    %1701 = vmatpush2.bf16.msra.mxu0 %v1349
    %1702 = vmatprep.subr.bf16.mxu0 %v1342
    %1703 = vmatpush2.bf16.msra.mxu0 %v1341
    %1704 = vmatprep.subr.bf16.mxu0 %v1334
    %1705 = vmatpush2.bf16.msra.mxu0 %v1333
    %1706 = vmatprep.subr.bf16.mxu0 %v1326
    %1707 = vmatpush2.bf16.msra.mxu0 %v1325
    %1708 = vmatprep.subr.bf16.mxu0 %v1318
    %1709 = vmatpush2.bf16.msra.mxu0 %v1317
    %1710 = vmatprep.mubr.bf16.mxu0 %v352
    %1711 = vmatmul.mubr.bf16.gmra.mxu0 %v351
    %v1712 = vpop.f32.mrf.mxu0
    %v1713 = vadd.f32 %v1672, %v1712
    %v1714 = vpop.f32.mrf.mxu0
    %v1715 = vadd.f32 %v1674, %v1714
    %v1716 = vpop.f32.mrf.mxu0
    %v1717 = vpop.f32.mrf.mxu0
    %1718 = vdwg.mxu0
    %1719 = vmatprep.subr.bf16.mxu0 %v1184
    %1720 = vmatpush1.bf16.msra.mxu0 %v1183
    %1721 = vmatprep.subr.bf16.mxu0 %v1176
    %1722 = vmatpush1.bf16.msra.mxu0 %v1175
    %1723 = vmatprep.subr.bf16.mxu0 %v1168
    %1724 = vmatpush1.bf16.msra.mxu0 %v1167
    %1725 = vmatprep.subr.bf16.mxu0 %v1160
    %1726 = vmatpush1.bf16.msra.mxu0 %v1159
    %1727 = vmatprep.subr.bf16.mxu0 %v1152
    %1728 = vmatpush1.bf16.msra.mxu0 %v1151
    %1729 = vmatprep.subr.bf16.mxu0 %v1144
    %1730 = vmatpush1.bf16.msra.mxu0 %v1143
    %1731 = vmatprep.subr.bf16.mxu0 %v1136
    %1732 = vmatpush1.bf16.msra.mxu0 %v1135
    %1733 = vmatprep.subr.bf16.mxu0 %v1128
    %1734 = vmatpush1.bf16.msra.mxu0 %v1127
    %1735 = vmatprep.subr.bf16.mxu0 %v1248
    %1736 = vmatpush2.bf16.msra.mxu0 %v1247
    %1737 = vmatprep.subr.bf16.mxu0 %v1240
    %1738 = vmatpush2.bf16.msra.mxu0 %v1239
    %1739 = vmatprep.subr.bf16.mxu0 %v1232
    %1740 = vmatpush2.bf16.msra.mxu0 %v1231
    %1741 = vmatprep.subr.bf16.mxu0 %v1224
    %1742 = vmatpush2.bf16.msra.mxu0 %v1223
    %1743 = vmatprep.subr.bf16.mxu0 %v1216
    %1744 = vmatpush2.bf16.msra.mxu0 %v1215
    %1745 = vmatprep.subr.bf16.mxu0 %v1208
    %1746 = vmatpush2.bf16.msra.mxu0 %v1207
    %1747 = vmatprep.subr.bf16.mxu0 %v1200
    %1748 = vmatpush2.bf16.msra.mxu0 %v1199
    %1749 = vmatprep.subr.bf16.mxu0 %v1192
    %1750 = vmatpush2.bf16.msra.mxu0 %v1191
    %1751 = vmatprep.mubr.bf16.mxu0 %v350
    %1752 = vmatmul.mubr.bf16.gmra.mxu0 %v349
    %v1753 = vpop.f32.mrf.mxu0
    %v1754 = vadd.f32 0.0, %v1753
    %v1755 = vpop.f32.mrf.mxu0
    %v1756 = vadd.f32 0.0, %v1755
    %v1757 = vpop.f32.mrf.mxu0
    %v1758 = vpop.f32.mrf.mxu0
    %1759 = vdwg.mxu0
    %1760 = vmatprep.subr.bf16.mxu0 %v1312
    %1761 = vmatpush1.bf16.msra.mxu0 %v1311
    %1762 = vmatprep.subr.bf16.mxu0 %v1304
    %1763 = vmatpush1.bf16.msra.mxu0 %v1303
    %1764 = vmatprep.subr.bf16.mxu0 %v1296
    %1765 = vmatpush1.bf16.msra.mxu0 %v1295
    %1766 = vmatprep.subr.bf16.mxu0 %v1288
    %1767 = vmatpush1.bf16.msra.mxu0 %v1287
    %1768 = vmatprep.subr.bf16.mxu0 %v1280
    %1769 = vmatpush1.bf16.msra.mxu0 %v1279
    %1770 = vmatprep.subr.bf16.mxu0 %v1272
    %1771 = vmatpush1.bf16.msra.mxu0 %v1271
    %1772 = vmatprep.subr.bf16.mxu0 %v1264
    %1773 = vmatpush1.bf16.msra.mxu0 %v1263
    %1774 = vmatprep.subr.bf16.mxu0 %v1256
    %1775 = vmatpush1.bf16.msra.mxu0 %v1255
    %1776 = vmatprep.subr.bf16.mxu0 %v1376
    %1777 = vmatpush2.bf16.msra.mxu0 %v1375
    %1778 = vmatprep.subr.bf16.mxu0 %v1368
    %1779 = vmatpush2.bf16.msra.mxu0 %v1367
    %1780 = vmatprep.subr.bf16.mxu0 %v1360
    %1781 = vmatpush2.bf16.msra.mxu0 %v1359
    %1782 = vmatprep.subr.bf16.mxu0 %v1352
    %1783 = vmatpush2.bf16.msra.mxu0 %v1351
    %1784 = vmatprep.subr.bf16.mxu0 %v1344
    %1785 = vmatpush2.bf16.msra.mxu0 %v1343
    %1786 = vmatprep.subr.bf16.mxu0 %v1336
    %1787 = vmatpush2.bf16.msra.mxu0 %v1335
    %1788 = vmatprep.subr.bf16.mxu0 %v1328
    %1789 = vmatpush2.bf16.msra.mxu0 %v1327
    %1790 = vmatprep.subr.bf16.mxu0 %v1320
    %1791 = vmatpush2.bf16.msra.mxu0 %v1319
    %1792 = vmatprep.mubr.bf16.mxu0 %v352
    %1793 = vmatmul.mubr.bf16.gmra.mxu0 %v351
    %v1794 = vpop.f32.mrf.mxu0
    %v1795 = vadd.f32 %v1754, %v1794
    %v1796 = vpop.f32.mrf.mxu0
    %v1797 = vadd.f32 %v1756, %v1796
    %v1798 = vpop.f32.mrf.mxu0
    %v1799 = vpop.f32.mrf.mxu0
    %1800 = vdwg.mxu0
    %1801 = vmatprep.subr.bf16.mxu0 %v1186
    %1802 = vmatpush1.bf16.msra.mxu0 %v1185
    %1803 = vmatprep.subr.bf16.mxu0 %v1178
    %1804 = vmatpush1.bf16.msra.mxu0 %v1177
    %1805 = vmatprep.subr.bf16.mxu0 %v1170
    %1806 = vmatpush1.bf16.msra.mxu0 %v1169
    %1807 = vmatprep.subr.bf16.mxu0 %v1162
    %1808 = vmatpush1.bf16.msra.mxu0 %v1161
    %1809 = vmatprep.subr.bf16.mxu0 %v1154
    %1810 = vmatpush1.bf16.msra.mxu0 %v1153
    %1811 = vmatprep.subr.bf16.mxu0 %v1146
    %1812 = vmatpush1.bf16.msra.mxu0 %v1145
    %1813 = vmatprep.subr.bf16.mxu0 %v1138
    %1814 = vmatpush1.bf16.msra.mxu0 %v1137
    %1815 = vmatprep.subr.bf16.mxu0 %v1130
    %1816 = vmatpush1.bf16.msra.mxu0 %v1129
    %1817 = vmatprep.subr.bf16.mxu0 %v1250
    %1818 = vmatpush2.bf16.msra.mxu0 %v1249
    %1819 = vmatprep.subr.bf16.mxu0 %v1242
    %1820 = vmatpush2.bf16.msra.mxu0 %v1241
    %1821 = vmatprep.subr.bf16.mxu0 %v1234
    %1822 = vmatpush2.bf16.msra.mxu0 %v1233
    %1823 = vmatprep.subr.bf16.mxu0 %v1226
    %1824 = vmatpush2.bf16.msra.mxu0 %v1225
    %1825 = vmatprep.subr.bf16.mxu0 %v1218
    %1826 = vmatpush2.bf16.msra.mxu0 %v1217
    %1827 = vmatprep.subr.bf16.mxu0 %v1210
    %1828 = vmatpush2.bf16.msra.mxu0 %v1209
    %1829 = vmatprep.subr.bf16.mxu0 %v1202
    %1830 = vmatpush2.bf16.msra.mxu0 %v1201
    %1831 = vmatprep.subr.bf16.mxu0 %v1194
    %1832 = vmatpush2.bf16.msra.mxu0 %v1193
    %1833 = vmatprep.mubr.bf16.mxu0 %v350
    %1834 = vmatmul.mubr.bf16.gmra.mxu0 %v349
    %v1835 = vpop.f32.mrf.mxu0
    %v1836 = vadd.f32 0.0, %v1835
    %v1837 = vpop.f32.mrf.mxu0
    %v1838 = vadd.f32 0.0, %v1837
    %v1839 = vpop.f32.mrf.mxu0
    %v1840 = vpop.f32.mrf.mxu0
    %1841 = vdwg.mxu0
    %1842 = vmatprep.subr.bf16.mxu0 %v1314
    %1843 = vmatpush1.bf16.msra.mxu0 %v1313
    %1844 = vmatprep.subr.bf16.mxu0 %v1306
    %1845 = vmatpush1.bf16.msra.mxu0 %v1305
    %1846 = vmatprep.subr.bf16.mxu0 %v1298
    %1847 = vmatpush1.bf16.msra.mxu0 %v1297
    %1848 = vmatprep.subr.bf16.mxu0 %v1290
    %1849 = vmatpush1.bf16.msra.mxu0 %v1289
    %1850 = vmatprep.subr.bf16.mxu0 %v1282
    %1851 = vmatpush1.bf16.msra.mxu0 %v1281
    %1852 = vmatprep.subr.bf16.mxu0 %v1274
    %1853 = vmatpush1.bf16.msra.mxu0 %v1273
    %1854 = vmatprep.subr.bf16.mxu0 %v1266
    %1855 = vmatpush1.bf16.msra.mxu0 %v1265
    %1856 = vmatprep.subr.bf16.mxu0 %v1258
    %1857 = vmatpush1.bf16.msra.mxu0 %v1257
    %1858 = vmatprep.subr.bf16.mxu0 %v1378
    %1859 = vmatpush2.bf16.msra.mxu0 %v1377
    %1860 = vmatprep.subr.bf16.mxu0 %v1370
    %1861 = vmatpush2.bf16.msra.mxu0 %v1369
    %1862 = vmatprep.subr.bf16.mxu0 %v1362
    %1863 = vmatpush2.bf16.msra.mxu0 %v1361
    %1864 = vmatprep.subr.bf16.mxu0 %v1354
    %1865 = vmatpush2.bf16.msra.mxu0 %v1353
    %1866 = vmatprep.subr.bf16.mxu0 %v1346
    %1867 = vmatpush2.bf16.msra.mxu0 %v1345
    %1868 = vmatprep.subr.bf16.mxu0 %v1338
    %1869 = vmatpush2.bf16.msra.mxu0 %v1337
    %1870 = vmatprep.subr.bf16.mxu0 %v1330
    %1871 = vmatpush2.bf16.msra.mxu0 %v1329
    %1872 = vmatprep.subr.bf16.mxu0 %v1322
    %1873 = vmatpush2.bf16.msra.mxu0 %v1321
    %1874 = vmatprep.mubr.bf16.mxu0 %v352
    %1875 = vmatmul.mubr.bf16.gmra.mxu0 %v351
    %v1876 = vpop.f32.mrf.mxu0
    %v1877 = vadd.f32 %v1836, %v1876
    %v1878 = vpop.f32.mrf.mxu0
    %v1879 = vadd.f32 %v1838, %v1878
    %v1880 = vpop.f32.mrf.mxu0
    %v1881 = vpop.f32.mrf.mxu0
    %1882 = vdwg.mxu0
    %1883 = vmatprep.subr.bf16.mxu0 %v1188
    %1884 = vmatpush1.bf16.msra.mxu0 %v1187
    %1885 = vmatprep.subr.bf16.mxu0 %v1180
    %1886 = vmatpush1.bf16.msra.mxu0 %v1179
    %1887 = vmatprep.subr.bf16.mxu0 %v1172
    %1888 = vmatpush1.bf16.msra.mxu0 %v1171
    %1889 = vmatprep.subr.bf16.mxu0 %v1164
    %1890 = vmatpush1.bf16.msra.mxu0 %v1163
    %1891 = vmatprep.subr.bf16.mxu0 %v1156
    %1892 = vmatpush1.bf16.msra.mxu0 %v1155
    %1893 = vmatprep.subr.bf16.mxu0 %v1148
    %1894 = vmatpush1.bf16.msra.mxu0 %v1147
    %1895 = vmatprep.subr.bf16.mxu0 %v1140
    %1896 = vmatpush1.bf16.msra.mxu0 %v1139
    %1897 = vmatprep.subr.bf16.mxu0 %v1132
    %1898 = vmatpush1.bf16.msra.mxu0 %v1131
    %1899 = vmatprep.subr.bf16.mxu0 %v1252
    %1900 = vmatpush2.bf16.msra.mxu0 %v1251
    %1901 = vmatprep.subr.bf16.mxu0 %v1244
    %1902 = vmatpush2.bf16.msra.mxu0 %v1243
    %1903 = vmatprep.subr.bf16.mxu0 %v1236
    %1904 = vmatpush2.bf16.msra.mxu0 %v1235
    %1905 = vmatprep.subr.bf16.mxu0 %v1228
    %1906 = vmatpush2.bf16.msra.mxu0 %v1227
    %1907 = vmatprep.subr.bf16.mxu0 %v1220
    %1908 = vmatpush2.bf16.msra.mxu0 %v1219
    %1909 = vmatprep.subr.bf16.mxu0 %v1212
    %1910 = vmatpush2.bf16.msra.mxu0 %v1211
    %1911 = vmatprep.subr.bf16.mxu0 %v1204
    %1912 = vmatpush2.bf16.msra.mxu0 %v1203
    %1913 = vmatprep.subr.bf16.mxu0 %v1196
    %1914 = vmatpush2.bf16.msra.mxu0 %v1195
    %1915 = vmatprep.mubr.bf16.mxu0 %v350
    %1916 = vmatmul.mubr.bf16.gmra.mxu0 %v349
    %v1917 = vpop.f32.mrf.mxu0
    %v1918 = vadd.f32 0.0, %v1917
    %v1919 = vpop.f32.mrf.mxu0
    %v1920 = vadd.f32 0.0, %v1919
    %v1921 = vpop.f32.mrf.mxu0
    %v1922 = vpop.f32.mrf.mxu0
    %1923 = vdwg.mxu0
    %1924 = vmatprep.subr.bf16.mxu0 %v1316
    %1925 = vmatpush1.bf16.msra.mxu0 %v1315
    %1926 = vmatprep.subr.bf16.mxu0 %v1308
    %1927 = vmatpush1.bf16.msra.mxu0 %v1307
    %1928 = vmatprep.subr.bf16.mxu0 %v1300
    %1929 = vmatpush1.bf16.msra.mxu0 %v1299
    %1930 = vmatprep.subr.bf16.mxu0 %v1292
    %1931 = vmatpush1.bf16.msra.mxu0 %v1291
    %1932 = vmatprep.subr.bf16.mxu0 %v1284
    %1933 = vmatpush1.bf16.msra.mxu0 %v1283
    %1934 = vmatprep.subr.bf16.mxu0 %v1276
    %1935 = vmatpush1.bf16.msra.mxu0 %v1275
    %1936 = vmatprep.subr.bf16.mxu0 %v1268
    %1937 = vmatpush1.bf16.msra.mxu0 %v1267
    %1938 = vmatprep.subr.bf16.mxu0 %v1260
    %1939 = vmatpush1.bf16.msra.mxu0 %v1259
    %1940 = vmatprep.subr.bf16.mxu0 %v1380
    %1941 = vmatpush2.bf16.msra.mxu0 %v1379
    %1942 = vmatprep.subr.bf16.mxu0 %v1372
    %1943 = vmatpush2.bf16.msra.mxu0 %v1371
    %1944 = vmatprep.subr.bf16.mxu0 %v1364
    %1945 = vmatpush2.bf16.msra.mxu0 %v1363
    %1946 = vmatprep.subr.bf16.mxu0 %v1356
    %1947 = vmatpush2.bf16.msra.mxu0 %v1355
    %1948 = vmatprep.subr.bf16.mxu0 %v1348
    %1949 = vmatpush2.bf16.msra.mxu0 %v1347
    %1950 = vmatprep.subr.bf16.mxu0 %v1340
    %1951 = vmatpush2.bf16.msra.mxu0 %v1339
    %1952 = vmatprep.subr.bf16.mxu0 %v1332
    %1953 = vmatpush2.bf16.msra.mxu0 %v1331
    %1954 = vmatprep.subr.bf16.mxu0 %v1324
    %1955 = vmatpush2.bf16.msra.mxu0 %v1323
    %1956 = vmatprep.mubr.bf16.mxu0 %v352
    %1957 = vmatmul.mubr.bf16.gmra.mxu0 %v351
    %v1958 = vpop.f32.mrf.mxu0
    %v1959 = vadd.f32 %v1918, %v1958
    %v1960 = vpop.f32.mrf.mxu0
    %v1961 = vadd.f32 %v1920, %v1960
    %v1962 = vpop.f32.mrf.mxu0
    %v1963 = vpop.f32.mrf.mxu0
    %1964 = vdwg.mxu0
    %v1965 = vmax.f32 %v1713, 0.0
    %v1966 = vmax.f32 %v1715, 0.0
    %v1967 = vmax.f32 %v1795, 0.0
    %v1968 = vmax.f32 %v1797, 0.0
    %v1969 = vmax.f32 %v1877, 0.0
    %v1970 = vmax.f32 %v1879, 0.0
    %v1971 = vmax.f32 %v1959, 0.0
    %v1972 = vmax.f32 %v1961, 0.0
    %1973 = vst [vmem:[#allocation11] sm:$0xff] %v1965
    %1974 = vst [vmem:[#allocation11 + $0x8] sm:$0xff] %v1966
    %1975 = vst [vmem:[#allocation11 + $0x10] sm:$0xff] %v1967
    %1976 = vst [vmem:[#allocation11 + $0x18] sm:$0xff] %v1968
    %1977 = vst [vmem:[#allocation11 + $0x20] sm:$0xff] %v1969
    %1978 = vst [vmem:[#allocation11 + $0x28] sm:$0xff] %v1970
    %1979 = vst [vmem:[#allocation11 + $0x30] sm:$0xff] %v1971
    %1980 = vst [vmem:[#allocation11 + $0x38] sm:$0xff] %v1972
    %v1981 = vld [vmem:[#allocation5] sm:$0xff]
    %v1982 = vld [vmem:[#allocation5 + $0x8] sm:$0xff]
    %v1983 = vld [vmem:[#allocation8] sm:$0xff]
    %v1984 = vld [vmem:[#allocation8 + $0x8] sm:$0xff]
    %v1985 = vld [vmem:[#allocation8 + $0x10] sm:$0xff]
    %v1986 = vld [vmem:[#allocation8 + $0x18] sm:$0xff]
    %v1987 = vld [vmem:[#allocation8 + $0x20] sm:$0xff]
    %v1988 = vld [vmem:[#allocation8 + $0x28] sm:$0xff]
    %v1989 = vld [vmem:[#allocation8 + $0x30] sm:$0xff]
    %v1990 = vld [vmem:[#allocation8 + $0x38] sm:$0xff]
    %v1991 = vld [vmem:[#allocation8 + $0x40] sm:$0xff]
    %v1992 = vld [vmem:[#allocation8 + $0x48] sm:$0xff]
    %v1993 = vld [vmem:[#allocation8 + $0x50] sm:$0xff]
    %v1994 = vld [vmem:[#allocation8 + $0x58] sm:$0xff]
    %v1995 = vld [vmem:[#allocation8 + $0x60] sm:$0xff]
    %v1996 = vld [vmem:[#allocation8 + $0x68] sm:$0xff]
    %v1997 = vld [vmem:[#allocation8 + $0x70] sm:$0xff]
    %v1998 = vld [vmem:[#allocation8 + $0x78] sm:$0xff]
    %v1999 = vld [vmem:[#allocation8 + $0x80] sm:$0xff]
    %v2000 = vld [vmem:[#allocation8 + $0x88] sm:$0xff]
    %v2001 = vld [vmem:[#allocation8 + $0x90] sm:$0xff]
    %v2002 = vld [vmem:[#allocation8 + $0x98] sm:$0xff]
    %v2003 = vld [vmem:[#allocation8 + $0xa0] sm:$0xff]
    %v2004 = vld [vmem:[#allocation8 + $0xa8] sm:$0xff]
    %v2005 = vld [vmem:[#allocation8 + $0xb0] sm:$0xff]
    %v2006 = vld [vmem:[#allocation8 + $0xb8] sm:$0xff]
    %v2007 = vld [vmem:[#allocation8 + $0xc0] sm:$0xff]
    %v2008 = vld [vmem:[#allocation8 + $0xc8] sm:$0xff]
    %v2009 = vld [vmem:[#allocation8 + $0xd0] sm:$0xff]
    %v2010 = vld [vmem:[#allocation8 + $0xd8] sm:$0xff]
    %v2011 = vld [vmem:[#allocation8 + $0xe0] sm:$0xff]
    %v2012 = vld [vmem:[#allocation8 + $0xe8] sm:$0xff]
    %v2013 = vld [vmem:[#allocation8 + $0xf0] sm:$0xff]
    %v2014 = vld [vmem:[#allocation8 + $0xf8] sm:$0xff]
    %v2015 = vld [vmem:[#allocation8 + $0x100] sm:$0xff]
    %v2016 = vld [vmem:[#allocation8 + $0x108] sm:$0xff]
    %v2017 = vld [vmem:[#allocation8 + $0x110] sm:$0xff]
    %v2018 = vld [vmem:[#allocation8 + $0x118] sm:$0xff]
    %v2019 = vld [vmem:[#allocation8 + $0x120] sm:$0xff]
    %v2020 = vld [vmem:[#allocation8 + $0x128] sm:$0xff]
    %v2021 = vld [vmem:[#allocation8 + $0x130] sm:$0xff]
    %v2022 = vld [vmem:[#allocation8 + $0x138] sm:$0xff]
    %v2023 = vld [vmem:[#allocation8 + $0x140] sm:$0xff]
    %v2024 = vld [vmem:[#allocation8 + $0x148] sm:$0xff]
    %v2025 = vld [vmem:[#allocation8 + $0x150] sm:$0xff]
    %v2026 = vld [vmem:[#allocation8 + $0x158] sm:$0xff]
    %v2027 = vld [vmem:[#allocation8 + $0x160] sm:$0xff]
    %v2028 = vld [vmem:[#allocation8 + $0x168] sm:$0xff]
    %v2029 = vld [vmem:[#allocation8 + $0x170] sm:$0xff]
    %v2030 = vld [vmem:[#allocation8 + $0x178] sm:$0xff]
    %v2031 = vld [vmem:[#allocation8 + $0x180] sm:$0xff]
    %v2032 = vld [vmem:[#allocation8 + $0x188] sm:$0xff]
    %v2033 = vld [vmem:[#allocation8 + $0x190] sm:$0xff]
    %v2034 = vld [vmem:[#allocation8 + $0x198] sm:$0xff]
    %v2035 = vld [vmem:[#allocation8 + $0x1a0] sm:$0xff]
    %v2036 = vld [vmem:[#allocation8 + $0x1a8] sm:$0xff]
    %v2037 = vld [vmem:[#allocation8 + $0x1b0] sm:$0xff]
    %v2038 = vld [vmem:[#allocation8 + $0x1b8] sm:$0xff]
    %v2039 = vld [vmem:[#allocation8 + $0x1c0] sm:$0xff]
    %v2040 = vld [vmem:[#allocation8 + $0x1c8] sm:$0xff]
    %v2041 = vld [vmem:[#allocation8 + $0x1d0] sm:$0xff]
    %v2042 = vld [vmem:[#allocation8 + $0x1d8] sm:$0xff]
    %v2043 = vld [vmem:[#allocation8 + $0x1e0] sm:$0xff]
    %v2044 = vld [vmem:[#allocation8 + $0x1e8] sm:$0xff]
    %v2045 = vld [vmem:[#allocation8 + $0x1f0] sm:$0xff]
    %v2046 = vld [vmem:[#allocation8 + $0x1f8] sm:$0xff]
    %v2047 = vld [vmem:[#allocation8 + $0x200] sm:$0xff]
    %v2048 = vld [vmem:[#allocation8 + $0x208] sm:$0xff]
    %v2049 = vld [vmem:[#allocation8 + $0x210] sm:$0xff]
    %v2050 = vld [vmem:[#allocation8 + $0x218] sm:$0xff]
    %v2051 = vld [vmem:[#allocation8 + $0x220] sm:$0xff]
    %v2052 = vld [vmem:[#allocation8 + $0x228] sm:$0xff]
    %v2053 = vld [vmem:[#allocation8 + $0x230] sm:$0xff]
    %v2054 = vld [vmem:[#allocation8 + $0x238] sm:$0xff]
    %v2055 = vld [vmem:[#allocation8 + $0x240] sm:$0xff]
    %v2056 = vld [vmem:[#allocation8 + $0x248] sm:$0xff]
    %v2057 = vld [vmem:[#allocation8 + $0x250] sm:$0xff]
    %v2058 = vld [vmem:[#allocation8 + $0x258] sm:$0xff]
    %v2059 = vld [vmem:[#allocation8 + $0x260] sm:$0xff]
    %v2060 = vld [vmem:[#allocation8 + $0x268] sm:$0xff]
    %v2061 = vld [vmem:[#allocation8 + $0x270] sm:$0xff]
    %v2062 = vld [vmem:[#allocation8 + $0x278] sm:$0xff]
    %v2063 = vld [vmem:[#allocation8 + $0x280] sm:$0xff]
    %v2064 = vld [vmem:[#allocation8 + $0x288] sm:$0xff]
    %v2065 = vld [vmem:[#allocation8 + $0x290] sm:$0xff]
    %v2066 = vld [vmem:[#allocation8 + $0x298] sm:$0xff]
    %v2067 = vld [vmem:[#allocation8 + $0x2a0] sm:$0xff]
    %v2068 = vld [vmem:[#allocation8 + $0x2a8] sm:$0xff]
    %v2069 = vld [vmem:[#allocation8 + $0x2b0] sm:$0xff]
    %v2070 = vld [vmem:[#allocation8 + $0x2b8] sm:$0xff]
    %v2071 = vld [vmem:[#allocation8 + $0x2c0] sm:$0xff]
    %v2072 = vld [vmem:[#allocation8 + $0x2c8] sm:$0xff]
    %v2073 = vld [vmem:[#allocation8 + $0x2d0] sm:$0xff]
    %v2074 = vld [vmem:[#allocation8 + $0x2d8] sm:$0xff]
    %v2075 = vld [vmem:[#allocation8 + $0x2e0] sm:$0xff]
    %v2076 = vld [vmem:[#allocation8 + $0x2e8] sm:$0xff]
    %v2077 = vld [vmem:[#allocation8 + $0x2f0] sm:$0xff]
    %v2078 = vld [vmem:[#allocation8 + $0x2f8] sm:$0xff]
    %v2079 = vld [vmem:[#allocation8 + $0x300] sm:$0xff]
    %v2080 = vld [vmem:[#allocation8 + $0x308] sm:$0xff]
    %v2081 = vld [vmem:[#allocation8 + $0x310] sm:$0xff]
    %v2082 = vld [vmem:[#allocation8 + $0x318] sm:$0xff]
    %v2083 = vld [vmem:[#allocation8 + $0x320] sm:$0xff]
    %v2084 = vld [vmem:[#allocation8 + $0x328] sm:$0xff]
    %v2085 = vld [vmem:[#allocation8 + $0x330] sm:$0xff]
    %v2086 = vld [vmem:[#allocation8 + $0x338] sm:$0xff]
    %v2087 = vld [vmem:[#allocation8 + $0x340] sm:$0xff]
    %v2088 = vld [vmem:[#allocation8 + $0x348] sm:$0xff]
    %v2089 = vld [vmem:[#allocation8 + $0x350] sm:$0xff]
    %v2090 = vld [vmem:[#allocation8 + $0x358] sm:$0xff]
    %v2091 = vld [vmem:[#allocation8 + $0x360] sm:$0xff]
    %v2092 = vld [vmem:[#allocation8 + $0x368] sm:$0xff]
    %v2093 = vld [vmem:[#allocation8 + $0x370] sm:$0xff]
    %v2094 = vld [vmem:[#allocation8 + $0x378] sm:$0xff]
    %v2095 = vld [vmem:[#allocation8 + $0x380] sm:$0xff]
    %v2096 = vld [vmem:[#allocation8 + $0x388] sm:$0xff]
    %v2097 = vld [vmem:[#allocation8 + $0x390] sm:$0xff]
    %v2098 = vld [vmem:[#allocation8 + $0x398] sm:$0xff]
    %v2099 = vld [vmem:[#allocation8 + $0x3a0] sm:$0xff]
    %v2100 = vld [vmem:[#allocation8 + $0x3a8] sm:$0xff]
    %v2101 = vld [vmem:[#allocation8 + $0x3b0] sm:$0xff]
    %v2102 = vld [vmem:[#allocation8 + $0x3b8] sm:$0xff]
    %v2103 = vld [vmem:[#allocation8 + $0x3c0] sm:$0xff]
    %v2104 = vld [vmem:[#allocation8 + $0x3c8] sm:$0xff]
    %v2105 = vld [vmem:[#allocation8 + $0x3d0] sm:$0xff]
    %v2106 = vld [vmem:[#allocation8 + $0x3d8] sm:$0xff]
    %v2107 = vld [vmem:[#allocation8 + $0x3e0] sm:$0xff]
    %v2108 = vld [vmem:[#allocation8 + $0x3e8] sm:$0xff]
    %v2109 = vld [vmem:[#allocation8 + $0x3f0] sm:$0xff]
    %v2110 = vld [vmem:[#allocation8 + $0x3f8] sm:$0xff]
    %v2111 = vld [vmem:[#allocation8 + $0x400] sm:$0xff]
    %v2112 = vld [vmem:[#allocation8 + $0x408] sm:$0xff]
    %v2113 = vld [vmem:[#allocation8 + $0x410] sm:$0xff]
    %v2114 = vld [vmem:[#allocation8 + $0x418] sm:$0xff]
    %v2115 = vld [vmem:[#allocation8 + $0x420] sm:$0xff]
    %v2116 = vld [vmem:[#allocation8 + $0x428] sm:$0xff]
    %v2117 = vld [vmem:[#allocation8 + $0x430] sm:$0xff]
    %v2118 = vld [vmem:[#allocation8 + $0x438] sm:$0xff]
    %v2119 = vld [vmem:[#allocation8 + $0x440] sm:$0xff]
    %v2120 = vld [vmem:[#allocation8 + $0x448] sm:$0xff]
    %v2121 = vld [vmem:[#allocation8 + $0x450] sm:$0xff]
    %v2122 = vld [vmem:[#allocation8 + $0x458] sm:$0xff]
    %v2123 = vld [vmem:[#allocation8 + $0x460] sm:$0xff]
    %v2124 = vld [vmem:[#allocation8 + $0x468] sm:$0xff]
    %v2125 = vld [vmem:[#allocation8 + $0x470] sm:$0xff]
    %v2126 = vld [vmem:[#allocation8 + $0x478] sm:$0xff]
    %v2127 = vld [vmem:[#allocation8 + $0x480] sm:$0xff]
    %v2128 = vld [vmem:[#allocation8 + $0x488] sm:$0xff]
    %v2129 = vld [vmem:[#allocation8 + $0x490] sm:$0xff]
    %v2130 = vld [vmem:[#allocation8 + $0x498] sm:$0xff]
    %v2131 = vld [vmem:[#allocation8 + $0x4a0] sm:$0xff]
    %v2132 = vld [vmem:[#allocation8 + $0x4a8] sm:$0xff]
    %v2133 = vld [vmem:[#allocation8 + $0x4b0] sm:$0xff]
    %v2134 = vld [vmem:[#allocation8 + $0x4b8] sm:$0xff]
    %v2135 = vld [vmem:[#allocation8 + $0x4c0] sm:$0xff]
    %v2136 = vld [vmem:[#allocation8 + $0x4c8] sm:$0xff]
    %v2137 = vld [vmem:[#allocation8 + $0x4d0] sm:$0xff]
    %v2138 = vld [vmem:[#allocation8 + $0x4d8] sm:$0xff]
    %v2139 = vld [vmem:[#allocation8 + $0x4e0] sm:$0xff]
    %v2140 = vld [vmem:[#allocation8 + $0x4e8] sm:$0xff]
    %v2141 = vld [vmem:[#allocation8 + $0x4f0] sm:$0xff]
    %v2142 = vld [vmem:[#allocation8 + $0x4f8] sm:$0xff]
    %v2143 = vld [vmem:[#allocation8 + $0x500] sm:$0xff]
    %v2144 = vld [vmem:[#allocation8 + $0x508] sm:$0xff]
    %v2145 = vld [vmem:[#allocation8 + $0x510] sm:$0xff]
    %v2146 = vld [vmem:[#allocation8 + $0x518] sm:$0xff]
    %v2147 = vld [vmem:[#allocation8 + $0x520] sm:$0xff]
    %v2148 = vld [vmem:[#allocation8 + $0x528] sm:$0xff]
    %v2149 = vld [vmem:[#allocation8 + $0x530] sm:$0xff]
    %v2150 = vld [vmem:[#allocation8 + $0x538] sm:$0xff]
    %v2151 = vld [vmem:[#allocation8 + $0x540] sm:$0xff]
    %v2152 = vld [vmem:[#allocation8 + $0x548] sm:$0xff]
    %v2153 = vld [vmem:[#allocation8 + $0x550] sm:$0xff]
    %v2154 = vld [vmem:[#allocation8 + $0x558] sm:$0xff]
    %v2155 = vld [vmem:[#allocation8 + $0x560] sm:$0xff]
    %v2156 = vld [vmem:[#allocation8 + $0x568] sm:$0xff]
    %v2157 = vld [vmem:[#allocation8 + $0x570] sm:$0xff]
    %v2158 = vld [vmem:[#allocation8 + $0x578] sm:$0xff]
    %v2159 = vld [vmem:[#allocation8 + $0x580] sm:$0xff]
    %v2160 = vld [vmem:[#allocation8 + $0x588] sm:$0xff]
    %v2161 = vld [vmem:[#allocation8 + $0x590] sm:$0xff]
    %v2162 = vld [vmem:[#allocation8 + $0x598] sm:$0xff]
    %v2163 = vld [vmem:[#allocation8 + $0x5a0] sm:$0xff]
    %v2164 = vld [vmem:[#allocation8 + $0x5a8] sm:$0xff]
    %v2165 = vld [vmem:[#allocation8 + $0x5b0] sm:$0xff]
    %v2166 = vld [vmem:[#allocation8 + $0x5b8] sm:$0xff]
    %v2167 = vld [vmem:[#allocation8 + $0x5c0] sm:$0xff]
    %v2168 = vld [vmem:[#allocation8 + $0x5c8] sm:$0xff]
    %v2169 = vld [vmem:[#allocation8 + $0x5d0] sm:$0xff]
    %v2170 = vld [vmem:[#allocation8 + $0x5d8] sm:$0xff]
    %v2171 = vld [vmem:[#allocation8 + $0x5e0] sm:$0xff]
    %v2172 = vld [vmem:[#allocation8 + $0x5e8] sm:$0xff]
    %v2173 = vld [vmem:[#allocation8 + $0x5f0] sm:$0xff]
    %v2174 = vld [vmem:[#allocation8 + $0x5f8] sm:$0xff]
    %v2175 = vld [vmem:[#allocation8 + $0x600] sm:$0xff]
    %v2176 = vld [vmem:[#allocation8 + $0x608] sm:$0xff]
    %v2177 = vld [vmem:[#allocation8 + $0x610] sm:$0xff]
    %v2178 = vld [vmem:[#allocation8 + $0x618] sm:$0xff]
    %v2179 = vld [vmem:[#allocation8 + $0x620] sm:$0xff]
    %v2180 = vld [vmem:[#allocation8 + $0x628] sm:$0xff]
    %v2181 = vld [vmem:[#allocation8 + $0x630] sm:$0xff]
    %v2182 = vld [vmem:[#allocation8 + $0x638] sm:$0xff]
    %v2183 = vld [vmem:[#allocation8 + $0x640] sm:$0xff]
    %v2184 = vld [vmem:[#allocation8 + $0x648] sm:$0xff]
    %v2185 = vld [vmem:[#allocation8 + $0x650] sm:$0xff]
    %v2186 = vld [vmem:[#allocation8 + $0x658] sm:$0xff]
    %v2187 = vld [vmem:[#allocation8 + $0x660] sm:$0xff]
    %v2188 = vld [vmem:[#allocation8 + $0x668] sm:$0xff]
    %v2189 = vld [vmem:[#allocation8 + $0x670] sm:$0xff]
    %v2190 = vld [vmem:[#allocation8 + $0x678] sm:$0xff]
    %v2191 = vld [vmem:[#allocation8 + $0x680] sm:$0xff]
    %v2192 = vld [vmem:[#allocation8 + $0x688] sm:$0xff]
    %v2193 = vld [vmem:[#allocation8 + $0x690] sm:$0xff]
    %v2194 = vld [vmem:[#allocation8 + $0x698] sm:$0xff]
    %v2195 = vld [vmem:[#allocation8 + $0x6a0] sm:$0xff]
    %v2196 = vld [vmem:[#allocation8 + $0x6a8] sm:$0xff]
    %v2197 = vld [vmem:[#allocation8 + $0x6b0] sm:$0xff]
    %v2198 = vld [vmem:[#allocation8 + $0x6b8] sm:$0xff]
    %v2199 = vld [vmem:[#allocation8 + $0x6c0] sm:$0xff]
    %v2200 = vld [vmem:[#allocation8 + $0x6c8] sm:$0xff]
    %v2201 = vld [vmem:[#allocation8 + $0x6d0] sm:$0xff]
    %v2202 = vld [vmem:[#allocation8 + $0x6d8] sm:$0xff]
    %v2203 = vld [vmem:[#allocation8 + $0x6e0] sm:$0xff]
    %v2204 = vld [vmem:[#allocation8 + $0x6e8] sm:$0xff]
    %v2205 = vld [vmem:[#allocation8 + $0x6f0] sm:$0xff]
    %v2206 = vld [vmem:[#allocation8 + $0x6f8] sm:$0xff]
    %v2207 = vld [vmem:[#allocation8 + $0x700] sm:$0xff]
    %v2208 = vld [vmem:[#allocation8 + $0x708] sm:$0xff]
    %v2209 = vld [vmem:[#allocation8 + $0x710] sm:$0xff]
    %v2210 = vld [vmem:[#allocation8 + $0x718] sm:$0xff]
    %v2211 = vld [vmem:[#allocation8 + $0x720] sm:$0xff]
    %v2212 = vld [vmem:[#allocation8 + $0x728] sm:$0xff]
    %v2213 = vld [vmem:[#allocation8 + $0x730] sm:$0xff]
    %v2214 = vld [vmem:[#allocation8 + $0x738] sm:$0xff]
    %v2215 = vld [vmem:[#allocation8 + $0x740] sm:$0xff]
    %v2216 = vld [vmem:[#allocation8 + $0x748] sm:$0xff]
    %v2217 = vld [vmem:[#allocation8 + $0x750] sm:$0xff]
    %v2218 = vld [vmem:[#allocation8 + $0x758] sm:$0xff]
    %v2219 = vld [vmem:[#allocation8 + $0x760] sm:$0xff]
    %v2220 = vld [vmem:[#allocation8 + $0x768] sm:$0xff]
    %v2221 = vld [vmem:[#allocation8 + $0x770] sm:$0xff]
    %v2222 = vld [vmem:[#allocation8 + $0x778] sm:$0xff]
    %v2223 = vld [vmem:[#allocation8 + $0x780] sm:$0xff]
    %v2224 = vld [vmem:[#allocation8 + $0x788] sm:$0xff]
    %v2225 = vld [vmem:[#allocation8 + $0x790] sm:$0xff]
    %v2226 = vld [vmem:[#allocation8 + $0x798] sm:$0xff]
    %v2227 = vld [vmem:[#allocation8 + $0x7a0] sm:$0xff]
    %v2228 = vld [vmem:[#allocation8 + $0x7a8] sm:$0xff]
    %v2229 = vld [vmem:[#allocation8 + $0x7b0] sm:$0xff]
    %v2230 = vld [vmem:[#allocation8 + $0x7b8] sm:$0xff]
    %v2231 = vld [vmem:[#allocation8 + $0x7c0] sm:$0xff]
    %v2232 = vld [vmem:[#allocation8 + $0x7c8] sm:$0xff]
    %v2233 = vld [vmem:[#allocation8 + $0x7d0] sm:$0xff]
    %v2234 = vld [vmem:[#allocation8 + $0x7d8] sm:$0xff]
    %v2235 = vld [vmem:[#allocation8 + $0x7e0] sm:$0xff]
    %v2236 = vld [vmem:[#allocation8 + $0x7e8] sm:$0xff]
    %v2237 = vld [vmem:[#allocation8 + $0x7f0] sm:$0xff]
    %v2238 = vld [vmem:[#allocation8 + $0x7f8] sm:$0xff]
    %v2241 = vunpack.c.l.b16 %v1981
    %v2242 = vunpack.c.h.b16 %v1981
    %v2243 = vunpack.c.l.b16 %v1982
    %v2244 = vunpack.c.h.b16 %v1982
    %v2245 = vpack.c.b16 %v2241, %v2241
    %v2246 = vpack.c.b16 %v2242, %v2242
    %v2247 = vpack.c.b16 %v2243, %v2243
    %v2248 = vpack.c.b16 %v2244, %v2244
    %v2509 = vunpack.c.l.b16 %v1983
    %v2510 = vunpack.c.h.b16 %v1983
    %v2511 = vunpack.c.l.b16 %v1984
    %v2512 = vunpack.c.h.b16 %v1984
    %v2513 = vunpack.c.l.b16 %v1985
    %v2514 = vunpack.c.h.b16 %v1985
    %v2515 = vunpack.c.l.b16 %v1986
    %v2516 = vunpack.c.h.b16 %v1986
    %v2517 = vunpack.c.l.b16 %v1987
    %v2518 = vunpack.c.h.b16 %v1987
    %v2519 = vunpack.c.l.b16 %v1988
    %v2520 = vunpack.c.h.b16 %v1988
    %v2521 = vunpack.c.l.b16 %v1989
    %v2522 = vunpack.c.h.b16 %v1989
    %v2523 = vunpack.c.l.b16 %v1990
    %v2524 = vunpack.c.h.b16 %v1990
    %v2525 = vunpack.c.l.b16 %v1991
    %v2526 = vunpack.c.h.b16 %v1991
    %v2527 = vunpack.c.l.b16 %v1992
    %v2528 = vunpack.c.h.b16 %v1992
    %v2529 = vunpack.c.l.b16 %v1993
    %v2530 = vunpack.c.h.b16 %v1993
    %v2531 = vunpack.c.l.b16 %v1994
    %v2532 = vunpack.c.h.b16 %v1994
    %v2533 = vunpack.c.l.b16 %v1995
    %v2534 = vunpack.c.h.b16 %v1995
    %v2535 = vunpack.c.l.b16 %v1996
    %v2536 = vunpack.c.h.b16 %v1996
    %v2537 = vunpack.c.l.b16 %v1997
    %v2538 = vunpack.c.h.b16 %v1997
    %v2539 = vunpack.c.l.b16 %v1998
    %v2540 = vunpack.c.h.b16 %v1998
    %v2541 = vunpack.c.l.b16 %v1999
    %v2542 = vunpack.c.h.b16 %v1999
    %v2543 = vunpack.c.l.b16 %v2000
    %v2544 = vunpack.c.h.b16 %v2000
    %v2545 = vunpack.c.l.b16 %v2001
    %v2546 = vunpack.c.h.b16 %v2001
    %v2547 = vunpack.c.l.b16 %v2002
    %v2548 = vunpack.c.h.b16 %v2002
    %v2549 = vunpack.c.l.b16 %v2003
    %v2550 = vunpack.c.h.b16 %v2003
    %v2551 = vunpack.c.l.b16 %v2004
    %v2552 = vunpack.c.h.b16 %v2004
    %v2553 = vunpack.c.l.b16 %v2005
    %v2554 = vunpack.c.h.b16 %v2005
    %v2555 = vunpack.c.l.b16 %v2006
    %v2556 = vunpack.c.h.b16 %v2006
    %v2557 = vunpack.c.l.b16 %v2007
    %v2558 = vunpack.c.h.b16 %v2007
    %v2559 = vunpack.c.l.b16 %v2008
    %v2560 = vunpack.c.h.b16 %v2008
    %v2561 = vunpack.c.l.b16 %v2009
    %v2562 = vunpack.c.h.b16 %v2009
    %v2563 = vunpack.c.l.b16 %v2010
    %v2564 = vunpack.c.h.b16 %v2010
    %v2565 = vunpack.c.l.b16 %v2011
    %v2566 = vunpack.c.h.b16 %v2011
    %v2567 = vunpack.c.l.b16 %v2012
    %v2568 = vunpack.c.h.b16 %v2012
    %v2569 = vunpack.c.l.b16 %v2013
    %v2570 = vunpack.c.h.b16 %v2013
    %v2571 = vunpack.c.l.b16 %v2014
    %v2572 = vunpack.c.h.b16 %v2014
    %v2573 = vunpack.c.l.b16 %v2015
    %v2574 = vunpack.c.h.b16 %v2015
    %v2575 = vunpack.c.l.b16 %v2016
    %v2576 = vunpack.c.h.b16 %v2016
    %v2577 = vunpack.c.l.b16 %v2017
    %v2578 = vunpack.c.h.b16 %v2017
    %v2579 = vunpack.c.l.b16 %v2018
    %v2580 = vunpack.c.h.b16 %v2018
    %v2581 = vunpack.c.l.b16 %v2019
    %v2582 = vunpack.c.h.b16 %v2019
    %v2583 = vunpack.c.l.b16 %v2020
    %v2584 = vunpack.c.h.b16 %v2020
    %v2585 = vunpack.c.l.b16 %v2021
    %v2586 = vunpack.c.h.b16 %v2021
    %v2587 = vunpack.c.l.b16 %v2022
    %v2588 = vunpack.c.h.b16 %v2022
    %v2589 = vunpack.c.l.b16 %v2023
    %v2590 = vunpack.c.h.b16 %v2023
    %v2591 = vunpack.c.l.b16 %v2024
    %v2592 = vunpack.c.h.b16 %v2024
    %v2593 = vunpack.c.l.b16 %v2025
    %v2594 = vunpack.c.h.b16 %v2025
    %v2595 = vunpack.c.l.b16 %v2026
    %v2596 = vunpack.c.h.b16 %v2026
    %v2597 = vunpack.c.l.b16 %v2027
    %v2598 = vunpack.c.h.b16 %v2027
    %v2599 = vunpack.c.l.b16 %v2028
    %v2600 = vunpack.c.h.b16 %v2028
    %v2601 = vunpack.c.l.b16 %v2029
    %v2602 = vunpack.c.h.b16 %v2029
    %v2603 = vunpack.c.l.b16 %v2030
    %v2604 = vunpack.c.h.b16 %v2030
    %v2605 = vunpack.c.l.b16 %v2031
    %v2606 = vunpack.c.h.b16 %v2031
    %v2607 = vunpack.c.l.b16 %v2032
    %v2608 = vunpack.c.h.b16 %v2032
    %v2609 = vunpack.c.l.b16 %v2033
    %v2610 = vunpack.c.h.b16 %v2033
    %v2611 = vunpack.c.l.b16 %v2034
    %v2612 = vunpack.c.h.b16 %v2034
    %v2613 = vunpack.c.l.b16 %v2035
    %v2614 = vunpack.c.h.b16 %v2035
    %v2615 = vunpack.c.l.b16 %v2036
    %v2616 = vunpack.c.h.b16 %v2036
    %v2617 = vunpack.c.l.b16 %v2037
    %v2618 = vunpack.c.h.b16 %v2037
    %v2619 = vunpack.c.l.b16 %v2038
    %v2620 = vunpack.c.h.b16 %v2038
    %v2621 = vunpack.c.l.b16 %v2039
    %v2622 = vunpack.c.h.b16 %v2039
    %v2623 = vunpack.c.l.b16 %v2040
    %v2624 = vunpack.c.h.b16 %v2040
    %v2625 = vunpack.c.l.b16 %v2041
    %v2626 = vunpack.c.h.b16 %v2041
    %v2627 = vunpack.c.l.b16 %v2042
    %v2628 = vunpack.c.h.b16 %v2042
    %v2629 = vunpack.c.l.b16 %v2043
    %v2630 = vunpack.c.h.b16 %v2043
    %v2631 = vunpack.c.l.b16 %v2044
    %v2632 = vunpack.c.h.b16 %v2044
    %v2633 = vunpack.c.l.b16 %v2045
    %v2634 = vunpack.c.h.b16 %v2045
    %v2635 = vunpack.c.l.b16 %v2046
    %v2636 = vunpack.c.h.b16 %v2046
    %v2637 = vunpack.c.l.b16 %v2047
    %v2638 = vunpack.c.h.b16 %v2047
    %v2639 = vunpack.c.l.b16 %v2048
    %v2640 = vunpack.c.h.b16 %v2048
    %v2641 = vunpack.c.l.b16 %v2049
    %v2642 = vunpack.c.h.b16 %v2049
    %v2643 = vunpack.c.l.b16 %v2050
    %v2644 = vunpack.c.h.b16 %v2050
    %v2645 = vunpack.c.l.b16 %v2051
    %v2646 = vunpack.c.h.b16 %v2051
    %v2647 = vunpack.c.l.b16 %v2052
    %v2648 = vunpack.c.h.b16 %v2052
    %v2649 = vunpack.c.l.b16 %v2053
    %v2650 = vunpack.c.h.b16 %v2053
    %v2651 = vunpack.c.l.b16 %v2054
    %v2652 = vunpack.c.h.b16 %v2054
    %v2653 = vunpack.c.l.b16 %v2055
    %v2654 = vunpack.c.h.b16 %v2055
    %v2655 = vunpack.c.l.b16 %v2056
    %v2656 = vunpack.c.h.b16 %v2056
    %v2657 = vunpack.c.l.b16 %v2057
    %v2658 = vunpack.c.h.b16 %v2057
    %v2659 = vunpack.c.l.b16 %v2058
    %v2660 = vunpack.c.h.b16 %v2058
    %v2661 = vunpack.c.l.b16 %v2059
    %v2662 = vunpack.c.h.b16 %v2059
    %v2663 = vunpack.c.l.b16 %v2060
    %v2664 = vunpack.c.h.b16 %v2060
    %v2665 = vunpack.c.l.b16 %v2061
    %v2666 = vunpack.c.h.b16 %v2061
    %v2667 = vunpack.c.l.b16 %v2062
    %v2668 = vunpack.c.h.b16 %v2062
    %v2669 = vunpack.c.l.b16 %v2063
    %v2670 = vunpack.c.h.b16 %v2063
    %v2671 = vunpack.c.l.b16 %v2064
    %v2672 = vunpack.c.h.b16 %v2064
    %v2673 = vunpack.c.l.b16 %v2065
    %v2674 = vunpack.c.h.b16 %v2065
    %v2675 = vunpack.c.l.b16 %v2066
    %v2676 = vunpack.c.h.b16 %v2066
    %v2677 = vunpack.c.l.b16 %v2067
    %v2678 = vunpack.c.h.b16 %v2067
    %v2679 = vunpack.c.l.b16 %v2068
    %v2680 = vunpack.c.h.b16 %v2068
    %v2681 = vunpack.c.l.b16 %v2069
    %v2682 = vunpack.c.h.b16 %v2069
    %v2683 = vunpack.c.l.b16 %v2070
    %v2684 = vunpack.c.h.b16 %v2070
    %v2685 = vunpack.c.l.b16 %v2071
    %v2686 = vunpack.c.h.b16 %v2071
    %v2687 = vunpack.c.l.b16 %v2072
    %v2688 = vunpack.c.h.b16 %v2072
    %v2689 = vunpack.c.l.b16 %v2073
    %v2690 = vunpack.c.h.b16 %v2073
    %v2691 = vunpack.c.l.b16 %v2074
    %v2692 = vunpack.c.h.b16 %v2074
    %v2693 = vunpack.c.l.b16 %v2075
    %v2694 = vunpack.c.h.b16 %v2075
    %v2695 = vunpack.c.l.b16 %v2076
    %v2696 = vunpack.c.h.b16 %v2076
    %v2697 = vunpack.c.l.b16 %v2077
    %v2698 = vunpack.c.h.b16 %v2077
    %v2699 = vunpack.c.l.b16 %v2078
    %v2700 = vunpack.c.h.b16 %v2078
    %v2701 = vunpack.c.l.b16 %v2079
    %v2702 = vunpack.c.h.b16 %v2079
    %v2703 = vunpack.c.l.b16 %v2080
    %v2704 = vunpack.c.h.b16 %v2080
    %v2705 = vunpack.c.l.b16 %v2081
    %v2706 = vunpack.c.h.b16 %v2081
    %v2707 = vunpack.c.l.b16 %v2082
    %v2708 = vunpack.c.h.b16 %v2082
    %v2709 = vunpack.c.l.b16 %v2083
    %v2710 = vunpack.c.h.b16 %v2083
    %v2711 = vunpack.c.l.b16 %v2084
    %v2712 = vunpack.c.h.b16 %v2084
    %v2713 = vunpack.c.l.b16 %v2085
    %v2714 = vunpack.c.h.b16 %v2085
    %v2715 = vunpack.c.l.b16 %v2086
    %v2716 = vunpack.c.h.b16 %v2086
    %v2717 = vunpack.c.l.b16 %v2087
    %v2718 = vunpack.c.h.b16 %v2087
    %v2719 = vunpack.c.l.b16 %v2088
    %v2720 = vunpack.c.h.b16 %v2088
    %v2721 = vunpack.c.l.b16 %v2089
    %v2722 = vunpack.c.h.b16 %v2089
    %v2723 = vunpack.c.l.b16 %v2090
    %v2724 = vunpack.c.h.b16 %v2090
    %v2725 = vunpack.c.l.b16 %v2091
    %v2726 = vunpack.c.h.b16 %v2091
    %v2727 = vunpack.c.l.b16 %v2092
    %v2728 = vunpack.c.h.b16 %v2092
    %v2729 = vunpack.c.l.b16 %v2093
    %v2730 = vunpack.c.h.b16 %v2093
    %v2731 = vunpack.c.l.b16 %v2094
    %v2732 = vunpack.c.h.b16 %v2094
    %v2733 = vunpack.c.l.b16 %v2095
    %v2734 = vunpack.c.h.b16 %v2095
    %v2735 = vunpack.c.l.b16 %v2096
    %v2736 = vunpack.c.h.b16 %v2096
    %v2737 = vunpack.c.l.b16 %v2097
    %v2738 = vunpack.c.h.b16 %v2097
    %v2739 = vunpack.c.l.b16 %v2098
    %v2740 = vunpack.c.h.b16 %v2098
    %v2741 = vunpack.c.l.b16 %v2099
    %v2742 = vunpack.c.h.b16 %v2099
    %v2743 = vunpack.c.l.b16 %v2100
    %v2744 = vunpack.c.h.b16 %v2100
    %v2745 = vunpack.c.l.b16 %v2101
    %v2746 = vunpack.c.h.b16 %v2101
    %v2747 = vunpack.c.l.b16 %v2102
    %v2748 = vunpack.c.h.b16 %v2102
    %v2749 = vunpack.c.l.b16 %v2103
    %v2750 = vunpack.c.h.b16 %v2103
    %v2751 = vunpack.c.l.b16 %v2104
    %v2752 = vunpack.c.h.b16 %v2104
    %v2753 = vunpack.c.l.b16 %v2105
    %v2754 = vunpack.c.h.b16 %v2105
    %v2755 = vunpack.c.l.b16 %v2106
    %v2756 = vunpack.c.h.b16 %v2106
    %v2757 = vunpack.c.l.b16 %v2107
    %v2758 = vunpack.c.h.b16 %v2107
    %v2759 = vunpack.c.l.b16 %v2108
    %v2760 = vunpack.c.h.b16 %v2108
    %v2761 = vunpack.c.l.b16 %v2109
    %v2762 = vunpack.c.h.b16 %v2109
    %v2763 = vunpack.c.l.b16 %v2110
    %v2764 = vunpack.c.h.b16 %v2110
    %v2765 = vunpack.c.l.b16 %v2111
    %v2766 = vunpack.c.h.b16 %v2111
    %v2767 = vunpack.c.l.b16 %v2112
    %v2768 = vunpack.c.h.b16 %v2112
    %v2769 = vunpack.c.l.b16 %v2113
    %v2770 = vunpack.c.h.b16 %v2113
    %v2771 = vunpack.c.l.b16 %v2114
    %v2772 = vunpack.c.h.b16 %v2114
    %v2773 = vunpack.c.l.b16 %v2115
    %v2774 = vunpack.c.h.b16 %v2115
    %v2775 = vunpack.c.l.b16 %v2116
    %v2776 = vunpack.c.h.b16 %v2116
    %v2777 = vunpack.c.l.b16 %v2117
    %v2778 = vunpack.c.h.b16 %v2117
    %v2779 = vunpack.c.l.b16 %v2118
    %v2780 = vunpack.c.h.b16 %v2118
    %v2781 = vunpack.c.l.b16 %v2119
    %v2782 = vunpack.c.h.b16 %v2119
    %v2783 = vunpack.c.l.b16 %v2120
    %v2784 = vunpack.c.h.b16 %v2120
    %v2785 = vunpack.c.l.b16 %v2121
    %v2786 = vunpack.c.h.b16 %v2121
    %v2787 = vunpack.c.l.b16 %v2122
    %v2788 = vunpack.c.h.b16 %v2122
    %v2789 = vunpack.c.l.b16 %v2123
    %v2790 = vunpack.c.h.b16 %v2123
    %v2791 = vunpack.c.l.b16 %v2124
    %v2792 = vunpack.c.h.b16 %v2124
    %v2793 = vunpack.c.l.b16 %v2125
    %v2794 = vunpack.c.h.b16 %v2125
    %v2795 = vunpack.c.l.b16 %v2126
    %v2796 = vunpack.c.h.b16 %v2126
    %v2797 = vunpack.c.l.b16 %v2127
    %v2798 = vunpack.c.h.b16 %v2127
    %v2799 = vunpack.c.l.b16 %v2128
    %v2800 = vunpack.c.h.b16 %v2128
    %v2801 = vunpack.c.l.b16 %v2129
    %v2802 = vunpack.c.h.b16 %v2129
    %v2803 = vunpack.c.l.b16 %v2130
    %v2804 = vunpack.c.h.b16 %v2130
    %v2805 = vunpack.c.l.b16 %v2131
    %v2806 = vunpack.c.h.b16 %v2131
    %v2807 = vunpack.c.l.b16 %v2132
    %v2808 = vunpack.c.h.b16 %v2132
    %v2809 = vunpack.c.l.b16 %v2133
    %v2810 = vunpack.c.h.b16 %v2133
    %v2811 = vunpack.c.l.b16 %v2134
    %v2812 = vunpack.c.h.b16 %v2134
    %v2813 = vunpack.c.l.b16 %v2135
    %v2814 = vunpack.c.h.b16 %v2135
    %v2815 = vunpack.c.l.b16 %v2136
    %v2816 = vunpack.c.h.b16 %v2136
    %v2817 = vunpack.c.l.b16 %v2137
    %v2818 = vunpack.c.h.b16 %v2137
    %v2819 = vunpack.c.l.b16 %v2138
    %v2820 = vunpack.c.h.b16 %v2138
    %v2821 = vunpack.c.l.b16 %v2139
    %v2822 = vunpack.c.h.b16 %v2139
    %v2823 = vunpack.c.l.b16 %v2140
    %v2824 = vunpack.c.h.b16 %v2140
    %v2825 = vunpack.c.l.b16 %v2141
    %v2826 = vunpack.c.h.b16 %v2141
    %v2827 = vunpack.c.l.b16 %v2142
    %v2828 = vunpack.c.h.b16 %v2142
    %v2829 = vunpack.c.l.b16 %v2143
    %v2830 = vunpack.c.h.b16 %v2143
    %v2831 = vunpack.c.l.b16 %v2144
    %v2832 = vunpack.c.h.b16 %v2144
    %v2833 = vunpack.c.l.b16 %v2145
    %v2834 = vunpack.c.h.b16 %v2145
    %v2835 = vunpack.c.l.b16 %v2146
    %v2836 = vunpack.c.h.b16 %v2146
    %v2837 = vunpack.c.l.b16 %v2147
    %v2838 = vunpack.c.h.b16 %v2147
    %v2839 = vunpack.c.l.b16 %v2148
    %v2840 = vunpack.c.h.b16 %v2148
    %v2841 = vunpack.c.l.b16 %v2149
    %v2842 = vunpack.c.h.b16 %v2149
    %v2843 = vunpack.c.l.b16 %v2150
    %v2844 = vunpack.c.h.b16 %v2150
    %v2845 = vunpack.c.l.b16 %v2151
    %v2846 = vunpack.c.h.b16 %v2151
    %v2847 = vunpack.c.l.b16 %v2152
    %v2848 = vunpack.c.h.b16 %v2152
    %v2849 = vunpack.c.l.b16 %v2153
    %v2850 = vunpack.c.h.b16 %v2153
    %v2851 = vunpack.c.l.b16 %v2154
    %v2852 = vunpack.c.h.b16 %v2154
    %v2853 = vunpack.c.l.b16 %v2155
    %v2854 = vunpack.c.h.b16 %v2155
    %v2855 = vunpack.c.l.b16 %v2156
    %v2856 = vunpack.c.h.b16 %v2156
    %v2857 = vunpack.c.l.b16 %v2157
    %v2858 = vunpack.c.h.b16 %v2157
    %v2859 = vunpack.c.l.b16 %v2158
    %v2860 = vunpack.c.h.b16 %v2158
    %v2861 = vunpack.c.l.b16 %v2159
    %v2862 = vunpack.c.h.b16 %v2159
    %v2863 = vunpack.c.l.b16 %v2160
    %v2864 = vunpack.c.h.b16 %v2160
    %v2865 = vunpack.c.l.b16 %v2161
    %v2866 = vunpack.c.h.b16 %v2161
    %v2867 = vunpack.c.l.b16 %v2162
    %v2868 = vunpack.c.h.b16 %v2162
    %v2869 = vunpack.c.l.b16 %v2163
    %v2870 = vunpack.c.h.b16 %v2163
    %v2871 = vunpack.c.l.b16 %v2164
    %v2872 = vunpack.c.h.b16 %v2164
    %v2873 = vunpack.c.l.b16 %v2165
    %v2874 = vunpack.c.h.b16 %v2165
    %v2875 = vunpack.c.l.b16 %v2166
    %v2876 = vunpack.c.h.b16 %v2166
    %v2877 = vunpack.c.l.b16 %v2167
    %v2878 = vunpack.c.h.b16 %v2167
    %v2879 = vunpack.c.l.b16 %v2168
    %v2880 = vunpack.c.h.b16 %v2168
    %v2881 = vunpack.c.l.b16 %v2169
    %v2882 = vunpack.c.h.b16 %v2169
    %v2883 = vunpack.c.l.b16 %v2170
    %v2884 = vunpack.c.h.b16 %v2170
    %v2885 = vunpack.c.l.b16 %v2171
    %v2886 = vunpack.c.h.b16 %v2171
    %v2887 = vunpack.c.l.b16 %v2172
    %v2888 = vunpack.c.h.b16 %v2172
    %v2889 = vunpack.c.l.b16 %v2173
    %v2890 = vunpack.c.h.b16 %v2173
    %v2891 = vunpack.c.l.b16 %v2174
    %v2892 = vunpack.c.h.b16 %v2174
    %v2893 = vunpack.c.l.b16 %v2175
    %v2894 = vunpack.c.h.b16 %v2175
    %v2895 = vunpack.c.l.b16 %v2176
    %v2896 = vunpack.c.h.b16 %v2176
    %v2897 = vunpack.c.l.b16 %v2177
    %v2898 = vunpack.c.h.b16 %v2177
    %v2899 = vunpack.c.l.b16 %v2178
    %v2900 = vunpack.c.h.b16 %v2178
    %v2901 = vunpack.c.l.b16 %v2179
    %v2902 = vunpack.c.h.b16 %v2179
    %v2903 = vunpack.c.l.b16 %v2180
    %v2904 = vunpack.c.h.b16 %v2180
    %v2905 = vunpack.c.l.b16 %v2181
    %v2906 = vunpack.c.h.b16 %v2181
    %v2907 = vunpack.c.l.b16 %v2182
    %v2908 = vunpack.c.h.b16 %v2182
    %v2909 = vunpack.c.l.b16 %v2183
    %v2910 = vunpack.c.h.b16 %v2183
    %v2911 = vunpack.c.l.b16 %v2184
    %v2912 = vunpack.c.h.b16 %v2184
    %v2913 = vunpack.c.l.b16 %v2185
    %v2914 = vunpack.c.h.b16 %v2185
    %v2915 = vunpack.c.l.b16 %v2186
    %v2916 = vunpack.c.h.b16 %v2186
    %v2917 = vunpack.c.l.b16 %v2187
    %v2918 = vunpack.c.h.b16 %v2187
    %v2919 = vunpack.c.l.b16 %v2188
    %v2920 = vunpack.c.h.b16 %v2188
    %v2921 = vunpack.c.l.b16 %v2189
    %v2922 = vunpack.c.h.b16 %v2189
    %v2923 = vunpack.c.l.b16 %v2190
    %v2924 = vunpack.c.h.b16 %v2190
    %v2925 = vunpack.c.l.b16 %v2191
    %v2926 = vunpack.c.h.b16 %v2191
    %v2927 = vunpack.c.l.b16 %v2192
    %v2928 = vunpack.c.h.b16 %v2192
    %v2929 = vunpack.c.l.b16 %v2193
    %v2930 = vunpack.c.h.b16 %v2193
    %v2931 = vunpack.c.l.b16 %v2194
    %v2932 = vunpack.c.h.b16 %v2194
    %v2933 = vunpack.c.l.b16 %v2195
    %v2934 = vunpack.c.h.b16 %v2195
    %v2935 = vunpack.c.l.b16 %v2196
    %v2936 = vunpack.c.h.b16 %v2196
    %v2937 = vunpack.c.l.b16 %v2197
    %v2938 = vunpack.c.h.b16 %v2197
    %v2939 = vunpack.c.l.b16 %v2198
    %v2940 = vunpack.c.h.b16 %v2198
    %v2941 = vunpack.c.l.b16 %v2199
    %v2942 = vunpack.c.h.b16 %v2199
    %v2943 = vunpack.c.l.b16 %v2200
    %v2944 = vunpack.c.h.b16 %v2200
    %v2945 = vunpack.c.l.b16 %v2201
    %v2946 = vunpack.c.h.b16 %v2201
    %v2947 = vunpack.c.l.b16 %v2202
    %v2948 = vunpack.c.h.b16 %v2202
    %v2949 = vunpack.c.l.b16 %v2203
    %v2950 = vunpack.c.h.b16 %v2203
    %v2951 = vunpack.c.l.b16 %v2204
    %v2952 = vunpack.c.h.b16 %v2204
    %v2953 = vunpack.c.l.b16 %v2205
    %v2954 = vunpack.c.h.b16 %v2205
    %v2955 = vunpack.c.l.b16 %v2206
    %v2956 = vunpack.c.h.b16 %v2206
    %v2957 = vunpack.c.l.b16 %v2207
    %v2958 = vunpack.c.h.b16 %v2207
    %v2959 = vunpack.c.l.b16 %v2208
    %v2960 = vunpack.c.h.b16 %v2208
    %v2961 = vunpack.c.l.b16 %v2209
    %v2962 = vunpack.c.h.b16 %v2209
    %v2963 = vunpack.c.l.b16 %v2210
    %v2964 = vunpack.c.h.b16 %v2210
    %v2965 = vunpack.c.l.b16 %v2211
    %v2966 = vunpack.c.h.b16 %v2211
    %v2967 = vunpack.c.l.b16 %v2212
    %v2968 = vunpack.c.h.b16 %v2212
    %v2969 = vunpack.c.l.b16 %v2213
    %v2970 = vunpack.c.h.b16 %v2213
    %v2971 = vunpack.c.l.b16 %v2214
    %v2972 = vunpack.c.h.b16 %v2214
    %v2973 = vunpack.c.l.b16 %v2215
    %v2974 = vunpack.c.h.b16 %v2215
    %v2975 = vunpack.c.l.b16 %v2216
    %v2976 = vunpack.c.h.b16 %v2216
    %v2977 = vunpack.c.l.b16 %v2217
    %v2978 = vunpack.c.h.b16 %v2217
    %v2979 = vunpack.c.l.b16 %v2218
    %v2980 = vunpack.c.h.b16 %v2218
    %v2981 = vunpack.c.l.b16 %v2219
    %v2982 = vunpack.c.h.b16 %v2219
    %v2983 = vunpack.c.l.b16 %v2220
    %v2984 = vunpack.c.h.b16 %v2220
    %v2985 = vunpack.c.l.b16 %v2221
    %v2986 = vunpack.c.h.b16 %v2221
    %v2987 = vunpack.c.l.b16 %v2222
    %v2988 = vunpack.c.h.b16 %v2222
    %v2989 = vunpack.c.l.b16 %v2223
    %v2990 = vunpack.c.h.b16 %v2223
    %v2991 = vunpack.c.l.b16 %v2224
    %v2992 = vunpack.c.h.b16 %v2224
    %v2993 = vunpack.c.l.b16 %v2225
    %v2994 = vunpack.c.h.b16 %v2225
    %v2995 = vunpack.c.l.b16 %v2226
    %v2996 = vunpack.c.h.b16 %v2226
    %v2997 = vunpack.c.l.b16 %v2227
    %v2998 = vunpack.c.h.b16 %v2227
    %v2999 = vunpack.c.l.b16 %v2228
    %v3000 = vunpack.c.h.b16 %v2228
    %v3001 = vunpack.c.l.b16 %v2229
    %v3002 = vunpack.c.h.b16 %v2229
    %v3003 = vunpack.c.l.b16 %v2230
    %v3004 = vunpack.c.h.b16 %v2230
    %v3005 = vunpack.c.l.b16 %v2231
    %v3006 = vunpack.c.h.b16 %v2231
    %v3007 = vunpack.c.l.b16 %v2232
    %v3008 = vunpack.c.h.b16 %v2232
    %v3009 = vunpack.c.l.b16 %v2233
    %v3010 = vunpack.c.h.b16 %v2233
    %v3011 = vunpack.c.l.b16 %v2234
    %v3012 = vunpack.c.h.b16 %v2234
    %v3013 = vunpack.c.l.b16 %v2235
    %v3014 = vunpack.c.h.b16 %v2235
    %v3015 = vunpack.c.l.b16 %v2236
    %v3016 = vunpack.c.h.b16 %v2236
    %v3017 = vunpack.c.l.b16 %v2237
    %v3018 = vunpack.c.h.b16 %v2237
    %v3019 = vunpack.c.l.b16 %v2238
    %v3020 = vunpack.c.h.b16 %v2238
    %v3021 = vpack.c.b16 %v2517, %v2509
    %v3022 = vpack.c.b16 %v2518, %v2510
    %v3023 = vpack.c.b16 %v2519, %v2511
    %v3024 = vpack.c.b16 %v2520, %v2512
    %v3025 = vpack.c.b16 %v2521, %v2513
    %v3026 = vpack.c.b16 %v2522, %v2514
    %v3027 = vpack.c.b16 %v2523, %v2515
    %v3028 = vpack.c.b16 %v2524, %v2516
    %v3029 = vpack.c.b16 %v2533, %v2525
    %v3030 = vpack.c.b16 %v2534, %v2526
    %v3031 = vpack.c.b16 %v2535, %v2527
    %v3032 = vpack.c.b16 %v2536, %v2528
    %v3033 = vpack.c.b16 %v2537, %v2529
    %v3034 = vpack.c.b16 %v2538, %v2530
    %v3035 = vpack.c.b16 %v2539, %v2531
    %v3036 = vpack.c.b16 %v2540, %v2532
    %v3037 = vpack.c.b16 %v2549, %v2541
    %v3038 = vpack.c.b16 %v2550, %v2542
    %v3039 = vpack.c.b16 %v2551, %v2543
    %v3040 = vpack.c.b16 %v2552, %v2544
    %v3041 = vpack.c.b16 %v2553, %v2545
    %v3042 = vpack.c.b16 %v2554, %v2546
    %v3043 = vpack.c.b16 %v2555, %v2547
    %v3044 = vpack.c.b16 %v2556, %v2548
    %v3045 = vpack.c.b16 %v2565, %v2557
    %v3046 = vpack.c.b16 %v2566, %v2558
    %v3047 = vpack.c.b16 %v2567, %v2559
    %v3048 = vpack.c.b16 %v2568, %v2560
    %v3049 = vpack.c.b16 %v2569, %v2561
    %v3050 = vpack.c.b16 %v2570, %v2562
    %v3051 = vpack.c.b16 %v2571, %v2563
    %v3052 = vpack.c.b16 %v2572, %v2564
    %v3053 = vpack.c.b16 %v2581, %v2573
    %v3054 = vpack.c.b16 %v2582, %v2574
    %v3055 = vpack.c.b16 %v2583, %v2575
    %v3056 = vpack.c.b16 %v2584, %v2576
    %v3057 = vpack.c.b16 %v2585, %v2577
    %v3058 = vpack.c.b16 %v2586, %v2578
    %v3059 = vpack.c.b16 %v2587, %v2579
    %v3060 = vpack.c.b16 %v2588, %v2580
    %v3061 = vpack.c.b16 %v2597, %v2589
    %v3062 = vpack.c.b16 %v2598, %v2590
    %v3063 = vpack.c.b16 %v2599, %v2591
    %v3064 = vpack.c.b16 %v2600, %v2592
    %v3065 = vpack.c.b16 %v2601, %v2593
    %v3066 = vpack.c.b16 %v2602, %v2594
    %v3067 = vpack.c.b16 %v2603, %v2595
    %v3068 = vpack.c.b16 %v2604, %v2596
    %v3069 = vpack.c.b16 %v2613, %v2605
    %v3070 = vpack.c.b16 %v2614, %v2606
    %v3071 = vpack.c.b16 %v2615, %v2607
    %v3072 = vpack.c.b16 %v2616, %v2608
    %v3073 = vpack.c.b16 %v2617, %v2609
    %v3074 = vpack.c.b16 %v2618, %v2610
    %v3075 = vpack.c.b16 %v2619, %v2611
    %v3076 = vpack.c.b16 %v2620, %v2612
    %v3077 = vpack.c.b16 %v2629, %v2621
    %v3078 = vpack.c.b16 %v2630, %v2622
    %v3079 = vpack.c.b16 %v2631, %v2623
    %v3080 = vpack.c.b16 %v2632, %v2624
    %v3081 = vpack.c.b16 %v2633, %v2625
    %v3082 = vpack.c.b16 %v2634, %v2626
    %v3083 = vpack.c.b16 %v2635, %v2627
    %v3084 = vpack.c.b16 %v2636, %v2628
    %v3085 = vpack.c.b16 %v2645, %v2637
    %v3086 = vpack.c.b16 %v2646, %v2638
    %v3087 = vpack.c.b16 %v2647, %v2639
    %v3088 = vpack.c.b16 %v2648, %v2640
    %v3089 = vpack.c.b16 %v2649, %v2641
    %v3090 = vpack.c.b16 %v2650, %v2642
    %v3091 = vpack.c.b16 %v2651, %v2643
    %v3092 = vpack.c.b16 %v2652, %v2644
    %v3093 = vpack.c.b16 %v2661, %v2653
    %v3094 = vpack.c.b16 %v2662, %v2654
    %v3095 = vpack.c.b16 %v2663, %v2655
    %v3096 = vpack.c.b16 %v2664, %v2656
    %v3097 = vpack.c.b16 %v2665, %v2657
    %v3098 = vpack.c.b16 %v2666, %v2658
    %v3099 = vpack.c.b16 %v2667, %v2659
    %v3100 = vpack.c.b16 %v2668, %v2660
    %v3101 = vpack.c.b16 %v2677, %v2669
    %v3102 = vpack.c.b16 %v2678, %v2670
    %v3103 = vpack.c.b16 %v2679, %v2671
    %v3104 = vpack.c.b16 %v2680, %v2672
    %v3105 = vpack.c.b16 %v2681, %v2673
    %v3106 = vpack.c.b16 %v2682, %v2674
    %v3107 = vpack.c.b16 %v2683, %v2675
    %v3108 = vpack.c.b16 %v2684, %v2676
    %v3109 = vpack.c.b16 %v2693, %v2685
    %v3110 = vpack.c.b16 %v2694, %v2686
    %v3111 = vpack.c.b16 %v2695, %v2687
    %v3112 = vpack.c.b16 %v2696, %v2688
    %v3113 = vpack.c.b16 %v2697, %v2689
    %v3114 = vpack.c.b16 %v2698, %v2690
    %v3115 = vpack.c.b16 %v2699, %v2691
    %v3116 = vpack.c.b16 %v2700, %v2692
    %v3117 = vpack.c.b16 %v2709, %v2701
    %v3118 = vpack.c.b16 %v2710, %v2702
    %v3119 = vpack.c.b16 %v2711, %v2703
    %v3120 = vpack.c.b16 %v2712, %v2704
    %v3121 = vpack.c.b16 %v2713, %v2705
    %v3122 = vpack.c.b16 %v2714, %v2706
    %v3123 = vpack.c.b16 %v2715, %v2707
    %v3124 = vpack.c.b16 %v2716, %v2708
    %v3125 = vpack.c.b16 %v2725, %v2717
    %v3126 = vpack.c.b16 %v2726, %v2718
    %v3127 = vpack.c.b16 %v2727, %v2719
    %v3128 = vpack.c.b16 %v2728, %v2720
    %v3129 = vpack.c.b16 %v2729, %v2721
    %v3130 = vpack.c.b16 %v2730, %v2722
    %v3131 = vpack.c.b16 %v2731, %v2723
    %v3132 = vpack.c.b16 %v2732, %v2724
    %v3133 = vpack.c.b16 %v2741, %v2733
    %v3134 = vpack.c.b16 %v2742, %v2734
    %v3135 = vpack.c.b16 %v2743, %v2735
    %v3136 = vpack.c.b16 %v2744, %v2736
    %v3137 = vpack.c.b16 %v2745, %v2737
    %v3138 = vpack.c.b16 %v2746, %v2738
    %v3139 = vpack.c.b16 %v2747, %v2739
    %v3140 = vpack.c.b16 %v2748, %v2740
    %v3141 = vpack.c.b16 %v2757, %v2749
    %v3142 = vpack.c.b16 %v2758, %v2750
    %v3143 = vpack.c.b16 %v2759, %v2751
    %v3144 = vpack.c.b16 %v2760, %v2752
    %v3145 = vpack.c.b16 %v2761, %v2753
    %v3146 = vpack.c.b16 %v2762, %v2754
    %v3147 = vpack.c.b16 %v2763, %v2755
    %v3148 = vpack.c.b16 %v2764, %v2756
    %v3149 = vpack.c.b16 %v2773, %v2765
    %v3150 = vpack.c.b16 %v2774, %v2766
    %v3151 = vpack.c.b16 %v2775, %v2767
    %v3152 = vpack.c.b16 %v2776, %v2768
    %v3153 = vpack.c.b16 %v2777, %v2769
    %v3154 = vpack.c.b16 %v2778, %v2770
    %v3155 = vpack.c.b16 %v2779, %v2771
    %v3156 = vpack.c.b16 %v2780, %v2772
    %v3157 = vpack.c.b16 %v2789, %v2781
    %v3158 = vpack.c.b16 %v2790, %v2782
    %v3159 = vpack.c.b16 %v2791, %v2783
    %v3160 = vpack.c.b16 %v2792, %v2784
    %v3161 = vpack.c.b16 %v2793, %v2785
    %v3162 = vpack.c.b16 %v2794, %v2786
    %v3163 = vpack.c.b16 %v2795, %v2787
    %v3164 = vpack.c.b16 %v2796, %v2788
    %v3165 = vpack.c.b16 %v2805, %v2797
    %v3166 = vpack.c.b16 %v2806, %v2798
    %v3167 = vpack.c.b16 %v2807, %v2799
    %v3168 = vpack.c.b16 %v2808, %v2800
    %v3169 = vpack.c.b16 %v2809, %v2801
    %v3170 = vpack.c.b16 %v2810, %v2802
    %v3171 = vpack.c.b16 %v2811, %v2803
    %v3172 = vpack.c.b16 %v2812, %v2804
    %v3173 = vpack.c.b16 %v2821, %v2813
    %v3174 = vpack.c.b16 %v2822, %v2814
    %v3175 = vpack.c.b16 %v2823, %v2815
    %v3176 = vpack.c.b16 %v2824, %v2816
    %v3177 = vpack.c.b16 %v2825, %v2817
    %v3178 = vpack.c.b16 %v2826, %v2818
    %v3179 = vpack.c.b16 %v2827, %v2819
    %v3180 = vpack.c.b16 %v2828, %v2820
    %v3181 = vpack.c.b16 %v2837, %v2829
    %v3182 = vpack.c.b16 %v2838, %v2830
    %v3183 = vpack.c.b16 %v2839, %v2831
    %v3184 = vpack.c.b16 %v2840, %v2832
    %v3185 = vpack.c.b16 %v2841, %v2833
    %v3186 = vpack.c.b16 %v2842, %v2834
    %v3187 = vpack.c.b16 %v2843, %v2835
    %v3188 = vpack.c.b16 %v2844, %v2836
    %v3189 = vpack.c.b16 %v2853, %v2845
    %v3190 = vpack.c.b16 %v2854, %v2846
    %v3191 = vpack.c.b16 %v2855, %v2847
    %v3192 = vpack.c.b16 %v2856, %v2848
    %v3193 = vpack.c.b16 %v2857, %v2849
    %v3194 = vpack.c.b16 %v2858, %v2850
    %v3195 = vpack.c.b16 %v2859, %v2851
    %v3196 = vpack.c.b16 %v2860, %v2852
    %v3197 = vpack.c.b16 %v2869, %v2861
    %v3198 = vpack.c.b16 %v2870, %v2862
    %v3199 = vpack.c.b16 %v2871, %v2863
    %v3200 = vpack.c.b16 %v2872, %v2864
    %v3201 = vpack.c.b16 %v2873, %v2865
    %v3202 = vpack.c.b16 %v2874, %v2866
    %v3203 = vpack.c.b16 %v2875, %v2867
    %v3204 = vpack.c.b16 %v2876, %v2868
    %v3205 = vpack.c.b16 %v2885, %v2877
    %v3206 = vpack.c.b16 %v2886, %v2878
    %v3207 = vpack.c.b16 %v2887, %v2879
    %v3208 = vpack.c.b16 %v2888, %v2880
    %v3209 = vpack.c.b16 %v2889, %v2881
    %v3210 = vpack.c.b16 %v2890, %v2882
    %v3211 = vpack.c.b16 %v2891, %v2883
    %v3212 = vpack.c.b16 %v2892, %v2884
    %v3213 = vpack.c.b16 %v2901, %v2893
    %v3214 = vpack.c.b16 %v2902, %v2894
    %v3215 = vpack.c.b16 %v2903, %v2895
    %v3216 = vpack.c.b16 %v2904, %v2896
    %v3217 = vpack.c.b16 %v2905, %v2897
    %v3218 = vpack.c.b16 %v2906, %v2898
    %v3219 = vpack.c.b16 %v2907, %v2899
    %v3220 = vpack.c.b16 %v2908, %v2900
    %v3221 = vpack.c.b16 %v2917, %v2909
    %v3222 = vpack.c.b16 %v2918, %v2910
    %v3223 = vpack.c.b16 %v2919, %v2911
    %v3224 = vpack.c.b16 %v2920, %v2912
    %v3225 = vpack.c.b16 %v2921, %v2913
    %v3226 = vpack.c.b16 %v2922, %v2914
    %v3227 = vpack.c.b16 %v2923, %v2915
    %v3228 = vpack.c.b16 %v2924, %v2916
    %v3229 = vpack.c.b16 %v2933, %v2925
    %v3230 = vpack.c.b16 %v2934, %v2926
    %v3231 = vpack.c.b16 %v2935, %v2927
    %v3232 = vpack.c.b16 %v2936, %v2928
    %v3233 = vpack.c.b16 %v2937, %v2929
    %v3234 = vpack.c.b16 %v2938, %v2930
    %v3235 = vpack.c.b16 %v2939, %v2931
    %v3236 = vpack.c.b16 %v2940, %v2932
    %v3237 = vpack.c.b16 %v2949, %v2941
    %v3238 = vpack.c.b16 %v2950, %v2942
    %v3239 = vpack.c.b16 %v2951, %v2943
    %v3240 = vpack.c.b16 %v2952, %v2944
    %v3241 = vpack.c.b16 %v2953, %v2945
    %v3242 = vpack.c.b16 %v2954, %v2946
    %v3243 = vpack.c.b16 %v2955, %v2947
    %v3244 = vpack.c.b16 %v2956, %v2948
    %v3245 = vpack.c.b16 %v2965, %v2957
    %v3246 = vpack.c.b16 %v2966, %v2958
    %v3247 = vpack.c.b16 %v2967, %v2959
    %v3248 = vpack.c.b16 %v2968, %v2960
    %v3249 = vpack.c.b16 %v2969, %v2961
    %v3250 = vpack.c.b16 %v2970, %v2962
    %v3251 = vpack.c.b16 %v2971, %v2963
    %v3252 = vpack.c.b16 %v2972, %v2964
    %v3253 = vpack.c.b16 %v2981, %v2973
    %v3254 = vpack.c.b16 %v2982, %v2974
    %v3255 = vpack.c.b16 %v2983, %v2975
    %v3256 = vpack.c.b16 %v2984, %v2976
    %v3257 = vpack.c.b16 %v2985, %v2977
    %v3258 = vpack.c.b16 %v2986, %v2978
    %v3259 = vpack.c.b16 %v2987, %v2979
    %v3260 = vpack.c.b16 %v2988, %v2980
    %v3261 = vpack.c.b16 %v2997, %v2989
    %v3262 = vpack.c.b16 %v2998, %v2990
    %v3263 = vpack.c.b16 %v2999, %v2991
    %v3264 = vpack.c.b16 %v3000, %v2992
    %v3265 = vpack.c.b16 %v3001, %v2993
    %v3266 = vpack.c.b16 %v3002, %v2994
    %v3267 = vpack.c.b16 %v3003, %v2995
    %v3268 = vpack.c.b16 %v3004, %v2996
    %v3269 = vpack.c.b16 %v3013, %v3005
    %v3270 = vpack.c.b16 %v3014, %v3006
    %v3271 = vpack.c.b16 %v3015, %v3007
    %v3272 = vpack.c.b16 %v3016, %v3008
    %v3273 = vpack.c.b16 %v3017, %v3009
    %v3274 = vpack.c.b16 %v3018, %v3010
    %v3275 = vpack.c.b16 %v3019, %v3011
    %v3276 = vpack.c.b16 %v3020, %v3012
    %3533 = vmatprep.subr.bf16.mxu0 %v3078
    %3534 = vmatpush1.bf16.msra.mxu0 %v3077
    %3535 = vmatprep.subr.bf16.mxu0 %v3070
    %3536 = vmatpush1.bf16.msra.mxu0 %v3069
    %3537 = vmatprep.subr.bf16.mxu0 %v3062
    %3538 = vmatpush1.bf16.msra.mxu0 %v3061
    %3539 = vmatprep.subr.bf16.mxu0 %v3054
    %3540 = vmatpush1.bf16.msra.mxu0 %v3053
    %3541 = vmatprep.subr.bf16.mxu0 %v3046
    %3542 = vmatpush1.bf16.msra.mxu0 %v3045
    %3543 = vmatprep.subr.bf16.mxu0 %v3038
    %3544 = vmatpush1.bf16.msra.mxu0 %v3037
    %3545 = vmatprep.subr.bf16.mxu0 %v3030
    %3546 = vmatpush1.bf16.msra.mxu0 %v3029
    %3547 = vmatprep.subr.bf16.mxu0 %v3022
    %3548 = vmatpush1.bf16.msra.mxu0 %v3021
    %3549 = vmatprep.subr.bf16.mxu0 %v3142
    %3550 = vmatpush2.bf16.msra.mxu0 %v3141
    %3551 = vmatprep.subr.bf16.mxu0 %v3134
    %3552 = vmatpush2.bf16.msra.mxu0 %v3133
    %3553 = vmatprep.subr.bf16.mxu0 %v3126
    %3554 = vmatpush2.bf16.msra.mxu0 %v3125
    %3555 = vmatprep.subr.bf16.mxu0 %v3118
    %3556 = vmatpush2.bf16.msra.mxu0 %v3117
    %3557 = vmatprep.subr.bf16.mxu0 %v3110
    %3558 = vmatpush2.bf16.msra.mxu0 %v3109
    %3559 = vmatprep.subr.bf16.mxu0 %v3102
    %3560 = vmatpush2.bf16.msra.mxu0 %v3101
    %3561 = vmatprep.subr.bf16.mxu0 %v3094
    %3562 = vmatpush2.bf16.msra.mxu0 %v3093
    %3563 = vmatprep.subr.bf16.mxu0 %v3086
    %3564 = vmatpush2.bf16.msra.mxu0 %v3085
    %3565 = vmatprep.mubr.bf16.mxu0 %v2246
    %3566 = vmatmul.mubr.bf16.gmra.mxu0 %v2245
    %v3567 = vpop.f32.mrf.mxu0
    %v3568 = vadd.f32 0.0, %v3567
    %v3569 = vpop.f32.mrf.mxu0
    %v3570 = vadd.f32 0.0, %v3569
    %v3571 = vpop.f32.mrf.mxu0
    %v3572 = vpop.f32.mrf.mxu0
    %3573 = vdwg.mxu0
    %3574 = vmatprep.subr.bf16.mxu0 %v3206
    %3575 = vmatpush1.bf16.msra.mxu0 %v3205
    %3576 = vmatprep.subr.bf16.mxu0 %v3198
    %3577 = vmatpush1.bf16.msra.mxu0 %v3197
    %3578 = vmatprep.subr.bf16.mxu0 %v3190
    %3579 = vmatpush1.bf16.msra.mxu0 %v3189
    %3580 = vmatprep.subr.bf16.mxu0 %v3182
    %3581 = vmatpush1.bf16.msra.mxu0 %v3181
    %3582 = vmatprep.subr.bf16.mxu0 %v3174
    %3583 = vmatpush1.bf16.msra.mxu0 %v3173
    %3584 = vmatprep.subr.bf16.mxu0 %v3166
    %3585 = vmatpush1.bf16.msra.mxu0 %v3165
    %3586 = vmatprep.subr.bf16.mxu0 %v3158
    %3587 = vmatpush1.bf16.msra.mxu0 %v3157
    %3588 = vmatprep.subr.bf16.mxu0 %v3150
    %3589 = vmatpush1.bf16.msra.mxu0 %v3149
    %3590 = vmatprep.subr.bf16.mxu0 %v3270
    %3591 = vmatpush2.bf16.msra.mxu0 %v3269
    %3592 = vmatprep.subr.bf16.mxu0 %v3262
    %3593 = vmatpush2.bf16.msra.mxu0 %v3261
    %3594 = vmatprep.subr.bf16.mxu0 %v3254
    %3595 = vmatpush2.bf16.msra.mxu0 %v3253
    %3596 = vmatprep.subr.bf16.mxu0 %v3246
    %3597 = vmatpush2.bf16.msra.mxu0 %v3245
    %3598 = vmatprep.subr.bf16.mxu0 %v3238
    %3599 = vmatpush2.bf16.msra.mxu0 %v3237
    %3600 = vmatprep.subr.bf16.mxu0 %v3230
    %3601 = vmatpush2.bf16.msra.mxu0 %v3229
    %3602 = vmatprep.subr.bf16.mxu0 %v3222
    %3603 = vmatpush2.bf16.msra.mxu0 %v3221
    %3604 = vmatprep.subr.bf16.mxu0 %v3214
    %3605 = vmatpush2.bf16.msra.mxu0 %v3213
    %3606 = vmatprep.mubr.bf16.mxu0 %v2248
    %3607 = vmatmul.mubr.bf16.gmra.mxu0 %v2247
    %v3608 = vpop.f32.mrf.mxu0
    %v3609 = vadd.f32 %v3568, %v3608
    %v3610 = vpop.f32.mrf.mxu0
    %v3611 = vadd.f32 %v3570, %v3610
    %v3612 = vpop.f32.mrf.mxu0
    %v3613 = vpop.f32.mrf.mxu0
    %3614 = vdwg.mxu0
    %3615 = vmatprep.subr.bf16.mxu0 %v3080
    %3616 = vmatpush1.bf16.msra.mxu0 %v3079
    %3617 = vmatprep.subr.bf16.mxu0 %v3072
    %3618 = vmatpush1.bf16.msra.mxu0 %v3071
    %3619 = vmatprep.subr.bf16.mxu0 %v3064
    %3620 = vmatpush1.bf16.msra.mxu0 %v3063
    %3621 = vmatprep.subr.bf16.mxu0 %v3056
    %3622 = vmatpush1.bf16.msra.mxu0 %v3055
    %3623 = vmatprep.subr.bf16.mxu0 %v3048
    %3624 = vmatpush1.bf16.msra.mxu0 %v3047
    %3625 = vmatprep.subr.bf16.mxu0 %v3040
    %3626 = vmatpush1.bf16.msra.mxu0 %v3039
    %3627 = vmatprep.subr.bf16.mxu0 %v3032
    %3628 = vmatpush1.bf16.msra.mxu0 %v3031
    %3629 = vmatprep.subr.bf16.mxu0 %v3024
    %3630 = vmatpush1.bf16.msra.mxu0 %v3023
    %3631 = vmatprep.subr.bf16.mxu0 %v3144
    %3632 = vmatpush2.bf16.msra.mxu0 %v3143
    %3633 = vmatprep.subr.bf16.mxu0 %v3136
    %3634 = vmatpush2.bf16.msra.mxu0 %v3135
    %3635 = vmatprep.subr.bf16.mxu0 %v3128
    %3636 = vmatpush2.bf16.msra.mxu0 %v3127
    %3637 = vmatprep.subr.bf16.mxu0 %v3120
    %3638 = vmatpush2.bf16.msra.mxu0 %v3119
    %3639 = vmatprep.subr.bf16.mxu0 %v3112
    %3640 = vmatpush2.bf16.msra.mxu0 %v3111
    %3641 = vmatprep.subr.bf16.mxu0 %v3104
    %3642 = vmatpush2.bf16.msra.mxu0 %v3103
    %3643 = vmatprep.subr.bf16.mxu0 %v3096
    %3644 = vmatpush2.bf16.msra.mxu0 %v3095
    %3645 = vmatprep.subr.bf16.mxu0 %v3088
    %3646 = vmatpush2.bf16.msra.mxu0 %v3087
    %3647 = vmatprep.mubr.bf16.mxu0 %v2246
    %3648 = vmatmul.mubr.bf16.gmra.mxu0 %v2245
    %v3649 = vpop.f32.mrf.mxu0
    %v3650 = vadd.f32 0.0, %v3649
    %v3651 = vpop.f32.mrf.mxu0
    %v3652 = vadd.f32 0.0, %v3651
    %v3653 = vpop.f32.mrf.mxu0
    %v3654 = vpop.f32.mrf.mxu0
    %3655 = vdwg.mxu0
    %3656 = vmatprep.subr.bf16.mxu0 %v3208
    %3657 = vmatpush1.bf16.msra.mxu0 %v3207
    %3658 = vmatprep.subr.bf16.mxu0 %v3200
    %3659 = vmatpush1.bf16.msra.mxu0 %v3199
    %3660 = vmatprep.subr.bf16.mxu0 %v3192
    %3661 = vmatpush1.bf16.msra.mxu0 %v3191
    %3662 = vmatprep.subr.bf16.mxu0 %v3184
    %3663 = vmatpush1.bf16.msra.mxu0 %v3183
    %3664 = vmatprep.subr.bf16.mxu0 %v3176
    %3665 = vmatpush1.bf16.msra.mxu0 %v3175
    %3666 = vmatprep.subr.bf16.mxu0 %v3168
    %3667 = vmatpush1.bf16.msra.mxu0 %v3167
    %3668 = vmatprep.subr.bf16.mxu0 %v3160
    %3669 = vmatpush1.bf16.msra.mxu0 %v3159
    %3670 = vmatprep.subr.bf16.mxu0 %v3152
    %3671 = vmatpush1.bf16.msra.mxu0 %v3151
    %3672 = vmatprep.subr.bf16.mxu0 %v3272
    %3673 = vmatpush2.bf16.msra.mxu0 %v3271
    %3674 = vmatprep.subr.bf16.mxu0 %v3264
    %3675 = vmatpush2.bf16.msra.mxu0 %v3263
    %3676 = vmatprep.subr.bf16.mxu0 %v3256
    %3677 = vmatpush2.bf16.msra.mxu0 %v3255
    %3678 = vmatprep.subr.bf16.mxu0 %v3248
    %3679 = vmatpush2.bf16.msra.mxu0 %v3247
    %3680 = vmatprep.subr.bf16.mxu0 %v3240
    %3681 = vmatpush2.bf16.msra.mxu0 %v3239
    %3682 = vmatprep.subr.bf16.mxu0 %v3232
    %3683 = vmatpush2.bf16.msra.mxu0 %v3231
    %3684 = vmatprep.subr.bf16.mxu0 %v3224
    %3685 = vmatpush2.bf16.msra.mxu0 %v3223
    %3686 = vmatprep.subr.bf16.mxu0 %v3216
    %3687 = vmatpush2.bf16.msra.mxu0 %v3215
    %3688 = vmatprep.mubr.bf16.mxu0 %v2248
    %3689 = vmatmul.mubr.bf16.gmra.mxu0 %v2247
    %v3690 = vpop.f32.mrf.mxu0
    %v3691 = vadd.f32 %v3650, %v3690
    %v3692 = vpop.f32.mrf.mxu0
    %v3693 = vadd.f32 %v3652, %v3692
    %v3694 = vpop.f32.mrf.mxu0
    %v3695 = vpop.f32.mrf.mxu0
    %3696 = vdwg.mxu0
    %3697 = vmatprep.subr.bf16.mxu0 %v3082
    %3698 = vmatpush1.bf16.msra.mxu0 %v3081
    %3699 = vmatprep.subr.bf16.mxu0 %v3074
    %3700 = vmatpush1.bf16.msra.mxu0 %v3073
    %3701 = vmatprep.subr.bf16.mxu0 %v3066
    %3702 = vmatpush1.bf16.msra.mxu0 %v3065
    %3703 = vmatprep.subr.bf16.mxu0 %v3058
    %3704 = vmatpush1.bf16.msra.mxu0 %v3057
    %3705 = vmatprep.subr.bf16.mxu0 %v3050
    %3706 = vmatpush1.bf16.msra.mxu0 %v3049
    %3707 = vmatprep.subr.bf16.mxu0 %v3042
    %3708 = vmatpush1.bf16.msra.mxu0 %v3041
    %3709 = vmatprep.subr.bf16.mxu0 %v3034
    %3710 = vmatpush1.bf16.msra.mxu0 %v3033
    %3711 = vmatprep.subr.bf16.mxu0 %v3026
    %3712 = vmatpush1.bf16.msra.mxu0 %v3025
    %3713 = vmatprep.subr.bf16.mxu0 %v3146
    %3714 = vmatpush2.bf16.msra.mxu0 %v3145
    %3715 = vmatprep.subr.bf16.mxu0 %v3138
    %3716 = vmatpush2.bf16.msra.mxu0 %v3137
    %3717 = vmatprep.subr.bf16.mxu0 %v3130
    %3718 = vmatpush2.bf16.msra.mxu0 %v3129
    %3719 = vmatprep.subr.bf16.mxu0 %v3122
    %3720 = vmatpush2.bf16.msra.mxu0 %v3121
    %3721 = vmatprep.subr.bf16.mxu0 %v3114
    %3722 = vmatpush2.bf16.msra.mxu0 %v3113
    %3723 = vmatprep.subr.bf16.mxu0 %v3106
    %3724 = vmatpush2.bf16.msra.mxu0 %v3105
    %3725 = vmatprep.subr.bf16.mxu0 %v3098
    %3726 = vmatpush2.bf16.msra.mxu0 %v3097
    %3727 = vmatprep.subr.bf16.mxu0 %v3090
    %3728 = vmatpush2.bf16.msra.mxu0 %v3089
    %3729 = vmatprep.mubr.bf16.mxu0 %v2246
    %3730 = vmatmul.mubr.bf16.gmra.mxu0 %v2245
    %v3731 = vpop.f32.mrf.mxu0
    %v3732 = vadd.f32 0.0, %v3731
    %v3733 = vpop.f32.mrf.mxu0
    %v3734 = vadd.f32 0.0, %v3733
    %v3735 = vpop.f32.mrf.mxu0
    %v3736 = vpop.f32.mrf.mxu0
    %3737 = vdwg.mxu0
    %3738 = vmatprep.subr.bf16.mxu0 %v3210
    %3739 = vmatpush1.bf16.msra.mxu0 %v3209
    %3740 = vmatprep.subr.bf16.mxu0 %v3202
    %3741 = vmatpush1.bf16.msra.mxu0 %v3201
    %3742 = vmatprep.subr.bf16.mxu0 %v3194
    %3743 = vmatpush1.bf16.msra.mxu0 %v3193
    %3744 = vmatprep.subr.bf16.mxu0 %v3186
    %3745 = vmatpush1.bf16.msra.mxu0 %v3185
    %3746 = vmatprep.subr.bf16.mxu0 %v3178
    %3747 = vmatpush1.bf16.msra.mxu0 %v3177
    %3748 = vmatprep.subr.bf16.mxu0 %v3170
    %3749 = vmatpush1.bf16.msra.mxu0 %v3169
    %3750 = vmatprep.subr.bf16.mxu0 %v3162
    %3751 = vmatpush1.bf16.msra.mxu0 %v3161
    %3752 = vmatprep.subr.bf16.mxu0 %v3154
    %3753 = vmatpush1.bf16.msra.mxu0 %v3153
    %3754 = vmatprep.subr.bf16.mxu0 %v3274
    %3755 = vmatpush2.bf16.msra.mxu0 %v3273
    %3756 = vmatprep.subr.bf16.mxu0 %v3266
    %3757 = vmatpush2.bf16.msra.mxu0 %v3265
    %3758 = vmatprep.subr.bf16.mxu0 %v3258
    %3759 = vmatpush2.bf16.msra.mxu0 %v3257
    %3760 = vmatprep.subr.bf16.mxu0 %v3250
    %3761 = vmatpush2.bf16.msra.mxu0 %v3249
    %3762 = vmatprep.subr.bf16.mxu0 %v3242
    %3763 = vmatpush2.bf16.msra.mxu0 %v3241
    %3764 = vmatprep.subr.bf16.mxu0 %v3234
    %3765 = vmatpush2.bf16.msra.mxu0 %v3233
    %3766 = vmatprep.subr.bf16.mxu0 %v3226
    %3767 = vmatpush2.bf16.msra.mxu0 %v3225
    %3768 = vmatprep.subr.bf16.mxu0 %v3218
    %3769 = vmatpush2.bf16.msra.mxu0 %v3217
    %3770 = vmatprep.mubr.bf16.mxu0 %v2248
    %3771 = vmatmul.mubr.bf16.gmra.mxu0 %v2247
    %v3772 = vpop.f32.mrf.mxu0
    %v3773 = vadd.f32 %v3732, %v3772
    %v3774 = vpop.f32.mrf.mxu0
    %v3775 = vadd.f32 %v3734, %v3774
    %v3776 = vpop.f32.mrf.mxu0
    %v3777 = vpop.f32.mrf.mxu0
    %3778 = vdwg.mxu0
    %3779 = vmatprep.subr.bf16.mxu0 %v3084
    %3780 = vmatpush1.bf16.msra.mxu0 %v3083
    %3781 = vmatprep.subr.bf16.mxu0 %v3076
    %3782 = vmatpush1.bf16.msra.mxu0 %v3075
    %3783 = vmatprep.subr.bf16.mxu0 %v3068
    %3784 = vmatpush1.bf16.msra.mxu0 %v3067
    %3785 = vmatprep.subr.bf16.mxu0 %v3060
    %3786 = vmatpush1.bf16.msra.mxu0 %v3059
    %3787 = vmatprep.subr.bf16.mxu0 %v3052
    %3788 = vmatpush1.bf16.msra.mxu0 %v3051
    %3789 = vmatprep.subr.bf16.mxu0 %v3044
    %3790 = vmatpush1.bf16.msra.mxu0 %v3043
    %3791 = vmatprep.subr.bf16.mxu0 %v3036
    %3792 = vmatpush1.bf16.msra.mxu0 %v3035
    %3793 = vmatprep.subr.bf16.mxu0 %v3028
    %3794 = vmatpush1.bf16.msra.mxu0 %v3027
    %3795 = vmatprep.subr.bf16.mxu0 %v3148
    %3796 = vmatpush2.bf16.msra.mxu0 %v3147
    %3797 = vmatprep.subr.bf16.mxu0 %v3140
    %3798 = vmatpush2.bf16.msra.mxu0 %v3139
    %3799 = vmatprep.subr.bf16.mxu0 %v3132
    %3800 = vmatpush2.bf16.msra.mxu0 %v3131
    %3801 = vmatprep.subr.bf16.mxu0 %v3124
    %3802 = vmatpush2.bf16.msra.mxu0 %v3123
    %3803 = vmatprep.subr.bf16.mxu0 %v3116
    %3804 = vmatpush2.bf16.msra.mxu0 %v3115
    %3805 = vmatprep.subr.bf16.mxu0 %v3108
    %3806 = vmatpush2.bf16.msra.mxu0 %v3107
    %3807 = vmatprep.subr.bf16.mxu0 %v3100
    %3808 = vmatpush2.bf16.msra.mxu0 %v3099
    %3809 = vmatprep.subr.bf16.mxu0 %v3092
    %3810 = vmatpush2.bf16.msra.mxu0 %v3091
    %3811 = vmatprep.mubr.bf16.mxu0 %v2246
    %3812 = vmatmul.mubr.bf16.gmra.mxu0 %v2245
    %v3813 = vpop.f32.mrf.mxu0
    %v3814 = vadd.f32 0.0, %v3813
    %v3815 = vpop.f32.mrf.mxu0
    %v3816 = vadd.f32 0.0, %v3815
    %v3817 = vpop.f32.mrf.mxu0
    %v3818 = vpop.f32.mrf.mxu0
    %3819 = vdwg.mxu0
    %3820 = vmatprep.subr.bf16.mxu0 %v3212
    %3821 = vmatpush1.bf16.msra.mxu0 %v3211
    %3822 = vmatprep.subr.bf16.mxu0 %v3204
    %3823 = vmatpush1.bf16.msra.mxu0 %v3203
    %3824 = vmatprep.subr.bf16.mxu0 %v3196
    %3825 = vmatpush1.bf16.msra.mxu0 %v3195
    %3826 = vmatprep.subr.bf16.mxu0 %v3188
    %3827 = vmatpush1.bf16.msra.mxu0 %v3187
    %3828 = vmatprep.subr.bf16.mxu0 %v3180
    %3829 = vmatpush1.bf16.msra.mxu0 %v3179
    %3830 = vmatprep.subr.bf16.mxu0 %v3172
    %3831 = vmatpush1.bf16.msra.mxu0 %v3171
    %3832 = vmatprep.subr.bf16.mxu0 %v3164
    %3833 = vmatpush1.bf16.msra.mxu0 %v3163
    %3834 = vmatprep.subr.bf16.mxu0 %v3156
    %3835 = vmatpush1.bf16.msra.mxu0 %v3155
    %3836 = vmatprep.subr.bf16.mxu0 %v3276
    %3837 = vmatpush2.bf16.msra.mxu0 %v3275
    %3838 = vmatprep.subr.bf16.mxu0 %v3268
    %3839 = vmatpush2.bf16.msra.mxu0 %v3267
    %3840 = vmatprep.subr.bf16.mxu0 %v3260
    %3841 = vmatpush2.bf16.msra.mxu0 %v3259
    %3842 = vmatprep.subr.bf16.mxu0 %v3252
    %3843 = vmatpush2.bf16.msra.mxu0 %v3251
    %3844 = vmatprep.subr.bf16.mxu0 %v3244
    %3845 = vmatpush2.bf16.msra.mxu0 %v3243
    %3846 = vmatprep.subr.bf16.mxu0 %v3236
    %3847 = vmatpush2.bf16.msra.mxu0 %v3235
    %3848 = vmatprep.subr.bf16.mxu0 %v3228
    %3849 = vmatpush2.bf16.msra.mxu0 %v3227
    %3850 = vmatprep.subr.bf16.mxu0 %v3220
    %3851 = vmatpush2.bf16.msra.mxu0 %v3219
    %3852 = vmatprep.mubr.bf16.mxu0 %v2248
    %3853 = vmatmul.mubr.bf16.gmra.mxu0 %v2247
    %v3854 = vpop.f32.mrf.mxu0
    %v3855 = vadd.f32 %v3814, %v3854
    %v3856 = vpop.f32.mrf.mxu0
    %v3857 = vadd.f32 %v3816, %v3856
    %v3858 = vpop.f32.mrf.mxu0
    %v3859 = vpop.f32.mrf.mxu0
    %3860 = vdwg.mxu0
    %v3861 = vxor.u32 %v3609, 2147483648
    %v3862 = vxor.u32 %v3611, 2147483648
    %v3863 = vxor.u32 %v3691, 2147483648
    %v3864 = vxor.u32 %v3693, 2147483648
    %v3865 = vxor.u32 %v3773, 2147483648
    %v3866 = vxor.u32 %v3775, 2147483648
    %v3867 = vxor.u32 %v3855, 2147483648
    %v3868 = vxor.u32 %v3857, 2147483648
    %v3869 = vmul.f32 %v3861, 1.442695
    %v3870 = vpow.pop %v3869
    %v3871 = vmul.f32 %v3862, 1.442695
    %v3872 = vpow.pop %v3871
    %v3873 = vmul.f32 %v3863, 1.442695
    %v3874 = vpow.pop %v3873
    %v3875 = vmul.f32 %v3864, 1.442695
    %v3876 = vpow.pop %v3875
    %v3877 = vmul.f32 %v3865, 1.442695
    %v3878 = vpow.pop %v3877
    %v3879 = vmul.f32 %v3866, 1.442695
    %v3880 = vpow.pop %v3879
    %v3881 = vmul.f32 %v3867, 1.442695
    %v3882 = vpow.pop %v3881
    %v3883 = vmul.f32 %v3868, 1.442695
    %v3884 = vpow.pop %v3883
    %v3885 = vadd.f32 %v3870, 1.0
    %v3886 = vadd.f32 %v3872, 1.0
    %v3887 = vadd.f32 %v3874, 1.0
    %v3888 = vadd.f32 %v3876, 1.0
    %v3889 = vadd.f32 %v3878, 1.0
    %v3890 = vadd.f32 %v3880, 1.0
    %v3891 = vadd.f32 %v3882, 1.0
    %v3892 = vadd.f32 %v3884, 1.0
    %v3893 = vrcp.pop %v3885
    %v3894 = vmul.f32 1.0, %v3893
    %v3895 = vrcp.pop %v3886
    %v3896 = vmul.f32 1.0, %v3895
    %v3897 = vrcp.pop %v3887
    %v3898 = vmul.f32 1.0, %v3897
    %v3899 = vrcp.pop %v3888
    %v3900 = vmul.f32 1.0, %v3899
    %v3901 = vrcp.pop %v3889
    %v3902 = vmul.f32 1.0, %v3901
    %v3903 = vrcp.pop %v3890
    %v3904 = vmul.f32 1.0, %v3903
    %v3905 = vrcp.pop %v3891
    %v3906 = vmul.f32 1.0, %v3905
    %v3907 = vrcp.pop %v3892
    %v3908 = vmul.f32 1.0, %v3907
    %v3909 = vmul.f32 %v3609, %v3894
    %v3910 = vmul.f32 %v3611, %v3896
    %v3911 = vmul.f32 %v3691, %v3898
    %v3912 = vmul.f32 %v3693, %v3900
    %v3913 = vmul.f32 %v3773, %v3902
    %v3914 = vmul.f32 %v3775, %v3904
    %v3915 = vmul.f32 %v3855, %v3906
    %v3916 = vmul.f32 %v3857, %v3908
    %v3917 = vpack.c.bf16 %v3909, %v3909
    %v3918 = vpack.c.bf16 %v3910, %v3910
    %v3919 = vpack.c.bf16 %v3911, %v3911
    %v3920 = vpack.c.bf16 %v3912, %v3912
    %v3921 = vpack.c.bf16 %v3913, %v3913
    %v3922 = vpack.c.bf16 %v3914, %v3914
    %v3923 = vpack.c.bf16 %v3915, %v3915
    %v3924 = vpack.c.bf16 %v3916, %v3916
    %v3925 = vld [vmem:[#allocation10] sm:$0xff]
    %v3926 = vld [vmem:[#allocation10 + $0x8] sm:$0xff]
    %v3927 = vld [vmem:[#allocation10 + $0x10] sm:$0xff]
    %v3928 = vld [vmem:[#allocation10 + $0x18] sm:$0xff]
    %v3929 = vld [vmem:[#allocation10 + $0x20] sm:$0xff]
    %v3930 = vld [vmem:[#allocation10 + $0x28] sm:$0xff]
    %v3931 = vld [vmem:[#allocation10 + $0x30] sm:$0xff]
    %v3932 = vld [vmem:[#allocation10 + $0x38] sm:$0xff]
    %v3933 = vld [vmem:[#allocation10 + $0x40] sm:$0xff]
    %v3934 = vld [vmem:[#allocation10 + $0x48] sm:$0xff]
    %v3935 = vld [vmem:[#allocation10 + $0x50] sm:$0xff]
    %v3936 = vld [vmem:[#allocation10 + $0x58] sm:$0xff]
    %v3937 = vld [vmem:[#allocation10 + $0x60] sm:$0xff]
    %v3938 = vld [vmem:[#allocation10 + $0x68] sm:$0xff]
    %v3939 = vld [vmem:[#allocation10 + $0x70] sm:$0xff]
    %v3940 = vld [vmem:[#allocation10 + $0x78] sm:$0xff]
    %v3941 = vld [vmem:[#allocation10 + $0x80] sm:$0xff]
    %v3942 = vld [vmem:[#allocation10 + $0x88] sm:$0xff]
    %v3943 = vld [vmem:[#allocation10 + $0x90] sm:$0xff]
    %v3944 = vld [vmem:[#allocation10 + $0x98] sm:$0xff]
    %v3945 = vld [vmem:[#allocation10 + $0xa0] sm:$0xff]
    %v3946 = vld [vmem:[#allocation10 + $0xa8] sm:$0xff]
    %v3947 = vld [vmem:[#allocation10 + $0xb0] sm:$0xff]
    %v3948 = vld [vmem:[#allocation10 + $0xb8] sm:$0xff]
    %v3949 = vld [vmem:[#allocation10 + $0xc0] sm:$0xff]
    %v3950 = vld [vmem:[#allocation10 + $0xc8] sm:$0xff]
    %v3951 = vld [vmem:[#allocation10 + $0xd0] sm:$0xff]
    %v3952 = vld [vmem:[#allocation10 + $0xd8] sm:$0xff]
    %v3953 = vld [vmem:[#allocation10 + $0xe0] sm:$0xff]
    %v3954 = vld [vmem:[#allocation10 + $0xe8] sm:$0xff]
    %v3955 = vld [vmem:[#allocation10 + $0xf0] sm:$0xff]
    %v3956 = vld [vmem:[#allocation10 + $0xf8] sm:$0xff]
    %v3957 = vld [vmem:[#allocation10 + $0x100] sm:$0xff]
    %v3958 = vld [vmem:[#allocation10 + $0x108] sm:$0xff]
    %v3959 = vld [vmem:[#allocation10 + $0x110] sm:$0xff]
    %v3960 = vld [vmem:[#allocation10 + $0x118] sm:$0xff]
    %v3961 = vld [vmem:[#allocation10 + $0x120] sm:$0xff]
    %v3962 = vld [vmem:[#allocation10 + $0x128] sm:$0xff]
    %v3963 = vld [vmem:[#allocation10 + $0x130] sm:$0xff]
    %v3964 = vld [vmem:[#allocation10 + $0x138] sm:$0xff]
    %v3965 = vld [vmem:[#allocation10 + $0x140] sm:$0xff]
    %v3966 = vld [vmem:[#allocation10 + $0x148] sm:$0xff]
    %v3967 = vld [vmem:[#allocation10 + $0x150] sm:$0xff]
    %v3968 = vld [vmem:[#allocation10 + $0x158] sm:$0xff]
    %v3969 = vld [vmem:[#allocation10 + $0x160] sm:$0xff]
    %v3970 = vld [vmem:[#allocation10 + $0x168] sm:$0xff]
    %v3971 = vld [vmem:[#allocation10 + $0x170] sm:$0xff]
    %v3972 = vld [vmem:[#allocation10 + $0x178] sm:$0xff]
    %v3973 = vld [vmem:[#allocation10 + $0x180] sm:$0xff]
    %v3974 = vld [vmem:[#allocation10 + $0x188] sm:$0xff]
    %v3975 = vld [vmem:[#allocation10 + $0x190] sm:$0xff]
    %v3976 = vld [vmem:[#allocation10 + $0x198] sm:$0xff]
    %v3977 = vld [vmem:[#allocation10 + $0x1a0] sm:$0xff]
    %v3978 = vld [vmem:[#allocation10 + $0x1a8] sm:$0xff]
    %v3979 = vld [vmem:[#allocation10 + $0x1b0] sm:$0xff]
    %v3980 = vld [vmem:[#allocation10 + $0x1b8] sm:$0xff]
    %v3981 = vld [vmem:[#allocation10 + $0x1c0] sm:$0xff]
    %v3982 = vld [vmem:[#allocation10 + $0x1c8] sm:$0xff]
    %v3983 = vld [vmem:[#allocation10 + $0x1d0] sm:$0xff]
    %v3984 = vld [vmem:[#allocation10 + $0x1d8] sm:$0xff]
    %v3985 = vld [vmem:[#allocation10 + $0x1e0] sm:$0xff]
    %v3986 = vld [vmem:[#allocation10 + $0x1e8] sm:$0xff]
    %v3987 = vld [vmem:[#allocation10 + $0x1f0] sm:$0xff]
    %v3988 = vld [vmem:[#allocation10 + $0x1f8] sm:$0xff]
    %v3989 = vld [vmem:[#allocation10 + $0x200] sm:$0xff]
    %v3990 = vld [vmem:[#allocation10 + $0x208] sm:$0xff]
    %v3991 = vld [vmem:[#allocation10 + $0x210] sm:$0xff]
    %v3992 = vld [vmem:[#allocation10 + $0x218] sm:$0xff]
    %v3993 = vld [vmem:[#allocation10 + $0x220] sm:$0xff]
    %v3994 = vld [vmem:[#allocation10 + $0x228] sm:$0xff]
    %v3995 = vld [vmem:[#allocation10 + $0x230] sm:$0xff]
    %v3996 = vld [vmem:[#allocation10 + $0x238] sm:$0xff]
    %v3997 = vld [vmem:[#allocation10 + $0x240] sm:$0xff]
    %v3998 = vld [vmem:[#allocation10 + $0x248] sm:$0xff]
    %v3999 = vld [vmem:[#allocation10 + $0x250] sm:$0xff]
    %v4000 = vld [vmem:[#allocation10 + $0x258] sm:$0xff]
    %v4001 = vld [vmem:[#allocation10 + $0x260] sm:$0xff]
    %v4002 = vld [vmem:[#allocation10 + $0x268] sm:$0xff]
    %v4003 = vld [vmem:[#allocation10 + $0x270] sm:$0xff]
    %v4004 = vld [vmem:[#allocation10 + $0x278] sm:$0xff]
    %v4005 = vld [vmem:[#allocation10 + $0x280] sm:$0xff]
    %v4006 = vld [vmem:[#allocation10 + $0x288] sm:$0xff]
    %v4007 = vld [vmem:[#allocation10 + $0x290] sm:$0xff]
    %v4008 = vld [vmem:[#allocation10 + $0x298] sm:$0xff]
    %v4009 = vld [vmem:[#allocation10 + $0x2a0] sm:$0xff]
    %v4010 = vld [vmem:[#allocation10 + $0x2a8] sm:$0xff]
    %v4011 = vld [vmem:[#allocation10 + $0x2b0] sm:$0xff]
    %v4012 = vld [vmem:[#allocation10 + $0x2b8] sm:$0xff]
    %v4013 = vld [vmem:[#allocation10 + $0x2c0] sm:$0xff]
    %v4014 = vld [vmem:[#allocation10 + $0x2c8] sm:$0xff]
    %v4015 = vld [vmem:[#allocation10 + $0x2d0] sm:$0xff]
    %v4016 = vld [vmem:[#allocation10 + $0x2d8] sm:$0xff]
    %v4017 = vld [vmem:[#allocation10 + $0x2e0] sm:$0xff]
    %v4018 = vld [vmem:[#allocation10 + $0x2e8] sm:$0xff]
    %v4019 = vld [vmem:[#allocation10 + $0x2f0] sm:$0xff]
    %v4020 = vld [vmem:[#allocation10 + $0x2f8] sm:$0xff]
    %v4021 = vld [vmem:[#allocation10 + $0x300] sm:$0xff]
    %v4022 = vld [vmem:[#allocation10 + $0x308] sm:$0xff]
    %v4023 = vld [vmem:[#allocation10 + $0x310] sm:$0xff]
    %v4024 = vld [vmem:[#allocation10 + $0x318] sm:$0xff]
    %v4025 = vld [vmem:[#allocation10 + $0x320] sm:$0xff]
    %v4026 = vld [vmem:[#allocation10 + $0x328] sm:$0xff]
    %v4027 = vld [vmem:[#allocation10 + $0x330] sm:$0xff]
    %v4028 = vld [vmem:[#allocation10 + $0x338] sm:$0xff]
    %v4029 = vld [vmem:[#allocation10 + $0x340] sm:$0xff]
    %v4030 = vld [vmem:[#allocation10 + $0x348] sm:$0xff]
    %v4031 = vld [vmem:[#allocation10 + $0x350] sm:$0xff]
    %v4032 = vld [vmem:[#allocation10 + $0x358] sm:$0xff]
    %v4033 = vld [vmem:[#allocation10 + $0x360] sm:$0xff]
    %v4034 = vld [vmem:[#allocation10 + $0x368] sm:$0xff]
    %v4035 = vld [vmem:[#allocation10 + $0x370] sm:$0xff]
    %v4036 = vld [vmem:[#allocation10 + $0x378] sm:$0xff]
    %v4037 = vld [vmem:[#allocation10 + $0x380] sm:$0xff]
    %v4038 = vld [vmem:[#allocation10 + $0x388] sm:$0xff]
    %v4039 = vld [vmem:[#allocation10 + $0x390] sm:$0xff]
    %v4040 = vld [vmem:[#allocation10 + $0x398] sm:$0xff]
    %v4041 = vld [vmem:[#allocation10 + $0x3a0] sm:$0xff]
    %v4042 = vld [vmem:[#allocation10 + $0x3a8] sm:$0xff]
    %v4043 = vld [vmem:[#allocation10 + $0x3b0] sm:$0xff]
    %v4044 = vld [vmem:[#allocation10 + $0x3b8] sm:$0xff]
    %v4045 = vld [vmem:[#allocation10 + $0x3c0] sm:$0xff]
    %v4046 = vld [vmem:[#allocation10 + $0x3c8] sm:$0xff]
    %v4047 = vld [vmem:[#allocation10 + $0x3d0] sm:$0xff]
    %v4048 = vld [vmem:[#allocation10 + $0x3d8] sm:$0xff]
    %v4049 = vld [vmem:[#allocation10 + $0x3e0] sm:$0xff]
    %v4050 = vld [vmem:[#allocation10 + $0x3e8] sm:$0xff]
    %v4051 = vld [vmem:[#allocation10 + $0x3f0] sm:$0xff]
    %v4052 = vld [vmem:[#allocation10 + $0x3f8] sm:$0xff]
    %v4053 = vld [vmem:[#allocation10 + $0x400] sm:$0xff]
    %v4054 = vld [vmem:[#allocation10 + $0x408] sm:$0xff]
    %v4055 = vld [vmem:[#allocation10 + $0x410] sm:$0xff]
    %v4056 = vld [vmem:[#allocation10 + $0x418] sm:$0xff]
    %v4057 = vld [vmem:[#allocation10 + $0x420] sm:$0xff]
    %v4058 = vld [vmem:[#allocation10 + $0x428] sm:$0xff]
    %v4059 = vld [vmem:[#allocation10 + $0x430] sm:$0xff]
    %v4060 = vld [vmem:[#allocation10 + $0x438] sm:$0xff]
    %v4061 = vld [vmem:[#allocation10 + $0x440] sm:$0xff]
    %v4062 = vld [vmem:[#allocation10 + $0x448] sm:$0xff]
    %v4063 = vld [vmem:[#allocation10 + $0x450] sm:$0xff]
    %v4064 = vld [vmem:[#allocation10 + $0x458] sm:$0xff]
    %v4065 = vld [vmem:[#allocation10 + $0x460] sm:$0xff]
    %v4066 = vld [vmem:[#allocation10 + $0x468] sm:$0xff]
    %v4067 = vld [vmem:[#allocation10 + $0x470] sm:$0xff]
    %v4068 = vld [vmem:[#allocation10 + $0x478] sm:$0xff]
    %v4069 = vld [vmem:[#allocation10 + $0x480] sm:$0xff]
    %v4070 = vld [vmem:[#allocation10 + $0x488] sm:$0xff]
    %v4071 = vld [vmem:[#allocation10 + $0x490] sm:$0xff]
    %v4072 = vld [vmem:[#allocation10 + $0x498] sm:$0xff]
    %v4073 = vld [vmem:[#allocation10 + $0x4a0] sm:$0xff]
    %v4074 = vld [vmem:[#allocation10 + $0x4a8] sm:$0xff]
    %v4075 = vld [vmem:[#allocation10 + $0x4b0] sm:$0xff]
    %v4076 = vld [vmem:[#allocation10 + $0x4b8] sm:$0xff]
    %v4077 = vld [vmem:[#allocation10 + $0x4c0] sm:$0xff]
    %v4078 = vld [vmem:[#allocation10 + $0x4c8] sm:$0xff]
    %v4079 = vld [vmem:[#allocation10 + $0x4d0] sm:$0xff]
    %v4080 = vld [vmem:[#allocation10 + $0x4d8] sm:$0xff]
    %v4081 = vld [vmem:[#allocation10 + $0x4e0] sm:$0xff]
    %v4082 = vld [vmem:[#allocation10 + $0x4e8] sm:$0xff]
    %v4083 = vld [vmem:[#allocation10 + $0x4f0] sm:$0xff]
    %v4084 = vld [vmem:[#allocation10 + $0x4f8] sm:$0xff]
    %v4085 = vld [vmem:[#allocation10 + $0x500] sm:$0xff]
    %v4086 = vld [vmem:[#allocation10 + $0x508] sm:$0xff]
    %v4087 = vld [vmem:[#allocation10 + $0x510] sm:$0xff]
    %v4088 = vld [vmem:[#allocation10 + $0x518] sm:$0xff]
    %v4089 = vld [vmem:[#allocation10 + $0x520] sm:$0xff]
    %v4090 = vld [vmem:[#allocation10 + $0x528] sm:$0xff]
    %v4091 = vld [vmem:[#allocation10 + $0x530] sm:$0xff]
    %v4092 = vld [vmem:[#allocation10 + $0x538] sm:$0xff]
    %v4093 = vld [vmem:[#allocation10 + $0x540] sm:$0xff]
    %v4094 = vld [vmem:[#allocation10 + $0x548] sm:$0xff]
    %v4095 = vld [vmem:[#allocation10 + $0x550] sm:$0xff]
    %v4096 = vld [vmem:[#allocation10 + $0x558] sm:$0xff]
    %v4097 = vld [vmem:[#allocation10 + $0x560] sm:$0xff]
    %v4098 = vld [vmem:[#allocation10 + $0x568] sm:$0xff]
    %v4099 = vld [vmem:[#allocation10 + $0x570] sm:$0xff]
    %v4100 = vld [vmem:[#allocation10 + $0x578] sm:$0xff]
    %v4101 = vld [vmem:[#allocation10 + $0x580] sm:$0xff]
    %v4102 = vld [vmem:[#allocation10 + $0x588] sm:$0xff]
    %v4103 = vld [vmem:[#allocation10 + $0x590] sm:$0xff]
    %v4104 = vld [vmem:[#allocation10 + $0x598] sm:$0xff]
    %v4105 = vld [vmem:[#allocation10 + $0x5a0] sm:$0xff]
    %v4106 = vld [vmem:[#allocation10 + $0x5a8] sm:$0xff]
    %v4107 = vld [vmem:[#allocation10 + $0x5b0] sm:$0xff]
    %v4108 = vld [vmem:[#allocation10 + $0x5b8] sm:$0xff]
    %v4109 = vld [vmem:[#allocation10 + $0x5c0] sm:$0xff]
    %v4110 = vld [vmem:[#allocation10 + $0x5c8] sm:$0xff]
    %v4111 = vld [vmem:[#allocation10 + $0x5d0] sm:$0xff]
    %v4112 = vld [vmem:[#allocation10 + $0x5d8] sm:$0xff]
    %v4113 = vld [vmem:[#allocation10 + $0x5e0] sm:$0xff]
    %v4114 = vld [vmem:[#allocation10 + $0x5e8] sm:$0xff]
    %v4115 = vld [vmem:[#allocation10 + $0x5f0] sm:$0xff]
    %v4116 = vld [vmem:[#allocation10 + $0x5f8] sm:$0xff]
    %v4117 = vld [vmem:[#allocation10 + $0x600] sm:$0xff]
    %v4118 = vld [vmem:[#allocation10 + $0x608] sm:$0xff]
    %v4119 = vld [vmem:[#allocation10 + $0x610] sm:$0xff]
    %v4120 = vld [vmem:[#allocation10 + $0x618] sm:$0xff]
    %v4121 = vld [vmem:[#allocation10 + $0x620] sm:$0xff]
    %v4122 = vld [vmem:[#allocation10 + $0x628] sm:$0xff]
    %v4123 = vld [vmem:[#allocation10 + $0x630] sm:$0xff]
    %v4124 = vld [vmem:[#allocation10 + $0x638] sm:$0xff]
    %v4125 = vld [vmem:[#allocation10 + $0x640] sm:$0xff]
    %v4126 = vld [vmem:[#allocation10 + $0x648] sm:$0xff]
    %v4127 = vld [vmem:[#allocation10 + $0x650] sm:$0xff]
    %v4128 = vld [vmem:[#allocation10 + $0x658] sm:$0xff]
    %v4129 = vld [vmem:[#allocation10 + $0x660] sm:$0xff]
    %v4130 = vld [vmem:[#allocation10 + $0x668] sm:$0xff]
    %v4131 = vld [vmem:[#allocation10 + $0x670] sm:$0xff]
    %v4132 = vld [vmem:[#allocation10 + $0x678] sm:$0xff]
    %v4133 = vld [vmem:[#allocation10 + $0x680] sm:$0xff]
    %v4134 = vld [vmem:[#allocation10 + $0x688] sm:$0xff]
    %v4135 = vld [vmem:[#allocation10 + $0x690] sm:$0xff]
    %v4136 = vld [vmem:[#allocation10 + $0x698] sm:$0xff]
    %v4137 = vld [vmem:[#allocation10 + $0x6a0] sm:$0xff]
    %v4138 = vld [vmem:[#allocation10 + $0x6a8] sm:$0xff]
    %v4139 = vld [vmem:[#allocation10 + $0x6b0] sm:$0xff]
    %v4140 = vld [vmem:[#allocation10 + $0x6b8] sm:$0xff]
    %v4141 = vld [vmem:[#allocation10 + $0x6c0] sm:$0xff]
    %v4142 = vld [vmem:[#allocation10 + $0x6c8] sm:$0xff]
    %v4143 = vld [vmem:[#allocation10 + $0x6d0] sm:$0xff]
    %v4144 = vld [vmem:[#allocation10 + $0x6d8] sm:$0xff]
    %v4145 = vld [vmem:[#allocation10 + $0x6e0] sm:$0xff]
    %v4146 = vld [vmem:[#allocation10 + $0x6e8] sm:$0xff]
    %v4147 = vld [vmem:[#allocation10 + $0x6f0] sm:$0xff]
    %v4148 = vld [vmem:[#allocation10 + $0x6f8] sm:$0xff]
    %v4149 = vld [vmem:[#allocation10 + $0x700] sm:$0xff]
    %v4150 = vld [vmem:[#allocation10 + $0x708] sm:$0xff]
    %v4151 = vld [vmem:[#allocation10 + $0x710] sm:$0xff]
    %v4152 = vld [vmem:[#allocation10 + $0x718] sm:$0xff]
    %v4153 = vld [vmem:[#allocation10 + $0x720] sm:$0xff]
    %v4154 = vld [vmem:[#allocation10 + $0x728] sm:$0xff]
    %v4155 = vld [vmem:[#allocation10 + $0x730] sm:$0xff]
    %v4156 = vld [vmem:[#allocation10 + $0x738] sm:$0xff]
    %v4157 = vld [vmem:[#allocation10 + $0x740] sm:$0xff]
    %v4158 = vld [vmem:[#allocation10 + $0x748] sm:$0xff]
    %v4159 = vld [vmem:[#allocation10 + $0x750] sm:$0xff]
    %v4160 = vld [vmem:[#allocation10 + $0x758] sm:$0xff]
    %v4161 = vld [vmem:[#allocation10 + $0x760] sm:$0xff]
    %v4162 = vld [vmem:[#allocation10 + $0x768] sm:$0xff]
    %v4163 = vld [vmem:[#allocation10 + $0x770] sm:$0xff]
    %v4164 = vld [vmem:[#allocation10 + $0x778] sm:$0xff]
    %v4165 = vld [vmem:[#allocation10 + $0x780] sm:$0xff]
    %v4166 = vld [vmem:[#allocation10 + $0x788] sm:$0xff]
    %v4167 = vld [vmem:[#allocation10 + $0x790] sm:$0xff]
    %v4168 = vld [vmem:[#allocation10 + $0x798] sm:$0xff]
    %v4169 = vld [vmem:[#allocation10 + $0x7a0] sm:$0xff]
    %v4170 = vld [vmem:[#allocation10 + $0x7a8] sm:$0xff]
    %v4171 = vld [vmem:[#allocation10 + $0x7b0] sm:$0xff]
    %v4172 = vld [vmem:[#allocation10 + $0x7b8] sm:$0xff]
    %v4173 = vld [vmem:[#allocation10 + $0x7c0] sm:$0xff]
    %v4174 = vld [vmem:[#allocation10 + $0x7c8] sm:$0xff]
    %v4175 = vld [vmem:[#allocation10 + $0x7d0] sm:$0xff]
    %v4176 = vld [vmem:[#allocation10 + $0x7d8] sm:$0xff]
    %v4177 = vld [vmem:[#allocation10 + $0x7e0] sm:$0xff]
    %v4178 = vld [vmem:[#allocation10 + $0x7e8] sm:$0xff]
    %v4179 = vld [vmem:[#allocation10 + $0x7f0] sm:$0xff]
    %v4180 = vld [vmem:[#allocation10 + $0x7f8] sm:$0xff]
    %v4181 = vld [vmem:[#allocation10 + $0x800] sm:$0xff]
    %v4182 = vld [vmem:[#allocation10 + $0x808] sm:$0xff]
    %v4183 = vld [vmem:[#allocation10 + $0x810] sm:$0xff]
    %v4184 = vld [vmem:[#allocation10 + $0x818] sm:$0xff]
    %v4185 = vld [vmem:[#allocation10 + $0x820] sm:$0xff]
    %v4186 = vld [vmem:[#allocation10 + $0x828] sm:$0xff]
    %v4187 = vld [vmem:[#allocation10 + $0x830] sm:$0xff]
    %v4188 = vld [vmem:[#allocation10 + $0x838] sm:$0xff]
    %v4189 = vld [vmem:[#allocation10 + $0x840] sm:$0xff]
    %v4190 = vld [vmem:[#allocation10 + $0x848] sm:$0xff]
    %v4191 = vld [vmem:[#allocation10 + $0x850] sm:$0xff]
    %v4192 = vld [vmem:[#allocation10 + $0x858] sm:$0xff]
    %v4193 = vld [vmem:[#allocation10 + $0x860] sm:$0xff]
    %v4194 = vld [vmem:[#allocation10 + $0x868] sm:$0xff]
    %v4195 = vld [vmem:[#allocation10 + $0x870] sm:$0xff]
    %v4196 = vld [vmem:[#allocation10 + $0x878] sm:$0xff]
    %v4197 = vld [vmem:[#allocation10 + $0x880] sm:$0xff]
    %v4198 = vld [vmem:[#allocation10 + $0x888] sm:$0xff]
    %v4199 = vld [vmem:[#allocation10 + $0x890] sm:$0xff]
    %v4200 = vld [vmem:[#allocation10 + $0x898] sm:$0xff]
    %v4201 = vld [vmem:[#allocation10 + $0x8a0] sm:$0xff]
    %v4202 = vld [vmem:[#allocation10 + $0x8a8] sm:$0xff]
    %v4203 = vld [vmem:[#allocation10 + $0x8b0] sm:$0xff]
    %v4204 = vld [vmem:[#allocation10 + $0x8b8] sm:$0xff]
    %v4205 = vld [vmem:[#allocation10 + $0x8c0] sm:$0xff]
    %v4206 = vld [vmem:[#allocation10 + $0x8c8] sm:$0xff]
    %v4207 = vld [vmem:[#allocation10 + $0x8d0] sm:$0xff]
    %v4208 = vld [vmem:[#allocation10 + $0x8d8] sm:$0xff]
    %v4209 = vld [vmem:[#allocation10 + $0x8e0] sm:$0xff]
    %v4210 = vld [vmem:[#allocation10 + $0x8e8] sm:$0xff]
    %v4211 = vld [vmem:[#allocation10 + $0x8f0] sm:$0xff]
    %v4212 = vld [vmem:[#allocation10 + $0x8f8] sm:$0xff]
    %v4213 = vld [vmem:[#allocation10 + $0x900] sm:$0xff]
    %v4214 = vld [vmem:[#allocation10 + $0x908] sm:$0xff]
    %v4215 = vld [vmem:[#allocation10 + $0x910] sm:$0xff]
    %v4216 = vld [vmem:[#allocation10 + $0x918] sm:$0xff]
    %v4217 = vld [vmem:[#allocation10 + $0x920] sm:$0xff]
    %v4218 = vld [vmem:[#allocation10 + $0x928] sm:$0xff]
    %v4219 = vld [vmem:[#allocation10 + $0x930] sm:$0xff]
    %v4220 = vld [vmem:[#allocation10 + $0x938] sm:$0xff]
    %v4221 = vld [vmem:[#allocation10 + $0x940] sm:$0xff]
    %v4222 = vld [vmem:[#allocation10 + $0x948] sm:$0xff]
    %v4223 = vld [vmem:[#allocation10 + $0x950] sm:$0xff]
    %v4224 = vld [vmem:[#allocation10 + $0x958] sm:$0xff]
    %v4225 = vld [vmem:[#allocation10 + $0x960] sm:$0xff]
    %v4226 = vld [vmem:[#allocation10 + $0x968] sm:$0xff]
    %v4227 = vld [vmem:[#allocation10 + $0x970] sm:$0xff]
    %v4228 = vld [vmem:[#allocation10 + $0x978] sm:$0xff]
    %v4229 = vld [vmem:[#allocation10 + $0x980] sm:$0xff]
    %v4230 = vld [vmem:[#allocation10 + $0x988] sm:$0xff]
    %v4231 = vld [vmem:[#allocation10 + $0x990] sm:$0xff]
    %v4232 = vld [vmem:[#allocation10 + $0x998] sm:$0xff]
    %v4233 = vld [vmem:[#allocation10 + $0x9a0] sm:$0xff]
    %v4234 = vld [vmem:[#allocation10 + $0x9a8] sm:$0xff]
    %v4235 = vld [vmem:[#allocation10 + $0x9b0] sm:$0xff]
    %v4236 = vld [vmem:[#allocation10 + $0x9b8] sm:$0xff]
    %v4237 = vld [vmem:[#allocation10 + $0x9c0] sm:$0xff]
    %v4238 = vld [vmem:[#allocation10 + $0x9c8] sm:$0xff]
    %v4239 = vld [vmem:[#allocation10 + $0x9d0] sm:$0xff]
    %v4240 = vld [vmem:[#allocation10 + $0x9d8] sm:$0xff]
    %v4241 = vld [vmem:[#allocation10 + $0x9e0] sm:$0xff]
    %v4242 = vld [vmem:[#allocation10 + $0x9e8] sm:$0xff]
    %v4243 = vld [vmem:[#allocation10 + $0x9f0] sm:$0xff]
    %v4244 = vld [vmem:[#allocation10 + $0x9f8] sm:$0xff]
    %v4245 = vld [vmem:[#allocation10 + $0xa00] sm:$0xff]
    %v4246 = vld [vmem:[#allocation10 + $0xa08] sm:$0xff]
    %v4247 = vld [vmem:[#allocation10 + $0xa10] sm:$0xff]
    %v4248 = vld [vmem:[#allocation10 + $0xa18] sm:$0xff]
    %v4249 = vld [vmem:[#allocation10 + $0xa20] sm:$0xff]
    %v4250 = vld [vmem:[#allocation10 + $0xa28] sm:$0xff]
    %v4251 = vld [vmem:[#allocation10 + $0xa30] sm:$0xff]
    %v4252 = vld [vmem:[#allocation10 + $0xa38] sm:$0xff]
    %v4253 = vld [vmem:[#allocation10 + $0xa40] sm:$0xff]
    %v4254 = vld [vmem:[#allocation10 + $0xa48] sm:$0xff]
    %v4255 = vld [vmem:[#allocation10 + $0xa50] sm:$0xff]
    %v4256 = vld [vmem:[#allocation10 + $0xa58] sm:$0xff]
    %v4257 = vld [vmem:[#allocation10 + $0xa60] sm:$0xff]
    %v4258 = vld [vmem:[#allocation10 + $0xa68] sm:$0xff]
    %v4259 = vld [vmem:[#allocation10 + $0xa70] sm:$0xff]
    %v4260 = vld [vmem:[#allocation10 + $0xa78] sm:$0xff]
    %v4261 = vld [vmem:[#allocation10 + $0xa80] sm:$0xff]
    %v4262 = vld [vmem:[#allocation10 + $0xa88] sm:$0xff]
    %v4263 = vld [vmem:[#allocation10 + $0xa90] sm:$0xff]
    %v4264 = vld [vmem:[#allocation10 + $0xa98] sm:$0xff]
    %v4265 = vld [vmem:[#allocation10 + $0xaa0] sm:$0xff]
    %v4266 = vld [vmem:[#allocation10 + $0xaa8] sm:$0xff]
    %v4267 = vld [vmem:[#allocation10 + $0xab0] sm:$0xff]
    %v4268 = vld [vmem:[#allocation10 + $0xab8] sm:$0xff]
    %v4269 = vld [vmem:[#allocation10 + $0xac0] sm:$0xff]
    %v4270 = vld [vmem:[#allocation10 + $0xac8] sm:$0xff]
    %v4271 = vld [vmem:[#allocation10 + $0xad0] sm:$0xff]
    %v4272 = vld [vmem:[#allocation10 + $0xad8] sm:$0xff]
    %v4273 = vld [vmem:[#allocation10 + $0xae0] sm:$0xff]
    %v4274 = vld [vmem:[#allocation10 + $0xae8] sm:$0xff]
    %v4275 = vld [vmem:[#allocation10 + $0xaf0] sm:$0xff]
    %v4276 = vld [vmem:[#allocation10 + $0xaf8] sm:$0xff]
    %v4277 = vld [vmem:[#allocation10 + $0xb00] sm:$0xff]
    %v4278 = vld [vmem:[#allocation10 + $0xb08] sm:$0xff]
    %v4279 = vld [vmem:[#allocation10 + $0xb10] sm:$0xff]
    %v4280 = vld [vmem:[#allocation10 + $0xb18] sm:$0xff]
    %v4281 = vld [vmem:[#allocation10 + $0xb20] sm:$0xff]
    %v4282 = vld [vmem:[#allocation10 + $0xb28] sm:$0xff]
    %v4283 = vld [vmem:[#allocation10 + $0xb30] sm:$0xff]
    %v4284 = vld [vmem:[#allocation10 + $0xb38] sm:$0xff]
    %v4285 = vld [vmem:[#allocation10 + $0xb40] sm:$0xff]
    %v4286 = vld [vmem:[#allocation10 + $0xb48] sm:$0xff]
    %v4287 = vld [vmem:[#allocation10 + $0xb50] sm:$0xff]
    %v4288 = vld [vmem:[#allocation10 + $0xb58] sm:$0xff]
    %v4289 = vld [vmem:[#allocation10 + $0xb60] sm:$0xff]
    %v4290 = vld [vmem:[#allocation10 + $0xb68] sm:$0xff]
    %v4291 = vld [vmem:[#allocation10 + $0xb70] sm:$0xff]
    %v4292 = vld [vmem:[#allocation10 + $0xb78] sm:$0xff]
    %v4293 = vld [vmem:[#allocation10 + $0xb80] sm:$0xff]
    %v4294 = vld [vmem:[#allocation10 + $0xb88] sm:$0xff]
    %v4295 = vld [vmem:[#allocation10 + $0xb90] sm:$0xff]
    %v4296 = vld [vmem:[#allocation10 + $0xb98] sm:$0xff]
    %v4297 = vld [vmem:[#allocation10 + $0xba0] sm:$0xff]
    %v4298 = vld [vmem:[#allocation10 + $0xba8] sm:$0xff]
    %v4299 = vld [vmem:[#allocation10 + $0xbb0] sm:$0xff]
    %v4300 = vld [vmem:[#allocation10 + $0xbb8] sm:$0xff]
    %v4301 = vld [vmem:[#allocation10 + $0xbc0] sm:$0xff]
    %v4302 = vld [vmem:[#allocation10 + $0xbc8] sm:$0xff]
    %v4303 = vld [vmem:[#allocation10 + $0xbd0] sm:$0xff]
    %v4304 = vld [vmem:[#allocation10 + $0xbd8] sm:$0xff]
    %v4305 = vld [vmem:[#allocation10 + $0xbe0] sm:$0xff]
    %v4306 = vld [vmem:[#allocation10 + $0xbe8] sm:$0xff]
    %v4307 = vld [vmem:[#allocation10 + $0xbf0] sm:$0xff]
    %v4308 = vld [vmem:[#allocation10 + $0xbf8] sm:$0xff]
    %v4309 = vld [vmem:[#allocation10 + $0xc00] sm:$0xff]
    %v4310 = vld [vmem:[#allocation10 + $0xc08] sm:$0xff]
    %v4311 = vld [vmem:[#allocation10 + $0xc10] sm:$0xff]
    %v4312 = vld [vmem:[#allocation10 + $0xc18] sm:$0xff]
    %v4313 = vld [vmem:[#allocation10 + $0xc20] sm:$0xff]
    %v4314 = vld [vmem:[#allocation10 + $0xc28] sm:$0xff]
    %v4315 = vld [vmem:[#allocation10 + $0xc30] sm:$0xff]
    %v4316 = vld [vmem:[#allocation10 + $0xc38] sm:$0xff]
    %v4317 = vld [vmem:[#allocation10 + $0xc40] sm:$0xff]
    %v4318 = vld [vmem:[#allocation10 + $0xc48] sm:$0xff]
    %v4319 = vld [vmem:[#allocation10 + $0xc50] sm:$0xff]
    %v4320 = vld [vmem:[#allocation10 + $0xc58] sm:$0xff]
    %v4321 = vld [vmem:[#allocation10 + $0xc60] sm:$0xff]
    %v4322 = vld [vmem:[#allocation10 + $0xc68] sm:$0xff]
    %v4323 = vld [vmem:[#allocation10 + $0xc70] sm:$0xff]
    %v4324 = vld [vmem:[#allocation10 + $0xc78] sm:$0xff]
    %v4325 = vld [vmem:[#allocation10 + $0xc80] sm:$0xff]
    %v4326 = vld [vmem:[#allocation10 + $0xc88] sm:$0xff]
    %v4327 = vld [vmem:[#allocation10 + $0xc90] sm:$0xff]
    %v4328 = vld [vmem:[#allocation10 + $0xc98] sm:$0xff]
    %v4329 = vld [vmem:[#allocation10 + $0xca0] sm:$0xff]
    %v4330 = vld [vmem:[#allocation10 + $0xca8] sm:$0xff]
    %v4331 = vld [vmem:[#allocation10 + $0xcb0] sm:$0xff]
    %v4332 = vld [vmem:[#allocation10 + $0xcb8] sm:$0xff]
    %v4333 = vld [vmem:[#allocation10 + $0xcc0] sm:$0xff]
    %v4334 = vld [vmem:[#allocation10 + $0xcc8] sm:$0xff]
    %v4335 = vld [vmem:[#allocation10 + $0xcd0] sm:$0xff]
    %v4336 = vld [vmem:[#allocation10 + $0xcd8] sm:$0xff]
    %v4337 = vld [vmem:[#allocation10 + $0xce0] sm:$0xff]
    %v4338 = vld [vmem:[#allocation10 + $0xce8] sm:$0xff]
    %v4339 = vld [vmem:[#allocation10 + $0xcf0] sm:$0xff]
    %v4340 = vld [vmem:[#allocation10 + $0xcf8] sm:$0xff]
    %v4341 = vld [vmem:[#allocation10 + $0xd00] sm:$0xff]
    %v4342 = vld [vmem:[#allocation10 + $0xd08] sm:$0xff]
    %v4343 = vld [vmem:[#allocation10 + $0xd10] sm:$0xff]
    %v4344 = vld [vmem:[#allocation10 + $0xd18] sm:$0xff]
    %v4345 = vld [vmem:[#allocation10 + $0xd20] sm:$0xff]
    %v4346 = vld [vmem:[#allocation10 + $0xd28] sm:$0xff]
    %v4347 = vld [vmem:[#allocation10 + $0xd30] sm:$0xff]
    %v4348 = vld [vmem:[#allocation10 + $0xd38] sm:$0xff]
    %v4349 = vld [vmem:[#allocation10 + $0xd40] sm:$0xff]
    %v4350 = vld [vmem:[#allocation10 + $0xd48] sm:$0xff]
    %v4351 = vld [vmem:[#allocation10 + $0xd50] sm:$0xff]
    %v4352 = vld [vmem:[#allocation10 + $0xd58] sm:$0xff]
    %v4353 = vld [vmem:[#allocation10 + $0xd60] sm:$0xff]
    %v4354 = vld [vmem:[#allocation10 + $0xd68] sm:$0xff]
    %v4355 = vld [vmem:[#allocation10 + $0xd70] sm:$0xff]
    %v4356 = vld [vmem:[#allocation10 + $0xd78] sm:$0xff]
    %v4357 = vld [vmem:[#allocation10 + $0xd80] sm:$0xff]
    %v4358 = vld [vmem:[#allocation10 + $0xd88] sm:$0xff]
    %v4359 = vld [vmem:[#allocation10 + $0xd90] sm:$0xff]
    %v4360 = vld [vmem:[#allocation10 + $0xd98] sm:$0xff]
    %v4361 = vld [vmem:[#allocation10 + $0xda0] sm:$0xff]
    %v4362 = vld [vmem:[#allocation10 + $0xda8] sm:$0xff]
    %v4363 = vld [vmem:[#allocation10 + $0xdb0] sm:$0xff]
    %v4364 = vld [vmem:[#allocation10 + $0xdb8] sm:$0xff]
    %v4365 = vld [vmem:[#allocation10 + $0xdc0] sm:$0xff]
    %v4366 = vld [vmem:[#allocation10 + $0xdc8] sm:$0xff]
    %v4367 = vld [vmem:[#allocation10 + $0xdd0] sm:$0xff]
    %v4368 = vld [vmem:[#allocation10 + $0xdd8] sm:$0xff]
    %v4369 = vld [vmem:[#allocation10 + $0xde0] sm:$0xff]
    %v4370 = vld [vmem:[#allocation10 + $0xde8] sm:$0xff]
    %v4371 = vld [vmem:[#allocation10 + $0xdf0] sm:$0xff]
    %v4372 = vld [vmem:[#allocation10 + $0xdf8] sm:$0xff]
    %v4373 = vld [vmem:[#allocation10 + $0xe00] sm:$0xff]
    %v4374 = vld [vmem:[#allocation10 + $0xe08] sm:$0xff]
    %v4375 = vld [vmem:[#allocation10 + $0xe10] sm:$0xff]
    %v4376 = vld [vmem:[#allocation10 + $0xe18] sm:$0xff]
    %v4377 = vld [vmem:[#allocation10 + $0xe20] sm:$0xff]
    %v4378 = vld [vmem:[#allocation10 + $0xe28] sm:$0xff]
    %v4379 = vld [vmem:[#allocation10 + $0xe30] sm:$0xff]
    %v4380 = vld [vmem:[#allocation10 + $0xe38] sm:$0xff]
    %v4381 = vld [vmem:[#allocation10 + $0xe40] sm:$0xff]
    %v4382 = vld [vmem:[#allocation10 + $0xe48] sm:$0xff]
    %v4383 = vld [vmem:[#allocation10 + $0xe50] sm:$0xff]
    %v4384 = vld [vmem:[#allocation10 + $0xe58] sm:$0xff]
    %v4385 = vld [vmem:[#allocation10 + $0xe60] sm:$0xff]
    %v4386 = vld [vmem:[#allocation10 + $0xe68] sm:$0xff]
    %v4387 = vld [vmem:[#allocation10 + $0xe70] sm:$0xff]
    %v4388 = vld [vmem:[#allocation10 + $0xe78] sm:$0xff]
    %v4389 = vld [vmem:[#allocation10 + $0xe80] sm:$0xff]
    %v4390 = vld [vmem:[#allocation10 + $0xe88] sm:$0xff]
    %v4391 = vld [vmem:[#allocation10 + $0xe90] sm:$0xff]
    %v4392 = vld [vmem:[#allocation10 + $0xe98] sm:$0xff]
    %v4393 = vld [vmem:[#allocation10 + $0xea0] sm:$0xff]
    %v4394 = vld [vmem:[#allocation10 + $0xea8] sm:$0xff]
    %v4395 = vld [vmem:[#allocation10 + $0xeb0] sm:$0xff]
    %v4396 = vld [vmem:[#allocation10 + $0xeb8] sm:$0xff]
    %v4397 = vld [vmem:[#allocation10 + $0xec0] sm:$0xff]
    %v4398 = vld [vmem:[#allocation10 + $0xec8] sm:$0xff]
    %v4399 = vld [vmem:[#allocation10 + $0xed0] sm:$0xff]
    %v4400 = vld [vmem:[#allocation10 + $0xed8] sm:$0xff]
    %v4401 = vld [vmem:[#allocation10 + $0xee0] sm:$0xff]
    %v4402 = vld [vmem:[#allocation10 + $0xee8] sm:$0xff]
    %v4403 = vld [vmem:[#allocation10 + $0xef0] sm:$0xff]
    %v4404 = vld [vmem:[#allocation10 + $0xef8] sm:$0xff]
    %v4405 = vld [vmem:[#allocation10 + $0xf00] sm:$0xff]
    %v4406 = vld [vmem:[#allocation10 + $0xf08] sm:$0xff]
    %v4407 = vld [vmem:[#allocation10 + $0xf10] sm:$0xff]
    %v4408 = vld [vmem:[#allocation10 + $0xf18] sm:$0xff]
    %v4409 = vld [vmem:[#allocation10 + $0xf20] sm:$0xff]
    %v4410 = vld [vmem:[#allocation10 + $0xf28] sm:$0xff]
    %v4411 = vld [vmem:[#allocation10 + $0xf30] sm:$0xff]
    %v4412 = vld [vmem:[#allocation10 + $0xf38] sm:$0xff]
    %v4413 = vld [vmem:[#allocation10 + $0xf40] sm:$0xff]
    %v4414 = vld [vmem:[#allocation10 + $0xf48] sm:$0xff]
    %v4415 = vld [vmem:[#allocation10 + $0xf50] sm:$0xff]
    %v4416 = vld [vmem:[#allocation10 + $0xf58] sm:$0xff]
    %v4417 = vld [vmem:[#allocation10 + $0xf60] sm:$0xff]
    %v4418 = vld [vmem:[#allocation10 + $0xf68] sm:$0xff]
    %v4419 = vld [vmem:[#allocation10 + $0xf70] sm:$0xff]
    %v4420 = vld [vmem:[#allocation10 + $0xf78] sm:$0xff]
    %v4421 = vld [vmem:[#allocation10 + $0xf80] sm:$0xff]
    %v4422 = vld [vmem:[#allocation10 + $0xf88] sm:$0xff]
    %v4423 = vld [vmem:[#allocation10 + $0xf90] sm:$0xff]
    %v4424 = vld [vmem:[#allocation10 + $0xf98] sm:$0xff]
    %v4425 = vld [vmem:[#allocation10 + $0xfa0] sm:$0xff]
    %v4426 = vld [vmem:[#allocation10 + $0xfa8] sm:$0xff]
    %v4427 = vld [vmem:[#allocation10 + $0xfb0] sm:$0xff]
    %v4428 = vld [vmem:[#allocation10 + $0xfb8] sm:$0xff]
    %v4429 = vld [vmem:[#allocation10 + $0xfc0] sm:$0xff]
    %v4430 = vld [vmem:[#allocation10 + $0xfc8] sm:$0xff]
    %v4431 = vld [vmem:[#allocation10 + $0xfd0] sm:$0xff]
    %v4432 = vld [vmem:[#allocation10 + $0xfd8] sm:$0xff]
    %v4433 = vld [vmem:[#allocation10 + $0xfe0] sm:$0xff]
    %v4434 = vld [vmem:[#allocation10 + $0xfe8] sm:$0xff]
    %v4435 = vld [vmem:[#allocation10 + $0xff0] sm:$0xff]
    %v4436 = vld [vmem:[#allocation10 + $0xff8] sm:$0xff]
    %v4949 = vunpack.c.l.b16 %v3925
    %v4950 = vunpack.c.h.b16 %v3925
    %v4951 = vunpack.c.l.b16 %v3926
    %v4952 = vunpack.c.h.b16 %v3926
    %v4953 = vunpack.c.l.b16 %v3927
    %v4954 = vunpack.c.h.b16 %v3927
    %v4955 = vunpack.c.l.b16 %v3928
    %v4956 = vunpack.c.h.b16 %v3928
    %v4957 = vunpack.c.l.b16 %v3929
    %v4958 = vunpack.c.h.b16 %v3929
    %v4959 = vunpack.c.l.b16 %v3930
    %v4960 = vunpack.c.h.b16 %v3930
    %v4961 = vunpack.c.l.b16 %v3931
    %v4962 = vunpack.c.h.b16 %v3931
    %v4963 = vunpack.c.l.b16 %v3932
    %v4964 = vunpack.c.h.b16 %v3932
    %v4965 = vunpack.c.l.b16 %v3933
    %v4966 = vunpack.c.h.b16 %v3933
    %v4967 = vunpack.c.l.b16 %v3934
    %v4968 = vunpack.c.h.b16 %v3934
    %v4969 = vunpack.c.l.b16 %v3935
    %v4970 = vunpack.c.h.b16 %v3935
    %v4971 = vunpack.c.l.b16 %v3936
    %v4972 = vunpack.c.h.b16 %v3936
    %v4973 = vunpack.c.l.b16 %v3937
    %v4974 = vunpack.c.h.b16 %v3937
    %v4975 = vunpack.c.l.b16 %v3938
    %v4976 = vunpack.c.h.b16 %v3938
    %v4977 = vunpack.c.l.b16 %v3939
    %v4978 = vunpack.c.h.b16 %v3939
    %v4979 = vunpack.c.l.b16 %v3940
    %v4980 = vunpack.c.h.b16 %v3940
    %v4981 = vunpack.c.l.b16 %v3941
    %v4982 = vunpack.c.h.b16 %v3941
    %v4983 = vunpack.c.l.b16 %v3942
    %v4984 = vunpack.c.h.b16 %v3942
    %v4985 = vunpack.c.l.b16 %v3943
    %v4986 = vunpack.c.h.b16 %v3943
    %v4987 = vunpack.c.l.b16 %v3944
    %v4988 = vunpack.c.h.b16 %v3944
    %v4989 = vunpack.c.l.b16 %v3945
    %v4990 = vunpack.c.h.b16 %v3945
    %v4991 = vunpack.c.l.b16 %v3946
    %v4992 = vunpack.c.h.b16 %v3946
    %v4993 = vunpack.c.l.b16 %v3947
    %v4994 = vunpack.c.h.b16 %v3947
    %v4995 = vunpack.c.l.b16 %v3948
    %v4996 = vunpack.c.h.b16 %v3948
    %v4997 = vunpack.c.l.b16 %v3949
    %v4998 = vunpack.c.h.b16 %v3949
    %v4999 = vunpack.c.l.b16 %v3950
    %v5000 = vunpack.c.h.b16 %v3950
    %v5001 = vunpack.c.l.b16 %v3951
    %v5002 = vunpack.c.h.b16 %v3951
    %v5003 = vunpack.c.l.b16 %v3952
    %v5004 = vunpack.c.h.b16 %v3952
    %v5005 = vunpack.c.l.b16 %v3953
    %v5006 = vunpack.c.h.b16 %v3953
    %v5007 = vunpack.c.l.b16 %v3954
    %v5008 = vunpack.c.h.b16 %v3954
    %v5009 = vunpack.c.l.b16 %v3955
    %v5010 = vunpack.c.h.b16 %v3955
    %v5011 = vunpack.c.l.b16 %v3956
    %v5012 = vunpack.c.h.b16 %v3956
    %v5013 = vunpack.c.l.b16 %v3957
    %v5014 = vunpack.c.h.b16 %v3957
    %v5015 = vunpack.c.l.b16 %v3958
    %v5016 = vunpack.c.h.b16 %v3958
    %v5017 = vunpack.c.l.b16 %v3959
    %v5018 = vunpack.c.h.b16 %v3959
    %v5019 = vunpack.c.l.b16 %v3960
    %v5020 = vunpack.c.h.b16 %v3960
    %v5021 = vunpack.c.l.b16 %v3961
    %v5022 = vunpack.c.h.b16 %v3961
    %v5023 = vunpack.c.l.b16 %v3962
    %v5024 = vunpack.c.h.b16 %v3962
    %v5025 = vunpack.c.l.b16 %v3963
    %v5026 = vunpack.c.h.b16 %v3963
    %v5027 = vunpack.c.l.b16 %v3964
    %v5028 = vunpack.c.h.b16 %v3964
    %v5029 = vunpack.c.l.b16 %v3965
    %v5030 = vunpack.c.h.b16 %v3965
    %v5031 = vunpack.c.l.b16 %v3966
    %v5032 = vunpack.c.h.b16 %v3966
    %v5033 = vunpack.c.l.b16 %v3967
    %v5034 = vunpack.c.h.b16 %v3967
    %v5035 = vunpack.c.l.b16 %v3968
    %v5036 = vunpack.c.h.b16 %v3968
    %v5037 = vunpack.c.l.b16 %v3969
    %v5038 = vunpack.c.h.b16 %v3969
    %v5039 = vunpack.c.l.b16 %v3970
    %v5040 = vunpack.c.h.b16 %v3970
    %v5041 = vunpack.c.l.b16 %v3971
    %v5042 = vunpack.c.h.b16 %v3971
    %v5043 = vunpack.c.l.b16 %v3972
    %v5044 = vunpack.c.h.b16 %v3972
    %v5045 = vunpack.c.l.b16 %v3973
    %v5046 = vunpack.c.h.b16 %v3973
    %v5047 = vunpack.c.l.b16 %v3974
    %v5048 = vunpack.c.h.b16 %v3974
    %v5049 = vunpack.c.l.b16 %v3975
    %v5050 = vunpack.c.h.b16 %v3975
    %v5051 = vunpack.c.l.b16 %v3976
    %v5052 = vunpack.c.h.b16 %v3976
    %v5053 = vunpack.c.l.b16 %v3977
    %v5054 = vunpack.c.h.b16 %v3977
    %v5055 = vunpack.c.l.b16 %v3978
    %v5056 = vunpack.c.h.b16 %v3978
    %v5057 = vunpack.c.l.b16 %v3979
    %v5058 = vunpack.c.h.b16 %v3979
    %v5059 = vunpack.c.l.b16 %v3980
    %v5060 = vunpack.c.h.b16 %v3980
    %v5061 = vunpack.c.l.b16 %v3981
    %v5062 = vunpack.c.h.b16 %v3981
    %v5063 = vunpack.c.l.b16 %v3982
    %v5064 = vunpack.c.h.b16 %v3982
    %v5065 = vunpack.c.l.b16 %v3983
    %v5066 = vunpack.c.h.b16 %v3983
    %v5067 = vunpack.c.l.b16 %v3984
    %v5068 = vunpack.c.h.b16 %v3984
    %v5069 = vunpack.c.l.b16 %v3985
    %v5070 = vunpack.c.h.b16 %v3985
    %v5071 = vunpack.c.l.b16 %v3986
    %v5072 = vunpack.c.h.b16 %v3986
    %v5073 = vunpack.c.l.b16 %v3987
    %v5074 = vunpack.c.h.b16 %v3987
    %v5075 = vunpack.c.l.b16 %v3988
    %v5076 = vunpack.c.h.b16 %v3988
    %v5077 = vunpack.c.l.b16 %v3989
    %v5078 = vunpack.c.h.b16 %v3989
    %v5079 = vunpack.c.l.b16 %v3990
    %v5080 = vunpack.c.h.b16 %v3990
    %v5081 = vunpack.c.l.b16 %v3991
    %v5082 = vunpack.c.h.b16 %v3991
    %v5083 = vunpack.c.l.b16 %v3992
    %v5084 = vunpack.c.h.b16 %v3992
    %v5085 = vunpack.c.l.b16 %v3993
    %v5086 = vunpack.c.h.b16 %v3993
    %v5087 = vunpack.c.l.b16 %v3994
    %v5088 = vunpack.c.h.b16 %v3994
    %v5089 = vunpack.c.l.b16 %v3995
    %v5090 = vunpack.c.h.b16 %v3995
    %v5091 = vunpack.c.l.b16 %v3996
    %v5092 = vunpack.c.h.b16 %v3996
    %v5093 = vunpack.c.l.b16 %v3997
    %v5094 = vunpack.c.h.b16 %v3997
    %v5095 = vunpack.c.l.b16 %v3998
    %v5096 = vunpack.c.h.b16 %v3998
    %v5097 = vunpack.c.l.b16 %v3999
    %v5098 = vunpack.c.h.b16 %v3999
    %v5099 = vunpack.c.l.b16 %v4000
    %v5100 = vunpack.c.h.b16 %v4000
    %v5101 = vunpack.c.l.b16 %v4001
    %v5102 = vunpack.c.h.b16 %v4001
    %v5103 = vunpack.c.l.b16 %v4002
    %v5104 = vunpack.c.h.b16 %v4002
    %v5105 = vunpack.c.l.b16 %v4003
    %v5106 = vunpack.c.h.b16 %v4003
    %v5107 = vunpack.c.l.b16 %v4004
    %v5108 = vunpack.c.h.b16 %v4004
    %v5109 = vunpack.c.l.b16 %v4005
    %v5110 = vunpack.c.h.b16 %v4005
    %v5111 = vunpack.c.l.b16 %v4006
    %v5112 = vunpack.c.h.b16 %v4006
    %v5113 = vunpack.c.l.b16 %v4007
    %v5114 = vunpack.c.h.b16 %v4007
    %v5115 = vunpack.c.l.b16 %v4008
    %v5116 = vunpack.c.h.b16 %v4008
    %v5117 = vunpack.c.l.b16 %v4009
    %v5118 = vunpack.c.h.b16 %v4009
    %v5119 = vunpack.c.l.b16 %v4010
    %v5120 = vunpack.c.h.b16 %v4010
    %v5121 = vunpack.c.l.b16 %v4011
    %v5122 = vunpack.c.h.b16 %v4011
    %v5123 = vunpack.c.l.b16 %v4012
    %v5124 = vunpack.c.h.b16 %v4012
    %v5125 = vunpack.c.l.b16 %v4013
    %v5126 = vunpack.c.h.b16 %v4013
    %v5127 = vunpack.c.l.b16 %v4014
    %v5128 = vunpack.c.h.b16 %v4014
    %v5129 = vunpack.c.l.b16 %v4015
    %v5130 = vunpack.c.h.b16 %v4015
    %v5131 = vunpack.c.l.b16 %v4016
    %v5132 = vunpack.c.h.b16 %v4016
    %v5133 = vunpack.c.l.b16 %v4017
    %v5134 = vunpack.c.h.b16 %v4017
    %v5135 = vunpack.c.l.b16 %v4018
    %v5136 = vunpack.c.h.b16 %v4018
    %v5137 = vunpack.c.l.b16 %v4019
    %v5138 = vunpack.c.h.b16 %v4019
    %v5139 = vunpack.c.l.b16 %v4020
    %v5140 = vunpack.c.h.b16 %v4020
    %v5141 = vunpack.c.l.b16 %v4021
    %v5142 = vunpack.c.h.b16 %v4021
    %v5143 = vunpack.c.l.b16 %v4022
    %v5144 = vunpack.c.h.b16 %v4022
    %v5145 = vunpack.c.l.b16 %v4023
    %v5146 = vunpack.c.h.b16 %v4023
    %v5147 = vunpack.c.l.b16 %v4024
    %v5148 = vunpack.c.h.b16 %v4024
    %v5149 = vunpack.c.l.b16 %v4025
    %v5150 = vunpack.c.h.b16 %v4025
    %v5151 = vunpack.c.l.b16 %v4026
    %v5152 = vunpack.c.h.b16 %v4026
    %v5153 = vunpack.c.l.b16 %v4027
    %v5154 = vunpack.c.h.b16 %v4027
    %v5155 = vunpack.c.l.b16 %v4028
    %v5156 = vunpack.c.h.b16 %v4028
    %v5157 = vunpack.c.l.b16 %v4029
    %v5158 = vunpack.c.h.b16 %v4029
    %v5159 = vunpack.c.l.b16 %v4030
    %v5160 = vunpack.c.h.b16 %v4030
    %v5161 = vunpack.c.l.b16 %v4031
    %v5162 = vunpack.c.h.b16 %v4031
    %v5163 = vunpack.c.l.b16 %v4032
    %v5164 = vunpack.c.h.b16 %v4032
    %v5165 = vunpack.c.l.b16 %v4033
    %v5166 = vunpack.c.h.b16 %v4033
    %v5167 = vunpack.c.l.b16 %v4034
    %v5168 = vunpack.c.h.b16 %v4034
    %v5169 = vunpack.c.l.b16 %v4035
    %v5170 = vunpack.c.h.b16 %v4035
    %v5171 = vunpack.c.l.b16 %v4036
    %v5172 = vunpack.c.h.b16 %v4036
    %v5173 = vunpack.c.l.b16 %v4037
    %v5174 = vunpack.c.h.b16 %v4037
    %v5175 = vunpack.c.l.b16 %v4038
    %v5176 = vunpack.c.h.b16 %v4038
    %v5177 = vunpack.c.l.b16 %v4039
    %v5178 = vunpack.c.h.b16 %v4039
    %v5179 = vunpack.c.l.b16 %v4040
    %v5180 = vunpack.c.h.b16 %v4040
    %v5181 = vunpack.c.l.b16 %v4041
    %v5182 = vunpack.c.h.b16 %v4041
    %v5183 = vunpack.c.l.b16 %v4042
    %v5184 = vunpack.c.h.b16 %v4042
    %v5185 = vunpack.c.l.b16 %v4043
    %v5186 = vunpack.c.h.b16 %v4043
    %v5187 = vunpack.c.l.b16 %v4044
    %v5188 = vunpack.c.h.b16 %v4044
    %v5189 = vunpack.c.l.b16 %v4045
    %v5190 = vunpack.c.h.b16 %v4045
    %v5191 = vunpack.c.l.b16 %v4046
    %v5192 = vunpack.c.h.b16 %v4046
    %v5193 = vunpack.c.l.b16 %v4047
    %v5194 = vunpack.c.h.b16 %v4047
    %v5195 = vunpack.c.l.b16 %v4048
    %v5196 = vunpack.c.h.b16 %v4048
    %v5197 = vunpack.c.l.b16 %v4049
    %v5198 = vunpack.c.h.b16 %v4049
    %v5199 = vunpack.c.l.b16 %v4050
    %v5200 = vunpack.c.h.b16 %v4050
    %v5201 = vunpack.c.l.b16 %v4051
    %v5202 = vunpack.c.h.b16 %v4051
    %v5203 = vunpack.c.l.b16 %v4052
    %v5204 = vunpack.c.h.b16 %v4052
    %v5205 = vunpack.c.l.b16 %v4053
    %v5206 = vunpack.c.h.b16 %v4053
    %v5207 = vunpack.c.l.b16 %v4054
    %v5208 = vunpack.c.h.b16 %v4054
    %v5209 = vunpack.c.l.b16 %v4055
    %v5210 = vunpack.c.h.b16 %v4055
    %v5211 = vunpack.c.l.b16 %v4056
    %v5212 = vunpack.c.h.b16 %v4056
    %v5213 = vunpack.c.l.b16 %v4057
    %v5214 = vunpack.c.h.b16 %v4057
    %v5215 = vunpack.c.l.b16 %v4058
    %v5216 = vunpack.c.h.b16 %v4058
    %v5217 = vunpack.c.l.b16 %v4059
    %v5218 = vunpack.c.h.b16 %v4059
    %v5219 = vunpack.c.l.b16 %v4060
    %v5220 = vunpack.c.h.b16 %v4060
    %v5221 = vunpack.c.l.b16 %v4061
    %v5222 = vunpack.c.h.b16 %v4061
    %v5223 = vunpack.c.l.b16 %v4062
    %v5224 = vunpack.c.h.b16 %v4062
    %v5225 = vunpack.c.l.b16 %v4063
    %v5226 = vunpack.c.h.b16 %v4063
    %v5227 = vunpack.c.l.b16 %v4064
    %v5228 = vunpack.c.h.b16 %v4064
    %v5229 = vunpack.c.l.b16 %v4065
    %v5230 = vunpack.c.h.b16 %v4065
    %v5231 = vunpack.c.l.b16 %v4066
    %v5232 = vunpack.c.h.b16 %v4066
    %v5233 = vunpack.c.l.b16 %v4067
    %v5234 = vunpack.c.h.b16 %v4067
    %v5235 = vunpack.c.l.b16 %v4068
    %v5236 = vunpack.c.h.b16 %v4068
    %v5237 = vunpack.c.l.b16 %v4069
    %v5238 = vunpack.c.h.b16 %v4069
    %v5239 = vunpack.c.l.b16 %v4070
    %v5240 = vunpack.c.h.b16 %v4070
    %v5241 = vunpack.c.l.b16 %v4071
    %v5242 = vunpack.c.h.b16 %v4071
    %v5243 = vunpack.c.l.b16 %v4072
    %v5244 = vunpack.c.h.b16 %v4072
    %v5245 = vunpack.c.l.b16 %v4073
    %v5246 = vunpack.c.h.b16 %v4073
    %v5247 = vunpack.c.l.b16 %v4074
    %v5248 = vunpack.c.h.b16 %v4074
    %v5249 = vunpack.c.l.b16 %v4075
    %v5250 = vunpack.c.h.b16 %v4075
    %v5251 = vunpack.c.l.b16 %v4076
    %v5252 = vunpack.c.h.b16 %v4076
    %v5253 = vunpack.c.l.b16 %v4077
    %v5254 = vunpack.c.h.b16 %v4077
    %v5255 = vunpack.c.l.b16 %v4078
    %v5256 = vunpack.c.h.b16 %v4078
    %v5257 = vunpack.c.l.b16 %v4079
    %v5258 = vunpack.c.h.b16 %v4079
    %v5259 = vunpack.c.l.b16 %v4080
    %v5260 = vunpack.c.h.b16 %v4080
    %v5261 = vunpack.c.l.b16 %v4081
    %v5262 = vunpack.c.h.b16 %v4081
    %v5263 = vunpack.c.l.b16 %v4082
    %v5264 = vunpack.c.h.b16 %v4082
    %v5265 = vunpack.c.l.b16 %v4083
    %v5266 = vunpack.c.h.b16 %v4083
    %v5267 = vunpack.c.l.b16 %v4084
    %v5268 = vunpack.c.h.b16 %v4084
    %v5269 = vunpack.c.l.b16 %v4085
    %v5270 = vunpack.c.h.b16 %v4085
    %v5271 = vunpack.c.l.b16 %v4086
    %v5272 = vunpack.c.h.b16 %v4086
    %v5273 = vunpack.c.l.b16 %v4087
    %v5274 = vunpack.c.h.b16 %v4087
    %v5275 = vunpack.c.l.b16 %v4088
    %v5276 = vunpack.c.h.b16 %v4088
    %v5277 = vunpack.c.l.b16 %v4089
    %v5278 = vunpack.c.h.b16 %v4089
    %v5279 = vunpack.c.l.b16 %v4090
    %v5280 = vunpack.c.h.b16 %v4090
    %v5281 = vunpack.c.l.b16 %v4091
    %v5282 = vunpack.c.h.b16 %v4091
    %v5283 = vunpack.c.l.b16 %v4092
    %v5284 = vunpack.c.h.b16 %v4092
    %v5285 = vunpack.c.l.b16 %v4093
    %v5286 = vunpack.c.h.b16 %v4093
    %v5287 = vunpack.c.l.b16 %v4094
    %v5288 = vunpack.c.h.b16 %v4094
    %v5289 = vunpack.c.l.b16 %v4095
    %v5290 = vunpack.c.h.b16 %v4095
    %v5291 = vunpack.c.l.b16 %v4096
    %v5292 = vunpack.c.h.b16 %v4096
    %v5293 = vunpack.c.l.b16 %v4097
    %v5294 = vunpack.c.h.b16 %v4097
    %v5295 = vunpack.c.l.b16 %v4098
    %v5296 = vunpack.c.h.b16 %v4098
    %v5297 = vunpack.c.l.b16 %v4099
    %v5298 = vunpack.c.h.b16 %v4099
    %v5299 = vunpack.c.l.b16 %v4100
    %v5300 = vunpack.c.h.b16 %v4100
    %v5301 = vunpack.c.l.b16 %v4101
    %v5302 = vunpack.c.h.b16 %v4101
    %v5303 = vunpack.c.l.b16 %v4102
    %v5304 = vunpack.c.h.b16 %v4102
    %v5305 = vunpack.c.l.b16 %v4103
    %v5306 = vunpack.c.h.b16 %v4103
    %v5307 = vunpack.c.l.b16 %v4104
    %v5308 = vunpack.c.h.b16 %v4104
    %v5309 = vunpack.c.l.b16 %v4105
    %v5310 = vunpack.c.h.b16 %v4105
    %v5311 = vunpack.c.l.b16 %v4106
    %v5312 = vunpack.c.h.b16 %v4106
    %v5313 = vunpack.c.l.b16 %v4107
    %v5314 = vunpack.c.h.b16 %v4107
    %v5315 = vunpack.c.l.b16 %v4108
    %v5316 = vunpack.c.h.b16 %v4108
    %v5317 = vunpack.c.l.b16 %v4109
    %v5318 = vunpack.c.h.b16 %v4109
    %v5319 = vunpack.c.l.b16 %v4110
    %v5320 = vunpack.c.h.b16 %v4110
    %v5321 = vunpack.c.l.b16 %v4111
    %v5322 = vunpack.c.h.b16 %v4111
    %v5323 = vunpack.c.l.b16 %v4112
    %v5324 = vunpack.c.h.b16 %v4112
    %v5325 = vunpack.c.l.b16 %v4113
    %v5326 = vunpack.c.h.b16 %v4113
    %v5327 = vunpack.c.l.b16 %v4114
    %v5328 = vunpack.c.h.b16 %v4114
    %v5329 = vunpack.c.l.b16 %v4115
    %v5330 = vunpack.c.h.b16 %v4115
    %v5331 = vunpack.c.l.b16 %v4116
    %v5332 = vunpack.c.h.b16 %v4116
    %v5333 = vunpack.c.l.b16 %v4117
    %v5334 = vunpack.c.h.b16 %v4117
    %v5335 = vunpack.c.l.b16 %v4118
    %v5336 = vunpack.c.h.b16 %v4118
    %v5337 = vunpack.c.l.b16 %v4119
    %v5338 = vunpack.c.h.b16 %v4119
    %v5339 = vunpack.c.l.b16 %v4120
    %v5340 = vunpack.c.h.b16 %v4120
    %v5341 = vunpack.c.l.b16 %v4121
    %v5342 = vunpack.c.h.b16 %v4121
    %v5343 = vunpack.c.l.b16 %v4122
    %v5344 = vunpack.c.h.b16 %v4122
    %v5345 = vunpack.c.l.b16 %v4123
    %v5346 = vunpack.c.h.b16 %v4123
    %v5347 = vunpack.c.l.b16 %v4124
    %v5348 = vunpack.c.h.b16 %v4124
    %v5349 = vunpack.c.l.b16 %v4125
    %v5350 = vunpack.c.h.b16 %v4125
    %v5351 = vunpack.c.l.b16 %v4126
    %v5352 = vunpack.c.h.b16 %v4126
    %v5353 = vunpack.c.l.b16 %v4127
    %v5354 = vunpack.c.h.b16 %v4127
    %v5355 = vunpack.c.l.b16 %v4128
    %v5356 = vunpack.c.h.b16 %v4128
    %v5357 = vunpack.c.l.b16 %v4129
    %v5358 = vunpack.c.h.b16 %v4129
    %v5359 = vunpack.c.l.b16 %v4130
    %v5360 = vunpack.c.h.b16 %v4130
    %v5361 = vunpack.c.l.b16 %v4131
    %v5362 = vunpack.c.h.b16 %v4131
    %v5363 = vunpack.c.l.b16 %v4132
    %v5364 = vunpack.c.h.b16 %v4132
    %v5365 = vunpack.c.l.b16 %v4133
    %v5366 = vunpack.c.h.b16 %v4133
    %v5367 = vunpack.c.l.b16 %v4134
    %v5368 = vunpack.c.h.b16 %v4134
    %v5369 = vunpack.c.l.b16 %v4135
    %v5370 = vunpack.c.h.b16 %v4135
    %v5371 = vunpack.c.l.b16 %v4136
    %v5372 = vunpack.c.h.b16 %v4136
    %v5373 = vunpack.c.l.b16 %v4137
    %v5374 = vunpack.c.h.b16 %v4137
    %v5375 = vunpack.c.l.b16 %v4138
    %v5376 = vunpack.c.h.b16 %v4138
    %v5377 = vunpack.c.l.b16 %v4139
    %v5378 = vunpack.c.h.b16 %v4139
    %v5379 = vunpack.c.l.b16 %v4140
    %v5380 = vunpack.c.h.b16 %v4140
    %v5381 = vunpack.c.l.b16 %v4141
    %v5382 = vunpack.c.h.b16 %v4141
    %v5383 = vunpack.c.l.b16 %v4142
    %v5384 = vunpack.c.h.b16 %v4142
    %v5385 = vunpack.c.l.b16 %v4143
    %v5386 = vunpack.c.h.b16 %v4143
    %v5387 = vunpack.c.l.b16 %v4144
    %v5388 = vunpack.c.h.b16 %v4144
    %v5389 = vunpack.c.l.b16 %v4145
    %v5390 = vunpack.c.h.b16 %v4145
    %v5391 = vunpack.c.l.b16 %v4146
    %v5392 = vunpack.c.h.b16 %v4146
    %v5393 = vunpack.c.l.b16 %v4147
    %v5394 = vunpack.c.h.b16 %v4147
    %v5395 = vunpack.c.l.b16 %v4148
    %v5396 = vunpack.c.h.b16 %v4148
    %v5397 = vunpack.c.l.b16 %v4149
    %v5398 = vunpack.c.h.b16 %v4149
    %v5399 = vunpack.c.l.b16 %v4150
    %v5400 = vunpack.c.h.b16 %v4150
    %v5401 = vunpack.c.l.b16 %v4151
    %v5402 = vunpack.c.h.b16 %v4151
    %v5403 = vunpack.c.l.b16 %v4152
    %v5404 = vunpack.c.h.b16 %v4152
    %v5405 = vunpack.c.l.b16 %v4153
    %v5406 = vunpack.c.h.b16 %v4153
    %v5407 = vunpack.c.l.b16 %v4154
    %v5408 = vunpack.c.h.b16 %v4154
    %v5409 = vunpack.c.l.b16 %v4155
    %v5410 = vunpack.c.h.b16 %v4155
    %v5411 = vunpack.c.l.b16 %v4156
    %v5412 = vunpack.c.h.b16 %v4156
    %v5413 = vunpack.c.l.b16 %v4157
    %v5414 = vunpack.c.h.b16 %v4157
    %v5415 = vunpack.c.l.b16 %v4158
    %v5416 = vunpack.c.h.b16 %v4158
    %v5417 = vunpack.c.l.b16 %v4159
    %v5418 = vunpack.c.h.b16 %v4159
    %v5419 = vunpack.c.l.b16 %v4160
    %v5420 = vunpack.c.h.b16 %v4160
    %v5421 = vunpack.c.l.b16 %v4161
    %v5422 = vunpack.c.h.b16 %v4161
    %v5423 = vunpack.c.l.b16 %v4162
    %v5424 = vunpack.c.h.b16 %v4162
    %v5425 = vunpack.c.l.b16 %v4163
    %v5426 = vunpack.c.h.b16 %v4163
    %v5427 = vunpack.c.l.b16 %v4164
    %v5428 = vunpack.c.h.b16 %v4164
    %v5429 = vunpack.c.l.b16 %v4165
    %v5430 = vunpack.c.h.b16 %v4165
    %v5431 = vunpack.c.l.b16 %v4166
    %v5432 = vunpack.c.h.b16 %v4166
    %v5433 = vunpack.c.l.b16 %v4167
    %v5434 = vunpack.c.h.b16 %v4167
    %v5435 = vunpack.c.l.b16 %v4168
    %v5436 = vunpack.c.h.b16 %v4168
    %v5437 = vunpack.c.l.b16 %v4169
    %v5438 = vunpack.c.h.b16 %v4169
    %v5439 = vunpack.c.l.b16 %v4170
    %v5440 = vunpack.c.h.b16 %v4170
    %v5441 = vunpack.c.l.b16 %v4171
    %v5442 = vunpack.c.h.b16 %v4171
    %v5443 = vunpack.c.l.b16 %v4172
    %v5444 = vunpack.c.h.b16 %v4172
    %v5445 = vunpack.c.l.b16 %v4173
    %v5446 = vunpack.c.h.b16 %v4173
    %v5447 = vunpack.c.l.b16 %v4174
    %v5448 = vunpack.c.h.b16 %v4174
    %v5449 = vunpack.c.l.b16 %v4175
    %v5450 = vunpack.c.h.b16 %v4175
    %v5451 = vunpack.c.l.b16 %v4176
    %v5452 = vunpack.c.h.b16 %v4176
    %v5453 = vunpack.c.l.b16 %v4177
    %v5454 = vunpack.c.h.b16 %v4177
    %v5455 = vunpack.c.l.b16 %v4178
    %v5456 = vunpack.c.h.b16 %v4178
    %v5457 = vunpack.c.l.b16 %v4179
    %v5458 = vunpack.c.h.b16 %v4179
    %v5459 = vunpack.c.l.b16 %v4180
    %v5460 = vunpack.c.h.b16 %v4180
    %v5461 = vunpack.c.l.b16 %v4181
    %v5462 = vunpack.c.h.b16 %v4181
    %v5463 = vunpack.c.l.b16 %v4182
    %v5464 = vunpack.c.h.b16 %v4182
    %v5465 = vunpack.c.l.b16 %v4183
    %v5466 = vunpack.c.h.b16 %v4183
    %v5467 = vunpack.c.l.b16 %v4184
    %v5468 = vunpack.c.h.b16 %v4184
    %v5469 = vunpack.c.l.b16 %v4185
    %v5470 = vunpack.c.h.b16 %v4185
    %v5471 = vunpack.c.l.b16 %v4186
    %v5472 = vunpack.c.h.b16 %v4186
    %v5473 = vunpack.c.l.b16 %v4187
    %v5474 = vunpack.c.h.b16 %v4187
    %v5475 = vunpack.c.l.b16 %v4188
    %v5476 = vunpack.c.h.b16 %v4188
    %v5477 = vunpack.c.l.b16 %v4189
    %v5478 = vunpack.c.h.b16 %v4189
    %v5479 = vunpack.c.l.b16 %v4190
    %v5480 = vunpack.c.h.b16 %v4190
    %v5481 = vunpack.c.l.b16 %v4191
    %v5482 = vunpack.c.h.b16 %v4191
    %v5483 = vunpack.c.l.b16 %v4192
    %v5484 = vunpack.c.h.b16 %v4192
    %v5485 = vunpack.c.l.b16 %v4193
    %v5486 = vunpack.c.h.b16 %v4193
    %v5487 = vunpack.c.l.b16 %v4194
    %v5488 = vunpack.c.h.b16 %v4194
    %v5489 = vunpack.c.l.b16 %v4195
    %v5490 = vunpack.c.h.b16 %v4195
    %v5491 = vunpack.c.l.b16 %v4196
    %v5492 = vunpack.c.h.b16 %v4196
    %v5493 = vunpack.c.l.b16 %v4197
    %v5494 = vunpack.c.h.b16 %v4197
    %v5495 = vunpack.c.l.b16 %v4198
    %v5496 = vunpack.c.h.b16 %v4198
    %v5497 = vunpack.c.l.b16 %v4199
    %v5498 = vunpack.c.h.b16 %v4199
    %v5499 = vunpack.c.l.b16 %v4200
    %v5500 = vunpack.c.h.b16 %v4200
    %v5501 = vunpack.c.l.b16 %v4201
    %v5502 = vunpack.c.h.b16 %v4201
    %v5503 = vunpack.c.l.b16 %v4202
    %v5504 = vunpack.c.h.b16 %v4202
    %v5505 = vunpack.c.l.b16 %v4203
    %v5506 = vunpack.c.h.b16 %v4203
    %v5507 = vunpack.c.l.b16 %v4204
    %v5508 = vunpack.c.h.b16 %v4204
    %v5509 = vunpack.c.l.b16 %v4205
    %v5510 = vunpack.c.h.b16 %v4205
    %v5511 = vunpack.c.l.b16 %v4206
    %v5512 = vunpack.c.h.b16 %v4206
    %v5513 = vunpack.c.l.b16 %v4207
    %v5514 = vunpack.c.h.b16 %v4207
    %v5515 = vunpack.c.l.b16 %v4208
    %v5516 = vunpack.c.h.b16 %v4208
    %v5517 = vunpack.c.l.b16 %v4209
    %v5518 = vunpack.c.h.b16 %v4209
    %v5519 = vunpack.c.l.b16 %v4210
    %v5520 = vunpack.c.h.b16 %v4210
    %v5521 = vunpack.c.l.b16 %v4211
    %v5522 = vunpack.c.h.b16 %v4211
    %v5523 = vunpack.c.l.b16 %v4212
    %v5524 = vunpack.c.h.b16 %v4212
    %v5525 = vunpack.c.l.b16 %v4213
    %v5526 = vunpack.c.h.b16 %v4213
    %v5527 = vunpack.c.l.b16 %v4214
    %v5528 = vunpack.c.h.b16 %v4214
    %v5529 = vunpack.c.l.b16 %v4215
    %v5530 = vunpack.c.h.b16 %v4215
    %v5531 = vunpack.c.l.b16 %v4216
    %v5532 = vunpack.c.h.b16 %v4216
    %v5533 = vunpack.c.l.b16 %v4217
    %v5534 = vunpack.c.h.b16 %v4217
    %v5535 = vunpack.c.l.b16 %v4218
    %v5536 = vunpack.c.h.b16 %v4218
    %v5537 = vunpack.c.l.b16 %v4219
    %v5538 = vunpack.c.h.b16 %v4219
    %v5539 = vunpack.c.l.b16 %v4220
    %v5540 = vunpack.c.h.b16 %v4220
    %v5541 = vunpack.c.l.b16 %v4221
    %v5542 = vunpack.c.h.b16 %v4221
    %v5543 = vunpack.c.l.b16 %v4222
    %v5544 = vunpack.c.h.b16 %v4222
    %v5545 = vunpack.c.l.b16 %v4223
    %v5546 = vunpack.c.h.b16 %v4223
    %v5547 = vunpack.c.l.b16 %v4224
    %v5548 = vunpack.c.h.b16 %v4224
    %v5549 = vunpack.c.l.b16 %v4225
    %v5550 = vunpack.c.h.b16 %v4225
    %v5551 = vunpack.c.l.b16 %v4226
    %v5552 = vunpack.c.h.b16 %v4226
    %v5553 = vunpack.c.l.b16 %v4227
    %v5554 = vunpack.c.h.b16 %v4227
    %v5555 = vunpack.c.l.b16 %v4228
    %v5556 = vunpack.c.h.b16 %v4228
    %v5557 = vunpack.c.l.b16 %v4229
    %v5558 = vunpack.c.h.b16 %v4229
    %v5559 = vunpack.c.l.b16 %v4230
    %v5560 = vunpack.c.h.b16 %v4230
    %v5561 = vunpack.c.l.b16 %v4231
    %v5562 = vunpack.c.h.b16 %v4231
    %v5563 = vunpack.c.l.b16 %v4232
    %v5564 = vunpack.c.h.b16 %v4232
    %v5565 = vunpack.c.l.b16 %v4233
    %v5566 = vunpack.c.h.b16 %v4233
    %v5567 = vunpack.c.l.b16 %v4234
    %v5568 = vunpack.c.h.b16 %v4234
    %v5569 = vunpack.c.l.b16 %v4235
    %v5570 = vunpack.c.h.b16 %v4235
    %v5571 = vunpack.c.l.b16 %v4236
    %v5572 = vunpack.c.h.b16 %v4236
    %v5573 = vunpack.c.l.b16 %v4237
    %v5574 = vunpack.c.h.b16 %v4237
    %v5575 = vunpack.c.l.b16 %v4238
    %v5576 = vunpack.c.h.b16 %v4238
    %v5577 = vunpack.c.l.b16 %v4239
    %v5578 = vunpack.c.h.b16 %v4239
    %v5579 = vunpack.c.l.b16 %v4240
    %v5580 = vunpack.c.h.b16 %v4240
    %v5581 = vunpack.c.l.b16 %v4241
    %v5582 = vunpack.c.h.b16 %v4241
    %v5583 = vunpack.c.l.b16 %v4242
    %v5584 = vunpack.c.h.b16 %v4242
    %v5585 = vunpack.c.l.b16 %v4243
    %v5586 = vunpack.c.h.b16 %v4243
    %v5587 = vunpack.c.l.b16 %v4244
    %v5588 = vunpack.c.h.b16 %v4244
    %v5589 = vunpack.c.l.b16 %v4245
    %v5590 = vunpack.c.h.b16 %v4245
    %v5591 = vunpack.c.l.b16 %v4246
    %v5592 = vunpack.c.h.b16 %v4246
    %v5593 = vunpack.c.l.b16 %v4247
    %v5594 = vunpack.c.h.b16 %v4247
    %v5595 = vunpack.c.l.b16 %v4248
    %v5596 = vunpack.c.h.b16 %v4248
    %v5597 = vunpack.c.l.b16 %v4249
    %v5598 = vunpack.c.h.b16 %v4249
    %v5599 = vunpack.c.l.b16 %v4250
    %v5600 = vunpack.c.h.b16 %v4250
    %v5601 = vunpack.c.l.b16 %v4251
    %v5602 = vunpack.c.h.b16 %v4251
    %v5603 = vunpack.c.l.b16 %v4252
    %v5604 = vunpack.c.h.b16 %v4252
    %v5605 = vunpack.c.l.b16 %v4253
    %v5606 = vunpack.c.h.b16 %v4253
    %v5607 = vunpack.c.l.b16 %v4254
    %v5608 = vunpack.c.h.b16 %v4254
    %v5609 = vunpack.c.l.b16 %v4255
    %v5610 = vunpack.c.h.b16 %v4255
    %v5611 = vunpack.c.l.b16 %v4256
    %v5612 = vunpack.c.h.b16 %v4256
    %v5613 = vunpack.c.l.b16 %v4257
    %v5614 = vunpack.c.h.b16 %v4257
    %v5615 = vunpack.c.l.b16 %v4258
    %v5616 = vunpack.c.h.b16 %v4258
    %v5617 = vunpack.c.l.b16 %v4259
    %v5618 = vunpack.c.h.b16 %v4259
    %v5619 = vunpack.c.l.b16 %v4260
    %v5620 = vunpack.c.h.b16 %v4260
    %v5621 = vunpack.c.l.b16 %v4261
    %v5622 = vunpack.c.h.b16 %v4261
    %v5623 = vunpack.c.l.b16 %v4262
    %v5624 = vunpack.c.h.b16 %v4262
    %v5625 = vunpack.c.l.b16 %v4263
    %v5626 = vunpack.c.h.b16 %v4263
    %v5627 = vunpack.c.l.b16 %v4264
    %v5628 = vunpack.c.h.b16 %v4264
    %v5629 = vunpack.c.l.b16 %v4265
    %v5630 = vunpack.c.h.b16 %v4265
    %v5631 = vunpack.c.l.b16 %v4266
    %v5632 = vunpack.c.h.b16 %v4266
    %v5633 = vunpack.c.l.b16 %v4267
    %v5634 = vunpack.c.h.b16 %v4267
    %v5635 = vunpack.c.l.b16 %v4268
    %v5636 = vunpack.c.h.b16 %v4268
    %v5637 = vunpack.c.l.b16 %v4269
    %v5638 = vunpack.c.h.b16 %v4269
    %v5639 = vunpack.c.l.b16 %v4270
    %v5640 = vunpack.c.h.b16 %v4270
    %v5641 = vunpack.c.l.b16 %v4271
    %v5642 = vunpack.c.h.b16 %v4271
    %v5643 = vunpack.c.l.b16 %v4272
    %v5644 = vunpack.c.h.b16 %v4272
    %v5645 = vunpack.c.l.b16 %v4273
    %v5646 = vunpack.c.h.b16 %v4273
    %v5647 = vunpack.c.l.b16 %v4274
    %v5648 = vunpack.c.h.b16 %v4274
    %v5649 = vunpack.c.l.b16 %v4275
    %v5650 = vunpack.c.h.b16 %v4275
    %v5651 = vunpack.c.l.b16 %v4276
    %v5652 = vunpack.c.h.b16 %v4276
    %v5653 = vunpack.c.l.b16 %v4277
    %v5654 = vunpack.c.h.b16 %v4277
    %v5655 = vunpack.c.l.b16 %v4278
    %v5656 = vunpack.c.h.b16 %v4278
    %v5657 = vunpack.c.l.b16 %v4279
    %v5658 = vunpack.c.h.b16 %v4279
    %v5659 = vunpack.c.l.b16 %v4280
    %v5660 = vunpack.c.h.b16 %v4280
    %v5661 = vunpack.c.l.b16 %v4281
    %v5662 = vunpack.c.h.b16 %v4281
    %v5663 = vunpack.c.l.b16 %v4282
    %v5664 = vunpack.c.h.b16 %v4282
    %v5665 = vunpack.c.l.b16 %v4283
    %v5666 = vunpack.c.h.b16 %v4283
    %v5667 = vunpack.c.l.b16 %v4284
    %v5668 = vunpack.c.h.b16 %v4284
    %v5669 = vunpack.c.l.b16 %v4285
    %v5670 = vunpack.c.h.b16 %v4285
    %v5671 = vunpack.c.l.b16 %v4286
    %v5672 = vunpack.c.h.b16 %v4286
    %v5673 = vunpack.c.l.b16 %v4287
    %v5674 = vunpack.c.h.b16 %v4287
    %v5675 = vunpack.c.l.b16 %v4288
    %v5676 = vunpack.c.h.b16 %v4288
    %v5677 = vunpack.c.l.b16 %v4289
    %v5678 = vunpack.c.h.b16 %v4289
    %v5679 = vunpack.c.l.b16 %v4290
    %v5680 = vunpack.c.h.b16 %v4290
    %v5681 = vunpack.c.l.b16 %v4291
    %v5682 = vunpack.c.h.b16 %v4291
    %v5683 = vunpack.c.l.b16 %v4292
    %v5684 = vunpack.c.h.b16 %v4292
    %v5685 = vunpack.c.l.b16 %v4293
    %v5686 = vunpack.c.h.b16 %v4293
    %v5687 = vunpack.c.l.b16 %v4294
    %v5688 = vunpack.c.h.b16 %v4294
    %v5689 = vunpack.c.l.b16 %v4295
    %v5690 = vunpack.c.h.b16 %v4295
    %v5691 = vunpack.c.l.b16 %v4296
    %v5692 = vunpack.c.h.b16 %v4296
    %v5693 = vunpack.c.l.b16 %v4297
    %v5694 = vunpack.c.h.b16 %v4297
    %v5695 = vunpack.c.l.b16 %v4298
    %v5696 = vunpack.c.h.b16 %v4298
    %v5697 = vunpack.c.l.b16 %v4299
    %v5698 = vunpack.c.h.b16 %v4299
    %v5699 = vunpack.c.l.b16 %v4300
    %v5700 = vunpack.c.h.b16 %v4300
    %v5701 = vunpack.c.l.b16 %v4301
    %v5702 = vunpack.c.h.b16 %v4301
    %v5703 = vunpack.c.l.b16 %v4302
    %v5704 = vunpack.c.h.b16 %v4302
    %v5705 = vunpack.c.l.b16 %v4303
    %v5706 = vunpack.c.h.b16 %v4303
    %v5707 = vunpack.c.l.b16 %v4304
    %v5708 = vunpack.c.h.b16 %v4304
    %v5709 = vunpack.c.l.b16 %v4305
    %v5710 = vunpack.c.h.b16 %v4305
    %v5711 = vunpack.c.l.b16 %v4306
    %v5712 = vunpack.c.h.b16 %v4306
    %v5713 = vunpack.c.l.b16 %v4307
    %v5714 = vunpack.c.h.b16 %v4307
    %v5715 = vunpack.c.l.b16 %v4308
    %v5716 = vunpack.c.h.b16 %v4308
    %v5717 = vunpack.c.l.b16 %v4309
    %v5718 = vunpack.c.h.b16 %v4309
    %v5719 = vunpack.c.l.b16 %v4310
    %v5720 = vunpack.c.h.b16 %v4310
    %v5721 = vunpack.c.l.b16 %v4311
    %v5722 = vunpack.c.h.b16 %v4311
    %v5723 = vunpack.c.l.b16 %v4312
    %v5724 = vunpack.c.h.b16 %v4312
    %v5725 = vunpack.c.l.b16 %v4313
    %v5726 = vunpack.c.h.b16 %v4313
    %v5727 = vunpack.c.l.b16 %v4314
    %v5728 = vunpack.c.h.b16 %v4314
    %v5729 = vunpack.c.l.b16 %v4315
    %v5730 = vunpack.c.h.b16 %v4315
    %v5731 = vunpack.c.l.b16 %v4316
    %v5732 = vunpack.c.h.b16 %v4316
    %v5733 = vunpack.c.l.b16 %v4317
    %v5734 = vunpack.c.h.b16 %v4317
    %v5735 = vunpack.c.l.b16 %v4318
    %v5736 = vunpack.c.h.b16 %v4318
    %v5737 = vunpack.c.l.b16 %v4319
    %v5738 = vunpack.c.h.b16 %v4319
    %v5739 = vunpack.c.l.b16 %v4320
    %v5740 = vunpack.c.h.b16 %v4320
    %v5741 = vunpack.c.l.b16 %v4321
    %v5742 = vunpack.c.h.b16 %v4321
    %v5743 = vunpack.c.l.b16 %v4322
    %v5744 = vunpack.c.h.b16 %v4322
    %v5745 = vunpack.c.l.b16 %v4323
    %v5746 = vunpack.c.h.b16 %v4323
    %v5747 = vunpack.c.l.b16 %v4324
    %v5748 = vunpack.c.h.b16 %v4324
    %v5749 = vunpack.c.l.b16 %v4325
    %v5750 = vunpack.c.h.b16 %v4325
    %v5751 = vunpack.c.l.b16 %v4326
    %v5752 = vunpack.c.h.b16 %v4326
    %v5753 = vunpack.c.l.b16 %v4327
    %v5754 = vunpack.c.h.b16 %v4327
    %v5755 = vunpack.c.l.b16 %v4328
    %v5756 = vunpack.c.h.b16 %v4328
    %v5757 = vunpack.c.l.b16 %v4329
    %v5758 = vunpack.c.h.b16 %v4329
    %v5759 = vunpack.c.l.b16 %v4330
    %v5760 = vunpack.c.h.b16 %v4330
    %v5761 = vunpack.c.l.b16 %v4331
    %v5762 = vunpack.c.h.b16 %v4331
    %v5763 = vunpack.c.l.b16 %v4332
    %v5764 = vunpack.c.h.b16 %v4332
    %v5765 = vunpack.c.l.b16 %v4333
    %v5766 = vunpack.c.h.b16 %v4333
    %v5767 = vunpack.c.l.b16 %v4334
    %v5768 = vunpack.c.h.b16 %v4334
    %v5769 = vunpack.c.l.b16 %v4335
    %v5770 = vunpack.c.h.b16 %v4335
    %v5771 = vunpack.c.l.b16 %v4336
    %v5772 = vunpack.c.h.b16 %v4336
    %v5773 = vunpack.c.l.b16 %v4337
    %v5774 = vunpack.c.h.b16 %v4337
    %v5775 = vunpack.c.l.b16 %v4338
    %v5776 = vunpack.c.h.b16 %v4338
    %v5777 = vunpack.c.l.b16 %v4339
    %v5778 = vunpack.c.h.b16 %v4339
    %v5779 = vunpack.c.l.b16 %v4340
    %v5780 = vunpack.c.h.b16 %v4340
    %v5781 = vunpack.c.l.b16 %v4341
    %v5782 = vunpack.c.h.b16 %v4341
    %v5783 = vunpack.c.l.b16 %v4342
    %v5784 = vunpack.c.h.b16 %v4342
    %v5785 = vunpack.c.l.b16 %v4343
    %v5786 = vunpack.c.h.b16 %v4343
    %v5787 = vunpack.c.l.b16 %v4344
    %v5788 = vunpack.c.h.b16 %v4344
    %v5789 = vunpack.c.l.b16 %v4345
    %v5790 = vunpack.c.h.b16 %v4345
    %v5791 = vunpack.c.l.b16 %v4346
    %v5792 = vunpack.c.h.b16 %v4346
    %v5793 = vunpack.c.l.b16 %v4347
    %v5794 = vunpack.c.h.b16 %v4347
    %v5795 = vunpack.c.l.b16 %v4348
    %v5796 = vunpack.c.h.b16 %v4348
    %v5797 = vunpack.c.l.b16 %v4349
    %v5798 = vunpack.c.h.b16 %v4349
    %v5799 = vunpack.c.l.b16 %v4350
    %v5800 = vunpack.c.h.b16 %v4350
    %v5801 = vunpack.c.l.b16 %v4351
    %v5802 = vunpack.c.h.b16 %v4351
    %v5803 = vunpack.c.l.b16 %v4352
    %v5804 = vunpack.c.h.b16 %v4352
    %v5805 = vunpack.c.l.b16 %v4353
    %v5806 = vunpack.c.h.b16 %v4353
    %v5807 = vunpack.c.l.b16 %v4354
    %v5808 = vunpack.c.h.b16 %v4354
    %v5809 = vunpack.c.l.b16 %v4355
    %v5810 = vunpack.c.h.b16 %v4355
    %v5811 = vunpack.c.l.b16 %v4356
    %v5812 = vunpack.c.h.b16 %v4356
    %v5813 = vunpack.c.l.b16 %v4357
    %v5814 = vunpack.c.h.b16 %v4357
    %v5815 = vunpack.c.l.b16 %v4358
    %v5816 = vunpack.c.h.b16 %v4358
    %v5817 = vunpack.c.l.b16 %v4359
    %v5818 = vunpack.c.h.b16 %v4359
    %v5819 = vunpack.c.l.b16 %v4360
    %v5820 = vunpack.c.h.b16 %v4360
    %v5821 = vunpack.c.l.b16 %v4361
    %v5822 = vunpack.c.h.b16 %v4361
    %v5823 = vunpack.c.l.b16 %v4362
    %v5824 = vunpack.c.h.b16 %v4362
    %v5825 = vunpack.c.l.b16 %v4363
    %v5826 = vunpack.c.h.b16 %v4363
    %v5827 = vunpack.c.l.b16 %v4364
    %v5828 = vunpack.c.h.b16 %v4364
    %v5829 = vunpack.c.l.b16 %v4365
    %v5830 = vunpack.c.h.b16 %v4365
    %v5831 = vunpack.c.l.b16 %v4366
    %v5832 = vunpack.c.h.b16 %v4366
    %v5833 = vunpack.c.l.b16 %v4367
    %v5834 = vunpack.c.h.b16 %v4367
    %v5835 = vunpack.c.l.b16 %v4368
    %v5836 = vunpack.c.h.b16 %v4368
    %v5837 = vunpack.c.l.b16 %v4369
    %v5838 = vunpack.c.h.b16 %v4369
    %v5839 = vunpack.c.l.b16 %v4370
    %v5840 = vunpack.c.h.b16 %v4370
    %v5841 = vunpack.c.l.b16 %v4371
    %v5842 = vunpack.c.h.b16 %v4371
    %v5843 = vunpack.c.l.b16 %v4372
    %v5844 = vunpack.c.h.b16 %v4372
    %v5845 = vunpack.c.l.b16 %v4373
    %v5846 = vunpack.c.h.b16 %v4373
    %v5847 = vunpack.c.l.b16 %v4374
    %v5848 = vunpack.c.h.b16 %v4374
    %v5849 = vunpack.c.l.b16 %v4375
    %v5850 = vunpack.c.h.b16 %v4375
    %v5851 = vunpack.c.l.b16 %v4376
    %v5852 = vunpack.c.h.b16 %v4376
    %v5853 = vunpack.c.l.b16 %v4377
    %v5854 = vunpack.c.h.b16 %v4377
    %v5855 = vunpack.c.l.b16 %v4378
    %v5856 = vunpack.c.h.b16 %v4378
    %v5857 = vunpack.c.l.b16 %v4379
    %v5858 = vunpack.c.h.b16 %v4379
    %v5859 = vunpack.c.l.b16 %v4380
    %v5860 = vunpack.c.h.b16 %v4380
    %v5861 = vunpack.c.l.b16 %v4381
    %v5862 = vunpack.c.h.b16 %v4381
    %v5863 = vunpack.c.l.b16 %v4382
    %v5864 = vunpack.c.h.b16 %v4382
    %v5865 = vunpack.c.l.b16 %v4383
    %v5866 = vunpack.c.h.b16 %v4383
    %v5867 = vunpack.c.l.b16 %v4384
    %v5868 = vunpack.c.h.b16 %v4384
    %v5869 = vunpack.c.l.b16 %v4385
    %v5870 = vunpack.c.h.b16 %v4385
    %v5871 = vunpack.c.l.b16 %v4386
    %v5872 = vunpack.c.h.b16 %v4386
    %v5873 = vunpack.c.l.b16 %v4387
    %v5874 = vunpack.c.h.b16 %v4387
    %v5875 = vunpack.c.l.b16 %v4388
    %v5876 = vunpack.c.h.b16 %v4388
    %v5877 = vunpack.c.l.b16 %v4389
    %v5878 = vunpack.c.h.b16 %v4389
    %v5879 = vunpack.c.l.b16 %v4390
    %v5880 = vunpack.c.h.b16 %v4390
    %v5881 = vunpack.c.l.b16 %v4391
    %v5882 = vunpack.c.h.b16 %v4391
    %v5883 = vunpack.c.l.b16 %v4392
    %v5884 = vunpack.c.h.b16 %v4392
    %v5885 = vunpack.c.l.b16 %v4393
    %v5886 = vunpack.c.h.b16 %v4393
    %v5887 = vunpack.c.l.b16 %v4394
    %v5888 = vunpack.c.h.b16 %v4394
    %v5889 = vunpack.c.l.b16 %v4395
    %v5890 = vunpack.c.h.b16 %v4395
    %v5891 = vunpack.c.l.b16 %v4396
    %v5892 = vunpack.c.h.b16 %v4396
    %v5893 = vunpack.c.l.b16 %v4397
    %v5894 = vunpack.c.h.b16 %v4397
    %v5895 = vunpack.c.l.b16 %v4398
    %v5896 = vunpack.c.h.b16 %v4398
    %v5897 = vunpack.c.l.b16 %v4399
    %v5898 = vunpack.c.h.b16 %v4399
    %v5899 = vunpack.c.l.b16 %v4400
    %v5900 = vunpack.c.h.b16 %v4400
    %v5901 = vunpack.c.l.b16 %v4401
    %v5902 = vunpack.c.h.b16 %v4401
    %v5903 = vunpack.c.l.b16 %v4402
    %v5904 = vunpack.c.h.b16 %v4402
    %v5905 = vunpack.c.l.b16 %v4403
    %v5906 = vunpack.c.h.b16 %v4403
    %v5907 = vunpack.c.l.b16 %v4404
    %v5908 = vunpack.c.h.b16 %v4404
    %v5909 = vunpack.c.l.b16 %v4405
    %v5910 = vunpack.c.h.b16 %v4405
    %v5911 = vunpack.c.l.b16 %v4406
    %v5912 = vunpack.c.h.b16 %v4406
    %v5913 = vunpack.c.l.b16 %v4407
    %v5914 = vunpack.c.h.b16 %v4407
    %v5915 = vunpack.c.l.b16 %v4408
    %v5916 = vunpack.c.h.b16 %v4408
    %v5917 = vunpack.c.l.b16 %v4409
    %v5918 = vunpack.c.h.b16 %v4409
    %v5919 = vunpack.c.l.b16 %v4410
    %v5920 = vunpack.c.h.b16 %v4410
    %v5921 = vunpack.c.l.b16 %v4411
    %v5922 = vunpack.c.h.b16 %v4411
    %v5923 = vunpack.c.l.b16 %v4412
    %v5924 = vunpack.c.h.b16 %v4412
    %v5925 = vunpack.c.l.b16 %v4413
    %v5926 = vunpack.c.h.b16 %v4413
    %v5927 = vunpack.c.l.b16 %v4414
    %v5928 = vunpack.c.h.b16 %v4414
    %v5929 = vunpack.c.l.b16 %v4415
    %v5930 = vunpack.c.h.b16 %v4415
    %v5931 = vunpack.c.l.b16 %v4416
    %v5932 = vunpack.c.h.b16 %v4416
    %v5933 = vunpack.c.l.b16 %v4417
    %v5934 = vunpack.c.h.b16 %v4417
    %v5935 = vunpack.c.l.b16 %v4418
    %v5936 = vunpack.c.h.b16 %v4418
    %v5937 = vunpack.c.l.b16 %v4419
    %v5938 = vunpack.c.h.b16 %v4419
    %v5939 = vunpack.c.l.b16 %v4420
    %v5940 = vunpack.c.h.b16 %v4420
    %v5941 = vunpack.c.l.b16 %v4421
    %v5942 = vunpack.c.h.b16 %v4421
    %v5943 = vunpack.c.l.b16 %v4422
    %v5944 = vunpack.c.h.b16 %v4422
    %v5945 = vunpack.c.l.b16 %v4423
    %v5946 = vunpack.c.h.b16 %v4423
    %v5947 = vunpack.c.l.b16 %v4424
    %v5948 = vunpack.c.h.b16 %v4424
    %v5949 = vunpack.c.l.b16 %v4425
    %v5950 = vunpack.c.h.b16 %v4425
    %v5951 = vunpack.c.l.b16 %v4426
    %v5952 = vunpack.c.h.b16 %v4426
    %v5953 = vunpack.c.l.b16 %v4427
    %v5954 = vunpack.c.h.b16 %v4427
    %v5955 = vunpack.c.l.b16 %v4428
    %v5956 = vunpack.c.h.b16 %v4428
    %v5957 = vunpack.c.l.b16 %v4429
    %v5958 = vunpack.c.h.b16 %v4429
    %v5959 = vunpack.c.l.b16 %v4430
    %v5960 = vunpack.c.h.b16 %v4430
    %v5961 = vunpack.c.l.b16 %v4431
    %v5962 = vunpack.c.h.b16 %v4431
    %v5963 = vunpack.c.l.b16 %v4432
    %v5964 = vunpack.c.h.b16 %v4432
    %v5965 = vunpack.c.l.b16 %v4433
    %v5966 = vunpack.c.h.b16 %v4433
    %v5967 = vunpack.c.l.b16 %v4434
    %v5968 = vunpack.c.h.b16 %v4434
    %v5969 = vunpack.c.l.b16 %v4435
    %v5970 = vunpack.c.h.b16 %v4435
    %v5971 = vunpack.c.l.b16 %v4436
    %v5972 = vunpack.c.h.b16 %v4436
    %v5973 = vpack.c.b16 %v4957, %v4949
    %v5974 = vpack.c.b16 %v4958, %v4950
    %v5975 = vpack.c.b16 %v4959, %v4951
    %v5976 = vpack.c.b16 %v4960, %v4952
    %v5977 = vpack.c.b16 %v4961, %v4953
    %v5978 = vpack.c.b16 %v4962, %v4954
    %v5979 = vpack.c.b16 %v4963, %v4955
    %v5980 = vpack.c.b16 %v4964, %v4956
    %v5981 = vpack.c.b16 %v4973, %v4965
    %v5982 = vpack.c.b16 %v4974, %v4966
    %v5983 = vpack.c.b16 %v4975, %v4967
    %v5984 = vpack.c.b16 %v4976, %v4968
    %v5985 = vpack.c.b16 %v4977, %v4969
    %v5986 = vpack.c.b16 %v4978, %v4970
    %v5987 = vpack.c.b16 %v4979, %v4971
    %v5988 = vpack.c.b16 %v4980, %v4972
    %v5989 = vpack.c.b16 %v4989, %v4981
    %v5990 = vpack.c.b16 %v4990, %v4982
    %v5991 = vpack.c.b16 %v4991, %v4983
    %v5992 = vpack.c.b16 %v4992, %v4984
    %v5993 = vpack.c.b16 %v4993, %v4985
    %v5994 = vpack.c.b16 %v4994, %v4986
    %v5995 = vpack.c.b16 %v4995, %v4987
    %v5996 = vpack.c.b16 %v4996, %v4988
    %v5997 = vpack.c.b16 %v5005, %v4997
    %v5998 = vpack.c.b16 %v5006, %v4998
    %v5999 = vpack.c.b16 %v5007, %v4999
    %v6000 = vpack.c.b16 %v5008, %v5000
    %v6001 = vpack.c.b16 %v5009, %v5001
    %v6002 = vpack.c.b16 %v5010, %v5002
    %v6003 = vpack.c.b16 %v5011, %v5003
    %v6004 = vpack.c.b16 %v5012, %v5004
    %v6005 = vpack.c.b16 %v5021, %v5013
    %v6006 = vpack.c.b16 %v5022, %v5014
    %v6007 = vpack.c.b16 %v5023, %v5015
    %v6008 = vpack.c.b16 %v5024, %v5016
    %v6009 = vpack.c.b16 %v5025, %v5017
    %v6010 = vpack.c.b16 %v5026, %v5018
    %v6011 = vpack.c.b16 %v5027, %v5019
    %v6012 = vpack.c.b16 %v5028, %v5020
    %v6013 = vpack.c.b16 %v5037, %v5029
    %v6014 = vpack.c.b16 %v5038, %v5030
    %v6015 = vpack.c.b16 %v5039, %v5031
    %v6016 = vpack.c.b16 %v5040, %v5032
    %v6017 = vpack.c.b16 %v5041, %v5033
    %v6018 = vpack.c.b16 %v5042, %v5034
    %v6019 = vpack.c.b16 %v5043, %v5035
    %v6020 = vpack.c.b16 %v5044, %v5036
    %v6021 = vpack.c.b16 %v5053, %v5045
    %v6022 = vpack.c.b16 %v5054, %v5046
    %v6023 = vpack.c.b16 %v5055, %v5047
    %v6024 = vpack.c.b16 %v5056, %v5048
    %v6025 = vpack.c.b16 %v5057, %v5049
    %v6026 = vpack.c.b16 %v5058, %v5050
    %v6027 = vpack.c.b16 %v5059, %v5051
    %v6028 = vpack.c.b16 %v5060, %v5052
    %v6029 = vpack.c.b16 %v5069, %v5061
    %v6030 = vpack.c.b16 %v5070, %v5062
    %v6031 = vpack.c.b16 %v5071, %v5063
    %v6032 = vpack.c.b16 %v5072, %v5064
    %v6033 = vpack.c.b16 %v5073, %v5065
    %v6034 = vpack.c.b16 %v5074, %v5066
    %v6035 = vpack.c.b16 %v5075, %v5067
    %v6036 = vpack.c.b16 %v5076, %v5068
    %v6037 = vpack.c.b16 %v5085, %v5077
    %v6038 = vpack.c.b16 %v5086, %v5078
    %v6039 = vpack.c.b16 %v5087, %v5079
    %v6040 = vpack.c.b16 %v5088, %v5080
    %v6041 = vpack.c.b16 %v5089, %v5081
    %v6042 = vpack.c.b16 %v5090, %v5082
    %v6043 = vpack.c.b16 %v5091, %v5083
    %v6044 = vpack.c.b16 %v5092, %v5084
    %v6045 = vpack.c.b16 %v5101, %v5093
    %v6046 = vpack.c.b16 %v5102, %v5094
    %v6047 = vpack.c.b16 %v5103, %v5095
    %v6048 = vpack.c.b16 %v5104, %v5096
    %v6049 = vpack.c.b16 %v5105, %v5097
    %v6050 = vpack.c.b16 %v5106, %v5098
    %v6051 = vpack.c.b16 %v5107, %v5099
    %v6052 = vpack.c.b16 %v5108, %v5100
    %v6053 = vpack.c.b16 %v5117, %v5109
    %v6054 = vpack.c.b16 %v5118, %v5110
    %v6055 = vpack.c.b16 %v5119, %v5111
    %v6056 = vpack.c.b16 %v5120, %v5112
    %v6057 = vpack.c.b16 %v5121, %v5113
    %v6058 = vpack.c.b16 %v5122, %v5114
    %v6059 = vpack.c.b16 %v5123, %v5115
    %v6060 = vpack.c.b16 %v5124, %v5116
    %v6061 = vpack.c.b16 %v5133, %v5125
    %v6062 = vpack.c.b16 %v5134, %v5126
    %v6063 = vpack.c.b16 %v5135, %v5127
    %v6064 = vpack.c.b16 %v5136, %v5128
    %v6065 = vpack.c.b16 %v5137, %v5129
    %v6066 = vpack.c.b16 %v5138, %v5130
    %v6067 = vpack.c.b16 %v5139, %v5131
    %v6068 = vpack.c.b16 %v5140, %v5132
    %v6069 = vpack.c.b16 %v5149, %v5141
    %v6070 = vpack.c.b16 %v5150, %v5142
    %v6071 = vpack.c.b16 %v5151, %v5143
    %v6072 = vpack.c.b16 %v5152, %v5144
    %v6073 = vpack.c.b16 %v5153, %v5145
    %v6074 = vpack.c.b16 %v5154, %v5146
    %v6075 = vpack.c.b16 %v5155, %v5147
    %v6076 = vpack.c.b16 %v5156, %v5148
    %v6077 = vpack.c.b16 %v5165, %v5157
    %v6078 = vpack.c.b16 %v5166, %v5158
    %v6079 = vpack.c.b16 %v5167, %v5159
    %v6080 = vpack.c.b16 %v5168, %v5160
    %v6081 = vpack.c.b16 %v5169, %v5161
    %v6082 = vpack.c.b16 %v5170, %v5162
    %v6083 = vpack.c.b16 %v5171, %v5163
    %v6084 = vpack.c.b16 %v5172, %v5164
    %v6085 = vpack.c.b16 %v5181, %v5173
    %v6086 = vpack.c.b16 %v5182, %v5174
    %v6087 = vpack.c.b16 %v5183, %v5175
    %v6088 = vpack.c.b16 %v5184, %v5176
    %v6089 = vpack.c.b16 %v5185, %v5177
    %v6090 = vpack.c.b16 %v5186, %v5178
    %v6091 = vpack.c.b16 %v5187, %v5179
    %v6092 = vpack.c.b16 %v5188, %v5180
    %v6093 = vpack.c.b16 %v5197, %v5189
    %v6094 = vpack.c.b16 %v5198, %v5190
    %v6095 = vpack.c.b16 %v5199, %v5191
    %v6096 = vpack.c.b16 %v5200, %v5192
    %v6097 = vpack.c.b16 %v5201, %v5193
    %v6098 = vpack.c.b16 %v5202, %v5194
    %v6099 = vpack.c.b16 %v5203, %v5195
    %v6100 = vpack.c.b16 %v5204, %v5196
    %v6101 = vpack.c.b16 %v5213, %v5205
    %v6102 = vpack.c.b16 %v5214, %v5206
    %v6103 = vpack.c.b16 %v5215, %v5207
    %v6104 = vpack.c.b16 %v5216, %v5208
    %v6105 = vpack.c.b16 %v5217, %v5209
    %v6106 = vpack.c.b16 %v5218, %v5210
    %v6107 = vpack.c.b16 %v5219, %v5211
    %v6108 = vpack.c.b16 %v5220, %v5212
    %v6109 = vpack.c.b16 %v5229, %v5221
    %v6110 = vpack.c.b16 %v5230, %v5222
    %v6111 = vpack.c.b16 %v5231, %v5223
    %v6112 = vpack.c.b16 %v5232, %v5224
    %v6113 = vpack.c.b16 %v5233, %v5225
    %v6114 = vpack.c.b16 %v5234, %v5226
    %v6115 = vpack.c.b16 %v5235, %v5227
    %v6116 = vpack.c.b16 %v5236, %v5228
    %v6117 = vpack.c.b16 %v5245, %v5237
    %v6118 = vpack.c.b16 %v5246, %v5238
    %v6119 = vpack.c.b16 %v5247, %v5239
    %v6120 = vpack.c.b16 %v5248, %v5240
    %v6121 = vpack.c.b16 %v5249, %v5241
    %v6122 = vpack.c.b16 %v5250, %v5242
    %v6123 = vpack.c.b16 %v5251, %v5243
    %v6124 = vpack.c.b16 %v5252, %v5244
    %v6125 = vpack.c.b16 %v5261, %v5253
    %v6126 = vpack.c.b16 %v5262, %v5254
    %v6127 = vpack.c.b16 %v5263, %v5255
    %v6128 = vpack.c.b16 %v5264, %v5256
    %v6129 = vpack.c.b16 %v5265, %v5257
    %v6130 = vpack.c.b16 %v5266, %v5258
    %v6131 = vpack.c.b16 %v5267, %v5259
    %v6132 = vpack.c.b16 %v5268, %v5260
    %v6133 = vpack.c.b16 %v5277, %v5269
    %v6134 = vpack.c.b16 %v5278, %v5270
    %v6135 = vpack.c.b16 %v5279, %v5271
    %v6136 = vpack.c.b16 %v5280, %v5272
    %v6137 = vpack.c.b16 %v5281, %v5273
    %v6138 = vpack.c.b16 %v5282, %v5274
    %v6139 = vpack.c.b16 %v5283, %v5275
    %v6140 = vpack.c.b16 %v5284, %v5276
    %v6141 = vpack.c.b16 %v5293, %v5285
    %v6142 = vpack.c.b16 %v5294, %v5286
    %v6143 = vpack.c.b16 %v5295, %v5287
    %v6144 = vpack.c.b16 %v5296, %v5288
    %v6145 = vpack.c.b16 %v5297, %v5289
    %v6146 = vpack.c.b16 %v5298, %v5290
    %v6147 = vpack.c.b16 %v5299, %v5291
    %v6148 = vpack.c.b16 %v5300, %v5292
    %v6149 = vpack.c.b16 %v5309, %v5301
    %v6150 = vpack.c.b16 %v5310, %v5302
    %v6151 = vpack.c.b16 %v5311, %v5303
    %v6152 = vpack.c.b16 %v5312, %v5304
    %v6153 = vpack.c.b16 %v5313, %v5305
    %v6154 = vpack.c.b16 %v5314, %v5306
    %v6155 = vpack.c.b16 %v5315, %v5307
    %v6156 = vpack.c.b16 %v5316, %v5308
    %v6157 = vpack.c.b16 %v5325, %v5317
    %v6158 = vpack.c.b16 %v5326, %v5318
    %v6159 = vpack.c.b16 %v5327, %v5319
    %v6160 = vpack.c.b16 %v5328, %v5320
    %v6161 = vpack.c.b16 %v5329, %v5321
    %v6162 = vpack.c.b16 %v5330, %v5322
    %v6163 = vpack.c.b16 %v5331, %v5323
    %v6164 = vpack.c.b16 %v5332, %v5324
    %v6165 = vpack.c.b16 %v5341, %v5333
    %v6166 = vpack.c.b16 %v5342, %v5334
    %v6167 = vpack.c.b16 %v5343, %v5335
    %v6168 = vpack.c.b16 %v5344, %v5336
    %v6169 = vpack.c.b16 %v5345, %v5337
    %v6170 = vpack.c.b16 %v5346, %v5338
    %v6171 = vpack.c.b16 %v5347, %v5339
    %v6172 = vpack.c.b16 %v5348, %v5340
    %v6173 = vpack.c.b16 %v5357, %v5349
    %v6174 = vpack.c.b16 %v5358, %v5350
    %v6175 = vpack.c.b16 %v5359, %v5351
    %v6176 = vpack.c.b16 %v5360, %v5352
    %v6177 = vpack.c.b16 %v5361, %v5353
    %v6178 = vpack.c.b16 %v5362, %v5354
    %v6179 = vpack.c.b16 %v5363, %v5355
    %v6180 = vpack.c.b16 %v5364, %v5356
    %v6181 = vpack.c.b16 %v5373, %v5365
    %v6182 = vpack.c.b16 %v5374, %v5366
    %v6183 = vpack.c.b16 %v5375, %v5367
    %v6184 = vpack.c.b16 %v5376, %v5368
    %v6185 = vpack.c.b16 %v5377, %v5369
    %v6186 = vpack.c.b16 %v5378, %v5370
    %v6187 = vpack.c.b16 %v5379, %v5371
    %v6188 = vpack.c.b16 %v5380, %v5372
    %v6189 = vpack.c.b16 %v5389, %v5381
    %v6190 = vpack.c.b16 %v5390, %v5382
    %v6191 = vpack.c.b16 %v5391, %v5383
    %v6192 = vpack.c.b16 %v5392, %v5384
    %v6193 = vpack.c.b16 %v5393, %v5385
    %v6194 = vpack.c.b16 %v5394, %v5386
    %v6195 = vpack.c.b16 %v5395, %v5387
    %v6196 = vpack.c.b16 %v5396, %v5388
    %v6197 = vpack.c.b16 %v5405, %v5397
    %v6198 = vpack.c.b16 %v5406, %v5398
    %v6199 = vpack.c.b16 %v5407, %v5399
    %v6200 = vpack.c.b16 %v5408, %v5400
    %v6201 = vpack.c.b16 %v5409, %v5401
    %v6202 = vpack.c.b16 %v5410, %v5402
    %v6203 = vpack.c.b16 %v5411, %v5403
    %v6204 = vpack.c.b16 %v5412, %v5404
    %v6205 = vpack.c.b16 %v5421, %v5413
    %v6206 = vpack.c.b16 %v5422, %v5414
    %v6207 = vpack.c.b16 %v5423, %v5415
    %v6208 = vpack.c.b16 %v5424, %v5416
    %v6209 = vpack.c.b16 %v5425, %v5417
    %v6210 = vpack.c.b16 %v5426, %v5418
    %v6211 = vpack.c.b16 %v5427, %v5419
    %v6212 = vpack.c.b16 %v5428, %v5420
    %v6213 = vpack.c.b16 %v5437, %v5429
    %v6214 = vpack.c.b16 %v5438, %v5430
    %v6215 = vpack.c.b16 %v5439, %v5431
    %v6216 = vpack.c.b16 %v5440, %v5432
    %v6217 = vpack.c.b16 %v5441, %v5433
    %v6218 = vpack.c.b16 %v5442, %v5434
    %v6219 = vpack.c.b16 %v5443, %v5435
    %v6220 = vpack.c.b16 %v5444, %v5436
    %v6221 = vpack.c.b16 %v5453, %v5445
    %v6222 = vpack.c.b16 %v5454, %v5446
    %v6223 = vpack.c.b16 %v5455, %v5447
    %v6224 = vpack.c.b16 %v5456, %v5448
    %v6225 = vpack.c.b16 %v5457, %v5449
    %v6226 = vpack.c.b16 %v5458, %v5450
    %v6227 = vpack.c.b16 %v5459, %v5451
    %v6228 = vpack.c.b16 %v5460, %v5452
    %v6229 = vpack.c.b16 %v5469, %v5461
    %v6230 = vpack.c.b16 %v5470, %v5462
    %v6231 = vpack.c.b16 %v5471, %v5463
    %v6232 = vpack.c.b16 %v5472, %v5464
    %v6233 = vpack.c.b16 %v5473, %v5465
    %v6234 = vpack.c.b16 %v5474, %v5466
    %v6235 = vpack.c.b16 %v5475, %v5467
    %v6236 = vpack.c.b16 %v5476, %v5468
    %v6237 = vpack.c.b16 %v5485, %v5477
    %v6238 = vpack.c.b16 %v5486, %v5478
    %v6239 = vpack.c.b16 %v5487, %v5479
    %v6240 = vpack.c.b16 %v5488, %v5480
    %v6241 = vpack.c.b16 %v5489, %v5481
    %v6242 = vpack.c.b16 %v5490, %v5482
    %v6243 = vpack.c.b16 %v5491, %v5483
    %v6244 = vpack.c.b16 %v5492, %v5484
    %v6245 = vpack.c.b16 %v5501, %v5493
    %v6246 = vpack.c.b16 %v5502, %v5494
    %v6247 = vpack.c.b16 %v5503, %v5495
    %v6248 = vpack.c.b16 %v5504, %v5496
    %v6249 = vpack.c.b16 %v5505, %v5497
    %v6250 = vpack.c.b16 %v5506, %v5498
    %v6251 = vpack.c.b16 %v5507, %v5499
    %v6252 = vpack.c.b16 %v5508, %v5500
    %v6253 = vpack.c.b16 %v5517, %v5509
    %v6254 = vpack.c.b16 %v5518, %v5510
    %v6255 = vpack.c.b16 %v5519, %v5511
    %v6256 = vpack.c.b16 %v5520, %v5512
    %v6257 = vpack.c.b16 %v5521, %v5513
    %v6258 = vpack.c.b16 %v5522, %v5514
    %v6259 = vpack.c.b16 %v5523, %v5515
    %v6260 = vpack.c.b16 %v5524, %v5516
    %v6261 = vpack.c.b16 %v5533, %v5525
    %v6262 = vpack.c.b16 %v5534, %v5526
    %v6263 = vpack.c.b16 %v5535, %v5527
    %v6264 = vpack.c.b16 %v5536, %v5528
    %v6265 = vpack.c.b16 %v5537, %v5529
    %v6266 = vpack.c.b16 %v5538, %v5530
    %v6267 = vpack.c.b16 %v5539, %v5531
    %v6268 = vpack.c.b16 %v5540, %v5532
    %v6269 = vpack.c.b16 %v5549, %v5541
    %v6270 = vpack.c.b16 %v5550, %v5542
    %v6271 = vpack.c.b16 %v5551, %v5543
    %v6272 = vpack.c.b16 %v5552, %v5544
    %v6273 = vpack.c.b16 %v5553, %v5545
    %v6274 = vpack.c.b16 %v5554, %v5546
    %v6275 = vpack.c.b16 %v5555, %v5547
    %v6276 = vpack.c.b16 %v5556, %v5548
    %v6277 = vpack.c.b16 %v5565, %v5557
    %v6278 = vpack.c.b16 %v5566, %v5558
    %v6279 = vpack.c.b16 %v5567, %v5559
    %v6280 = vpack.c.b16 %v5568, %v5560
    %v6281 = vpack.c.b16 %v5569, %v5561
    %v6282 = vpack.c.b16 %v5570, %v5562
    %v6283 = vpack.c.b16 %v5571, %v5563
    %v6284 = vpack.c.b16 %v5572, %v5564
    %v6285 = vpack.c.b16 %v5581, %v5573
    %v6286 = vpack.c.b16 %v5582, %v5574
    %v6287 = vpack.c.b16 %v5583, %v5575
    %v6288 = vpack.c.b16 %v5584, %v5576
    %v6289 = vpack.c.b16 %v5585, %v5577
    %v6290 = vpack.c.b16 %v5586, %v5578
    %v6291 = vpack.c.b16 %v5587, %v5579
    %v6292 = vpack.c.b16 %v5588, %v5580
    %v6293 = vpack.c.b16 %v5597, %v5589
    %v6294 = vpack.c.b16 %v5598, %v5590
    %v6295 = vpack.c.b16 %v5599, %v5591
    %v6296 = vpack.c.b16 %v5600, %v5592
    %v6297 = vpack.c.b16 %v5601, %v5593
    %v6298 = vpack.c.b16 %v5602, %v5594
    %v6299 = vpack.c.b16 %v5603, %v5595
    %v6300 = vpack.c.b16 %v5604, %v5596
    %v6301 = vpack.c.b16 %v5613, %v5605
    %v6302 = vpack.c.b16 %v5614, %v5606
    %v6303 = vpack.c.b16 %v5615, %v5607
    %v6304 = vpack.c.b16 %v5616, %v5608
    %v6305 = vpack.c.b16 %v5617, %v5609
    %v6306 = vpack.c.b16 %v5618, %v5610
    %v6307 = vpack.c.b16 %v5619, %v5611
    %v6308 = vpack.c.b16 %v5620, %v5612
    %v6309 = vpack.c.b16 %v5629, %v5621
    %v6310 = vpack.c.b16 %v5630, %v5622
    %v6311 = vpack.c.b16 %v5631, %v5623
    %v6312 = vpack.c.b16 %v5632, %v5624
    %v6313 = vpack.c.b16 %v5633, %v5625
    %v6314 = vpack.c.b16 %v5634, %v5626
    %v6315 = vpack.c.b16 %v5635, %v5627
    %v6316 = vpack.c.b16 %v5636, %v5628
    %v6317 = vpack.c.b16 %v5645, %v5637
    %v6318 = vpack.c.b16 %v5646, %v5638
    %v6319 = vpack.c.b16 %v5647, %v5639
    %v6320 = vpack.c.b16 %v5648, %v5640
    %v6321 = vpack.c.b16 %v5649, %v5641
    %v6322 = vpack.c.b16 %v5650, %v5642
    %v6323 = vpack.c.b16 %v5651, %v5643
    %v6324 = vpack.c.b16 %v5652, %v5644
    %v6325 = vpack.c.b16 %v5661, %v5653
    %v6326 = vpack.c.b16 %v5662, %v5654
    %v6327 = vpack.c.b16 %v5663, %v5655
    %v6328 = vpack.c.b16 %v5664, %v5656
    %v6329 = vpack.c.b16 %v5665, %v5657
    %v6330 = vpack.c.b16 %v5666, %v5658
    %v6331 = vpack.c.b16 %v5667, %v5659
    %v6332 = vpack.c.b16 %v5668, %v5660
    %v6333 = vpack.c.b16 %v5677, %v5669
    %v6334 = vpack.c.b16 %v5678, %v5670
    %v6335 = vpack.c.b16 %v5679, %v5671
    %v6336 = vpack.c.b16 %v5680, %v5672
    %v6337 = vpack.c.b16 %v5681, %v5673
    %v6338 = vpack.c.b16 %v5682, %v5674
    %v6339 = vpack.c.b16 %v5683, %v5675
    %v6340 = vpack.c.b16 %v5684, %v5676
    %v6341 = vpack.c.b16 %v5693, %v5685
    %v6342 = vpack.c.b16 %v5694, %v5686
    %v6343 = vpack.c.b16 %v5695, %v5687
    %v6344 = vpack.c.b16 %v5696, %v5688
    %v6345 = vpack.c.b16 %v5697, %v5689
    %v6346 = vpack.c.b16 %v5698, %v5690
    %v6347 = vpack.c.b16 %v5699, %v5691
    %v6348 = vpack.c.b16 %v5700, %v5692
    %v6349 = vpack.c.b16 %v5709, %v5701
    %v6350 = vpack.c.b16 %v5710, %v5702
    %v6351 = vpack.c.b16 %v5711, %v5703
    %v6352 = vpack.c.b16 %v5712, %v5704
    %v6353 = vpack.c.b16 %v5713, %v5705
    %v6354 = vpack.c.b16 %v5714, %v5706
    %v6355 = vpack.c.b16 %v5715, %v5707
    %v6356 = vpack.c.b16 %v5716, %v5708
    %v6357 = vpack.c.b16 %v5725, %v5717
    %v6358 = vpack.c.b16 %v5726, %v5718
    %v6359 = vpack.c.b16 %v5727, %v5719
    %v6360 = vpack.c.b16 %v5728, %v5720
    %v6361 = vpack.c.b16 %v5729, %v5721
    %v6362 = vpack.c.b16 %v5730, %v5722
    %v6363 = vpack.c.b16 %v5731, %v5723
    %v6364 = vpack.c.b16 %v5732, %v5724
    %v6365 = vpack.c.b16 %v5741, %v5733
    %v6366 = vpack.c.b16 %v5742, %v5734
    %v6367 = vpack.c.b16 %v5743, %v5735
    %v6368 = vpack.c.b16 %v5744, %v5736
    %v6369 = vpack.c.b16 %v5745, %v5737
    %v6370 = vpack.c.b16 %v5746, %v5738
    %v6371 = vpack.c.b16 %v5747, %v5739
    %v6372 = vpack.c.b16 %v5748, %v5740
    %v6373 = vpack.c.b16 %v5757, %v5749
    %v6374 = vpack.c.b16 %v5758, %v5750
    %v6375 = vpack.c.b16 %v5759, %v5751
    %v6376 = vpack.c.b16 %v5760, %v5752
    %v6377 = vpack.c.b16 %v5761, %v5753
    %v6378 = vpack.c.b16 %v5762, %v5754
    %v6379 = vpack.c.b16 %v5763, %v5755
    %v6380 = vpack.c.b16 %v5764, %v5756
    %v6381 = vpack.c.b16 %v5773, %v5765
    %v6382 = vpack.c.b16 %v5774, %v5766
    %v6383 = vpack.c.b16 %v5775, %v5767
    %v6384 = vpack.c.b16 %v5776, %v5768
    %v6385 = vpack.c.b16 %v5777, %v5769
    %v6386 = vpack.c.b16 %v5778, %v5770
    %v6387 = vpack.c.b16 %v5779, %v5771
    %v6388 = vpack.c.b16 %v5780, %v5772
    %v6389 = vpack.c.b16 %v5789, %v5781
    %v6390 = vpack.c.b16 %v5790, %v5782
    %v6391 = vpack.c.b16 %v5791, %v5783
    %v6392 = vpack.c.b16 %v5792, %v5784
    %v6393 = vpack.c.b16 %v5793, %v5785
    %v6394 = vpack.c.b16 %v5794, %v5786
    %v6395 = vpack.c.b16 %v5795, %v5787
    %v6396 = vpack.c.b16 %v5796, %v5788
    %v6397 = vpack.c.b16 %v5805, %v5797
    %v6398 = vpack.c.b16 %v5806, %v5798
    %v6399 = vpack.c.b16 %v5807, %v5799
    %v6400 = vpack.c.b16 %v5808, %v5800
    %v6401 = vpack.c.b16 %v5809, %v5801
    %v6402 = vpack.c.b16 %v5810, %v5802
    %v6403 = vpack.c.b16 %v5811, %v5803
    %v6404 = vpack.c.b16 %v5812, %v5804
    %v6405 = vpack.c.b16 %v5821, %v5813
    %v6406 = vpack.c.b16 %v5822, %v5814
    %v6407 = vpack.c.b16 %v5823, %v5815
    %v6408 = vpack.c.b16 %v5824, %v5816
    %v6409 = vpack.c.b16 %v5825, %v5817
    %v6410 = vpack.c.b16 %v5826, %v5818
    %v6411 = vpack.c.b16 %v5827, %v5819
    %v6412 = vpack.c.b16 %v5828, %v5820
    %v6413 = vpack.c.b16 %v5837, %v5829
    %v6414 = vpack.c.b16 %v5838, %v5830
    %v6415 = vpack.c.b16 %v5839, %v5831
    %v6416 = vpack.c.b16 %v5840, %v5832
    %v6417 = vpack.c.b16 %v5841, %v5833
    %v6418 = vpack.c.b16 %v5842, %v5834
    %v6419 = vpack.c.b16 %v5843, %v5835
    %v6420 = vpack.c.b16 %v5844, %v5836
    %v6421 = vpack.c.b16 %v5853, %v5845
    %v6422 = vpack.c.b16 %v5854, %v5846
    %v6423 = vpack.c.b16 %v5855, %v5847
    %v6424 = vpack.c.b16 %v5856, %v5848
    %v6425 = vpack.c.b16 %v5857, %v5849
    %v6426 = vpack.c.b16 %v5858, %v5850
    %v6427 = vpack.c.b16 %v5859, %v5851
    %v6428 = vpack.c.b16 %v5860, %v5852
    %v6429 = vpack.c.b16 %v5869, %v5861
    %v6430 = vpack.c.b16 %v5870, %v5862
    %v6431 = vpack.c.b16 %v5871, %v5863
    %v6432 = vpack.c.b16 %v5872, %v5864
    %v6433 = vpack.c.b16 %v5873, %v5865
    %v6434 = vpack.c.b16 %v5874, %v5866
    %v6435 = vpack.c.b16 %v5875, %v5867
    %v6436 = vpack.c.b16 %v5876, %v5868
    %v6437 = vpack.c.b16 %v5885, %v5877
    %v6438 = vpack.c.b16 %v5886, %v5878
    %v6439 = vpack.c.b16 %v5887, %v5879
    %v6440 = vpack.c.b16 %v5888, %v5880
    %v6441 = vpack.c.b16 %v5889, %v5881
    %v6442 = vpack.c.b16 %v5890, %v5882
    %v6443 = vpack.c.b16 %v5891, %v5883
    %v6444 = vpack.c.b16 %v5892, %v5884
    %v6445 = vpack.c.b16 %v5901, %v5893
    %v6446 = vpack.c.b16 %v5902, %v5894
    %v6447 = vpack.c.b16 %v5903, %v5895
    %v6448 = vpack.c.b16 %v5904, %v5896
    %v6449 = vpack.c.b16 %v5905, %v5897
    %v6450 = vpack.c.b16 %v5906, %v5898
    %v6451 = vpack.c.b16 %v5907, %v5899
    %v6452 = vpack.c.b16 %v5908, %v5900
    %v6453 = vpack.c.b16 %v5917, %v5909
    %v6454 = vpack.c.b16 %v5918, %v5910
    %v6455 = vpack.c.b16 %v5919, %v5911
    %v6456 = vpack.c.b16 %v5920, %v5912
    %v6457 = vpack.c.b16 %v5921, %v5913
    %v6458 = vpack.c.b16 %v5922, %v5914
    %v6459 = vpack.c.b16 %v5923, %v5915
    %v6460 = vpack.c.b16 %v5924, %v5916
    %v6461 = vpack.c.b16 %v5933, %v5925
    %v6462 = vpack.c.b16 %v5934, %v5926
    %v6463 = vpack.c.b16 %v5935, %v5927
    %v6464 = vpack.c.b16 %v5936, %v5928
    %v6465 = vpack.c.b16 %v5937, %v5929
    %v6466 = vpack.c.b16 %v5938, %v5930
    %v6467 = vpack.c.b16 %v5939, %v5931
    %v6468 = vpack.c.b16 %v5940, %v5932
    %v6469 = vpack.c.b16 %v5949, %v5941
    %v6470 = vpack.c.b16 %v5950, %v5942
    %v6471 = vpack.c.b16 %v5951, %v5943
    %v6472 = vpack.c.b16 %v5952, %v5944
    %v6473 = vpack.c.b16 %v5953, %v5945
    %v6474 = vpack.c.b16 %v5954, %v5946
    %v6475 = vpack.c.b16 %v5955, %v5947
    %v6476 = vpack.c.b16 %v5956, %v5948
    %v6477 = vpack.c.b16 %v5965, %v5957
    %v6478 = vpack.c.b16 %v5966, %v5958
    %v6479 = vpack.c.b16 %v5967, %v5959
    %v6480 = vpack.c.b16 %v5968, %v5960
    %v6481 = vpack.c.b16 %v5969, %v5961
    %v6482 = vpack.c.b16 %v5970, %v5962
    %v6483 = vpack.c.b16 %v5971, %v5963
    %v6484 = vpack.c.b16 %v5972, %v5964
    %6997 = vmatprep.subr.bf16.mxu0 %v6030
    %6998 = vmatpush1.bf16.msra.mxu0 %v6029
    %6999 = vmatprep.subr.bf16.mxu0 %v6022
    %7000 = vmatpush1.bf16.msra.mxu0 %v6021
    %7001 = vmatprep.subr.bf16.mxu0 %v6014
    %7002 = vmatpush1.bf16.msra.mxu0 %v6013
    %7003 = vmatprep.subr.bf16.mxu0 %v6006
    %7004 = vmatpush1.bf16.msra.mxu0 %v6005
    %7005 = vmatprep.subr.bf16.mxu0 %v5998
    %7006 = vmatpush1.bf16.msra.mxu0 %v5997
    %7007 = vmatprep.subr.bf16.mxu0 %v5990
    %7008 = vmatpush1.bf16.msra.mxu0 %v5989
    %7009 = vmatprep.subr.bf16.mxu0 %v5982
    %7010 = vmatpush1.bf16.msra.mxu0 %v5981
    %7011 = vmatprep.subr.bf16.mxu0 %v5974
    %7012 = vmatpush1.bf16.msra.mxu0 %v5973
    %7013 = vmatprep.subr.bf16.mxu0 %v6094
    %7014 = vmatpush2.bf16.msra.mxu0 %v6093
    %7015 = vmatprep.subr.bf16.mxu0 %v6086
    %7016 = vmatpush2.bf16.msra.mxu0 %v6085
    %7017 = vmatprep.subr.bf16.mxu0 %v6078
    %7018 = vmatpush2.bf16.msra.mxu0 %v6077
    %7019 = vmatprep.subr.bf16.mxu0 %v6070
    %7020 = vmatpush2.bf16.msra.mxu0 %v6069
    %7021 = vmatprep.subr.bf16.mxu0 %v6062
    %7022 = vmatpush2.bf16.msra.mxu0 %v6061
    %7023 = vmatprep.subr.bf16.mxu0 %v6054
    %7024 = vmatpush2.bf16.msra.mxu0 %v6053
    %7025 = vmatprep.subr.bf16.mxu0 %v6046
    %7026 = vmatpush2.bf16.msra.mxu0 %v6045
    %7027 = vmatprep.subr.bf16.mxu0 %v6038
    %7028 = vmatpush2.bf16.msra.mxu0 %v6037
    %7029 = vmatprep.mubr.bf16.mxu0 %v3918
    %7030 = vmatmul.mubr.bf16.gmra.mxu0 %v3917
    %v7031 = vpop.f32.mrf.mxu0
    %v7032 = vadd.f32 0.0, %v7031
    %v7033 = vpop.f32.mrf.mxu0
    %v7034 = vadd.f32 0.0, %v7033
    %v7035 = vpop.f32.mrf.mxu0
    %v7036 = vpop.f32.mrf.mxu0
    %7037 = vdwg.mxu0
    %7038 = vmatprep.subr.bf16.mxu0 %v6158
    %7039 = vmatpush1.bf16.msra.mxu0 %v6157
    %7040 = vmatprep.subr.bf16.mxu0 %v6150
    %7041 = vmatpush1.bf16.msra.mxu0 %v6149
    %7042 = vmatprep.subr.bf16.mxu0 %v6142
    %7043 = vmatpush1.bf16.msra.mxu0 %v6141
    %7044 = vmatprep.subr.bf16.mxu0 %v6134
    %7045 = vmatpush1.bf16.msra.mxu0 %v6133
    %7046 = vmatprep.subr.bf16.mxu0 %v6126
    %7047 = vmatpush1.bf16.msra.mxu0 %v6125
    %7048 = vmatprep.subr.bf16.mxu0 %v6118
    %7049 = vmatpush1.bf16.msra.mxu0 %v6117
    %7050 = vmatprep.subr.bf16.mxu0 %v6110
    %7051 = vmatpush1.bf16.msra.mxu0 %v6109
    %7052 = vmatprep.subr.bf16.mxu0 %v6102
    %7053 = vmatpush1.bf16.msra.mxu0 %v6101
    %7054 = vmatprep.subr.bf16.mxu0 %v6222
    %7055 = vmatpush2.bf16.msra.mxu0 %v6221
    %7056 = vmatprep.subr.bf16.mxu0 %v6214
    %7057 = vmatpush2.bf16.msra.mxu0 %v6213
    %7058 = vmatprep.subr.bf16.mxu0 %v6206
    %7059 = vmatpush2.bf16.msra.mxu0 %v6205
    %7060 = vmatprep.subr.bf16.mxu0 %v6198
    %7061 = vmatpush2.bf16.msra.mxu0 %v6197
    %7062 = vmatprep.subr.bf16.mxu0 %v6190
    %7063 = vmatpush2.bf16.msra.mxu0 %v6189
    %7064 = vmatprep.subr.bf16.mxu0 %v6182
    %7065 = vmatpush2.bf16.msra.mxu0 %v6181
    %7066 = vmatprep.subr.bf16.mxu0 %v6174
    %7067 = vmatpush2.bf16.msra.mxu0 %v6173
    %7068 = vmatprep.subr.bf16.mxu0 %v6166
    %7069 = vmatpush2.bf16.msra.mxu0 %v6165
    %7070 = vmatprep.mubr.bf16.mxu0 %v3920
    %7071 = vmatmul.mubr.bf16.gmra.mxu0 %v3919
    %v7072 = vpop.f32.mrf.mxu0
    %v7073 = vadd.f32 %v7032, %v7072
    %v7074 = vpop.f32.mrf.mxu0
    %v7075 = vadd.f32 %v7034, %v7074
    %v7076 = vpop.f32.mrf.mxu0
    %v7077 = vpop.f32.mrf.mxu0
    %7078 = vdwg.mxu0
    %7079 = vmatprep.subr.bf16.mxu0 %v6286
    %7080 = vmatpush1.bf16.msra.mxu0 %v6285
    %7081 = vmatprep.subr.bf16.mxu0 %v6278
    %7082 = vmatpush1.bf16.msra.mxu0 %v6277
    %7083 = vmatprep.subr.bf16.mxu0 %v6270
    %7084 = vmatpush1.bf16.msra.mxu0 %v6269
    %7085 = vmatprep.subr.bf16.mxu0 %v6262
    %7086 = vmatpush1.bf16.msra.mxu0 %v6261
    %7087 = vmatprep.subr.bf16.mxu0 %v6254
    %7088 = vmatpush1.bf16.msra.mxu0 %v6253
    %7089 = vmatprep.subr.bf16.mxu0 %v6246
    %7090 = vmatpush1.bf16.msra.mxu0 %v6245
    %7091 = vmatprep.subr.bf16.mxu0 %v6238
    %7092 = vmatpush1.bf16.msra.mxu0 %v6237
    %7093 = vmatprep.subr.bf16.mxu0 %v6230
    %7094 = vmatpush1.bf16.msra.mxu0 %v6229
    %7095 = vmatprep.subr.bf16.mxu0 %v6350
    %7096 = vmatpush2.bf16.msra.mxu0 %v6349
    %7097 = vmatprep.subr.bf16.mxu0 %v6342
    %7098 = vmatpush2.bf16.msra.mxu0 %v6341
    %7099 = vmatprep.subr.bf16.mxu0 %v6334
    %7100 = vmatpush2.bf16.msra.mxu0 %v6333
    %7101 = vmatprep.subr.bf16.mxu0 %v6326
    %7102 = vmatpush2.bf16.msra.mxu0 %v6325
    %7103 = vmatprep.subr.bf16.mxu0 %v6318
    %7104 = vmatpush2.bf16.msra.mxu0 %v6317
    %7105 = vmatprep.subr.bf16.mxu0 %v6310
    %7106 = vmatpush2.bf16.msra.mxu0 %v6309
    %7107 = vmatprep.subr.bf16.mxu0 %v6302
    %7108 = vmatpush2.bf16.msra.mxu0 %v6301
    %7109 = vmatprep.subr.bf16.mxu0 %v6294
    %7110 = vmatpush2.bf16.msra.mxu0 %v6293
    %7111 = vmatprep.mubr.bf16.mxu0 %v3922
    %7112 = vmatmul.mubr.bf16.gmra.mxu0 %v3921
    %v7113 = vpop.f32.mrf.mxu0
    %v7114 = vadd.f32 %v7073, %v7113
    %v7115 = vpop.f32.mrf.mxu0
    %v7116 = vadd.f32 %v7075, %v7115
    %v7117 = vpop.f32.mrf.mxu0
    %v7118 = vpop.f32.mrf.mxu0
    %7119 = vdwg.mxu0
    %7120 = vmatprep.subr.bf16.mxu0 %v6414
    %7121 = vmatpush1.bf16.msra.mxu0 %v6413
    %7122 = vmatprep.subr.bf16.mxu0 %v6406
    %7123 = vmatpush1.bf16.msra.mxu0 %v6405
    %7124 = vmatprep.subr.bf16.mxu0 %v6398
    %7125 = vmatpush1.bf16.msra.mxu0 %v6397
    %7126 = vmatprep.subr.bf16.mxu0 %v6390
    %7127 = vmatpush1.bf16.msra.mxu0 %v6389
    %7128 = vmatprep.subr.bf16.mxu0 %v6382
    %7129 = vmatpush1.bf16.msra.mxu0 %v6381
    %7130 = vmatprep.subr.bf16.mxu0 %v6374
    %7131 = vmatpush1.bf16.msra.mxu0 %v6373
    %7132 = vmatprep.subr.bf16.mxu0 %v6366
    %7133 = vmatpush1.bf16.msra.mxu0 %v6365
    %7134 = vmatprep.subr.bf16.mxu0 %v6358
    %7135 = vmatpush1.bf16.msra.mxu0 %v6357
    %7136 = vmatprep.subr.bf16.mxu0 %v6478
    %7137 = vmatpush2.bf16.msra.mxu0 %v6477
    %7138 = vmatprep.subr.bf16.mxu0 %v6470
    %7139 = vmatpush2.bf16.msra.mxu0 %v6469
    %7140 = vmatprep.subr.bf16.mxu0 %v6462
    %7141 = vmatpush2.bf16.msra.mxu0 %v6461
    %7142 = vmatprep.subr.bf16.mxu0 %v6454
    %7143 = vmatpush2.bf16.msra.mxu0 %v6453
    %7144 = vmatprep.subr.bf16.mxu0 %v6446
    %7145 = vmatpush2.bf16.msra.mxu0 %v6445
    %7146 = vmatprep.subr.bf16.mxu0 %v6438
    %7147 = vmatpush2.bf16.msra.mxu0 %v6437
    %7148 = vmatprep.subr.bf16.mxu0 %v6430
    %7149 = vmatpush2.bf16.msra.mxu0 %v6429
    %7150 = vmatprep.subr.bf16.mxu0 %v6422
    %7151 = vmatpush2.bf16.msra.mxu0 %v6421
    %7152 = vmatprep.mubr.bf16.mxu0 %v3924
    %7153 = vmatmul.mubr.bf16.gmra.mxu0 %v3923
    %v7154 = vpop.f32.mrf.mxu0
    %v7155 = vadd.f32 %v7114, %v7154
    %v7156 = vpop.f32.mrf.mxu0
    %v7157 = vadd.f32 %v7116, %v7156
    %v7158 = vpop.f32.mrf.mxu0
    %v7159 = vpop.f32.mrf.mxu0
    %7160 = vdwg.mxu0
    %7161 = vmatprep.subr.bf16.mxu0 %v6032
    %7162 = vmatpush1.bf16.msra.mxu0 %v6031
    %7163 = vmatprep.subr.bf16.mxu0 %v6024
    %7164 = vmatpush1.bf16.msra.mxu0 %v6023
    %7165 = vmatprep.subr.bf16.mxu0 %v6016
    %7166 = vmatpush1.bf16.msra.mxu0 %v6015
    %7167 = vmatprep.subr.bf16.mxu0 %v6008
    %7168 = vmatpush1.bf16.msra.mxu0 %v6007
    %7169 = vmatprep.subr.bf16.mxu0 %v6000
    %7170 = vmatpush1.bf16.msra.mxu0 %v5999
    %7171 = vmatprep.subr.bf16.mxu0 %v5992
    %7172 = vmatpush1.bf16.msra.mxu0 %v5991
    %7173 = vmatprep.subr.bf16.mxu0 %v5984
    %7174 = vmatpush1.bf16.msra.mxu0 %v5983
    %7175 = vmatprep.subr.bf16.mxu0 %v5976
    %7176 = vmatpush1.bf16.msra.mxu0 %v5975
    %7177 = vmatprep.subr.bf16.mxu0 %v6096
    %7178 = vmatpush2.bf16.msra.mxu0 %v6095
    %7179 = vmatprep.subr.bf16.mxu0 %v6088
    %7180 = vmatpush2.bf16.msra.mxu0 %v6087
    %7181 = vmatprep.subr.bf16.mxu0 %v6080
    %7182 = vmatpush2.bf16.msra.mxu0 %v6079
    %7183 = vmatprep.subr.bf16.mxu0 %v6072
    %7184 = vmatpush2.bf16.msra.mxu0 %v6071
    %7185 = vmatprep.subr.bf16.mxu0 %v6064
    %7186 = vmatpush2.bf16.msra.mxu0 %v6063
    %7187 = vmatprep.subr.bf16.mxu0 %v6056
    %7188 = vmatpush2.bf16.msra.mxu0 %v6055
    %7189 = vmatprep.subr.bf16.mxu0 %v6048
    %7190 = vmatpush2.bf16.msra.mxu0 %v6047
    %7191 = vmatprep.subr.bf16.mxu0 %v6040
    %7192 = vmatpush2.bf16.msra.mxu0 %v6039
    %7193 = vmatprep.mubr.bf16.mxu0 %v3918
    %7194 = vmatmul.mubr.bf16.gmra.mxu0 %v3917
    %v7195 = vpop.f32.mrf.mxu0
    %v7196 = vadd.f32 0.0, %v7195
    %v7197 = vpop.f32.mrf.mxu0
    %v7198 = vadd.f32 0.0, %v7197
    %v7199 = vpop.f32.mrf.mxu0
    %v7200 = vpop.f32.mrf.mxu0
    %7201 = vdwg.mxu0
    %7202 = vmatprep.subr.bf16.mxu0 %v6160
    %7203 = vmatpush1.bf16.msra.mxu0 %v6159
    %7204 = vmatprep.subr.bf16.mxu0 %v6152
    %7205 = vmatpush1.bf16.msra.mxu0 %v6151
    %7206 = vmatprep.subr.bf16.mxu0 %v6144
    %7207 = vmatpush1.bf16.msra.mxu0 %v6143
    %7208 = vmatprep.subr.bf16.mxu0 %v6136
    %7209 = vmatpush1.bf16.msra.mxu0 %v6135
    %7210 = vmatprep.subr.bf16.mxu0 %v6128
    %7211 = vmatpush1.bf16.msra.mxu0 %v6127
    %7212 = vmatprep.subr.bf16.mxu0 %v6120
    %7213 = vmatpush1.bf16.msra.mxu0 %v6119
    %7214 = vmatprep.subr.bf16.mxu0 %v6112
    %7215 = vmatpush1.bf16.msra.mxu0 %v6111
    %7216 = vmatprep.subr.bf16.mxu0 %v6104
    %7217 = vmatpush1.bf16.msra.mxu0 %v6103
    %7218 = vmatprep.subr.bf16.mxu0 %v6224
    %7219 = vmatpush2.bf16.msra.mxu0 %v6223
    %7220 = vmatprep.subr.bf16.mxu0 %v6216
    %7221 = vmatpush2.bf16.msra.mxu0 %v6215
    %7222 = vmatprep.subr.bf16.mxu0 %v6208
    %7223 = vmatpush2.bf16.msra.mxu0 %v6207
    %7224 = vmatprep.subr.bf16.mxu0 %v6200
    %7225 = vmatpush2.bf16.msra.mxu0 %v6199
    %7226 = vmatprep.subr.bf16.mxu0 %v6192
    %7227 = vmatpush2.bf16.msra.mxu0 %v6191
    %7228 = vmatprep.subr.bf16.mxu0 %v6184
    %7229 = vmatpush2.bf16.msra.mxu0 %v6183
    %7230 = vmatprep.subr.bf16.mxu0 %v6176
    %7231 = vmatpush2.bf16.msra.mxu0 %v6175
    %7232 = vmatprep.subr.bf16.mxu0 %v6168
    %7233 = vmatpush2.bf16.msra.mxu0 %v6167
    %7234 = vmatprep.mubr.bf16.mxu0 %v3920
    %7235 = vmatmul.mubr.bf16.gmra.mxu0 %v3919
    %v7236 = vpop.f32.mrf.mxu0
    %v7237 = vadd.f32 %v7196, %v7236
    %v7238 = vpop.f32.mrf.mxu0
    %v7239 = vadd.f32 %v7198, %v7238
    %v7240 = vpop.f32.mrf.mxu0
    %v7241 = vpop.f32.mrf.mxu0
    %7242 = vdwg.mxu0
    %7243 = vmatprep.subr.bf16.mxu0 %v6288
    %7244 = vmatpush1.bf16.msra.mxu0 %v6287
    %7245 = vmatprep.subr.bf16.mxu0 %v6280
    %7246 = vmatpush1.bf16.msra.mxu0 %v6279
    %7247 = vmatprep.subr.bf16.mxu0 %v6272
    %7248 = vmatpush1.bf16.msra.mxu0 %v6271
    %7249 = vmatprep.subr.bf16.mxu0 %v6264
    %7250 = vmatpush1.bf16.msra.mxu0 %v6263
    %7251 = vmatprep.subr.bf16.mxu0 %v6256
    %7252 = vmatpush1.bf16.msra.mxu0 %v6255
    %7253 = vmatprep.subr.bf16.mxu0 %v6248
    %7254 = vmatpush1.bf16.msra.mxu0 %v6247
    %7255 = vmatprep.subr.bf16.mxu0 %v6240
    %7256 = vmatpush1.bf16.msra.mxu0 %v6239
    %7257 = vmatprep.subr.bf16.mxu0 %v6232
    %7258 = vmatpush1.bf16.msra.mxu0 %v6231
    %7259 = vmatprep.subr.bf16.mxu0 %v6352
    %7260 = vmatpush2.bf16.msra.mxu0 %v6351
    %7261 = vmatprep.subr.bf16.mxu0 %v6344
    %7262 = vmatpush2.bf16.msra.mxu0 %v6343
    %7263 = vmatprep.subr.bf16.mxu0 %v6336
    %7264 = vmatpush2.bf16.msra.mxu0 %v6335
    %7265 = vmatprep.subr.bf16.mxu0 %v6328
    %7266 = vmatpush2.bf16.msra.mxu0 %v6327
    %7267 = vmatprep.subr.bf16.mxu0 %v6320
    %7268 = vmatpush2.bf16.msra.mxu0 %v6319
    %7269 = vmatprep.subr.bf16.mxu0 %v6312
    %7270 = vmatpush2.bf16.msra.mxu0 %v6311
    %7271 = vmatprep.subr.bf16.mxu0 %v6304
    %7272 = vmatpush2.bf16.msra.mxu0 %v6303
    %7273 = vmatprep.subr.bf16.mxu0 %v6296
    %7274 = vmatpush2.bf16.msra.mxu0 %v6295
    %7275 = vmatprep.mubr.bf16.mxu0 %v3922
    %7276 = vmatmul.mubr.bf16.gmra.mxu0 %v3921
    %v7277 = vpop.f32.mrf.mxu0
    %v7278 = vadd.f32 %v7237, %v7277
    %v7279 = vpop.f32.mrf.mxu0
    %v7280 = vadd.f32 %v7239, %v7279
    %v7281 = vpop.f32.mrf.mxu0
    %v7282 = vpop.f32.mrf.mxu0
    %7283 = vdwg.mxu0
    %7284 = vmatprep.subr.bf16.mxu0 %v6416
    %7285 = vmatpush1.bf16.msra.mxu0 %v6415
    %7286 = vmatprep.subr.bf16.mxu0 %v6408
    %7287 = vmatpush1.bf16.msra.mxu0 %v6407
    %7288 = vmatprep.subr.bf16.mxu0 %v6400
    %7289 = vmatpush1.bf16.msra.mxu0 %v6399
    %7290 = vmatprep.subr.bf16.mxu0 %v6392
    %7291 = vmatpush1.bf16.msra.mxu0 %v6391
    %7292 = vmatprep.subr.bf16.mxu0 %v6384
    %7293 = vmatpush1.bf16.msra.mxu0 %v6383
    %7294 = vmatprep.subr.bf16.mxu0 %v6376
    %7295 = vmatpush1.bf16.msra.mxu0 %v6375
    %7296 = vmatprep.subr.bf16.mxu0 %v6368
    %7297 = vmatpush1.bf16.msra.mxu0 %v6367
    %7298 = vmatprep.subr.bf16.mxu0 %v6360
    %7299 = vmatpush1.bf16.msra.mxu0 %v6359
    %7300 = vmatprep.subr.bf16.mxu0 %v6480
    %7301 = vmatpush2.bf16.msra.mxu0 %v6479
    %7302 = vmatprep.subr.bf16.mxu0 %v6472
    %7303 = vmatpush2.bf16.msra.mxu0 %v6471
    %7304 = vmatprep.subr.bf16.mxu0 %v6464
    %7305 = vmatpush2.bf16.msra.mxu0 %v6463
    %7306 = vmatprep.subr.bf16.mxu0 %v6456
    %7307 = vmatpush2.bf16.msra.mxu0 %v6455
    %7308 = vmatprep.subr.bf16.mxu0 %v6448
    %7309 = vmatpush2.bf16.msra.mxu0 %v6447
    %7310 = vmatprep.subr.bf16.mxu0 %v6440
    %7311 = vmatpush2.bf16.msra.mxu0 %v6439
    %7312 = vmatprep.subr.bf16.mxu0 %v6432
    %7313 = vmatpush2.bf16.msra.mxu0 %v6431
    %7314 = vmatprep.subr.bf16.mxu0 %v6424
    %7315 = vmatpush2.bf16.msra.mxu0 %v6423
    %7316 = vmatprep.mubr.bf16.mxu0 %v3924
    %7317 = vmatmul.mubr.bf16.gmra.mxu0 %v3923
    %v7318 = vpop.f32.mrf.mxu0
    %v7319 = vadd.f32 %v7278, %v7318
    %v7320 = vpop.f32.mrf.mxu0
    %v7321 = vadd.f32 %v7280, %v7320
    %v7322 = vpop.f32.mrf.mxu0
    %v7323 = vpop.f32.mrf.mxu0
    %7324 = vdwg.mxu0
    %7325 = vmatprep.subr.bf16.mxu0 %v6034
    %7326 = vmatpush1.bf16.msra.mxu0 %v6033
    %7327 = vmatprep.subr.bf16.mxu0 %v6026
    %7328 = vmatpush1.bf16.msra.mxu0 %v6025
    %7329 = vmatprep.subr.bf16.mxu0 %v6018
    %7330 = vmatpush1.bf16.msra.mxu0 %v6017
    %7331 = vmatprep.subr.bf16.mxu0 %v6010
    %7332 = vmatpush1.bf16.msra.mxu0 %v6009
    %7333 = vmatprep.subr.bf16.mxu0 %v6002
    %7334 = vmatpush1.bf16.msra.mxu0 %v6001
    %7335 = vmatprep.subr.bf16.mxu0 %v5994
    %7336 = vmatpush1.bf16.msra.mxu0 %v5993
    %7337 = vmatprep.subr.bf16.mxu0 %v5986
    %7338 = vmatpush1.bf16.msra.mxu0 %v5985
    %7339 = vmatprep.subr.bf16.mxu0 %v5978
    %7340 = vmatpush1.bf16.msra.mxu0 %v5977
    %7341 = vmatprep.subr.bf16.mxu0 %v6098
    %7342 = vmatpush2.bf16.msra.mxu0 %v6097
    %7343 = vmatprep.subr.bf16.mxu0 %v6090
    %7344 = vmatpush2.bf16.msra.mxu0 %v6089
    %7345 = vmatprep.subr.bf16.mxu0 %v6082
    %7346 = vmatpush2.bf16.msra.mxu0 %v6081
    %7347 = vmatprep.subr.bf16.mxu0 %v6074
    %7348 = vmatpush2.bf16.msra.mxu0 %v6073
    %7349 = vmatprep.subr.bf16.mxu0 %v6066
    %7350 = vmatpush2.bf16.msra.mxu0 %v6065
    %7351 = vmatprep.subr.bf16.mxu0 %v6058
    %7352 = vmatpush2.bf16.msra.mxu0 %v6057
    %7353 = vmatprep.subr.bf16.mxu0 %v6050
    %7354 = vmatpush2.bf16.msra.mxu0 %v6049
    %7355 = vmatprep.subr.bf16.mxu0 %v6042
    %7356 = vmatpush2.bf16.msra.mxu0 %v6041
    %7357 = vmatprep.mubr.bf16.mxu0 %v3918
    %7358 = vmatmul.mubr.bf16.gmra.mxu0 %v3917
    %v7359 = vpop.f32.mrf.mxu0
    %v7360 = vadd.f32 0.0, %v7359
    %v7361 = vpop.f32.mrf.mxu0
    %v7362 = vadd.f32 0.0, %v7361
    %v7363 = vpop.f32.mrf.mxu0
    %v7364 = vpop.f32.mrf.mxu0
    %7365 = vdwg.mxu0
    %7366 = vmatprep.subr.bf16.mxu0 %v6162
    %7367 = vmatpush1.bf16.msra.mxu0 %v6161
    %7368 = vmatprep.subr.bf16.mxu0 %v6154
    %7369 = vmatpush1.bf16.msra.mxu0 %v6153
    %7370 = vmatprep.subr.bf16.mxu0 %v6146
    %7371 = vmatpush1.bf16.msra.mxu0 %v6145
    %7372 = vmatprep.subr.bf16.mxu0 %v6138
    %7373 = vmatpush1.bf16.msra.mxu0 %v6137
    %7374 = vmatprep.subr.bf16.mxu0 %v6130
    %7375 = vmatpush1.bf16.msra.mxu0 %v6129
    %7376 = vmatprep.subr.bf16.mxu0 %v6122
    %7377 = vmatpush1.bf16.msra.mxu0 %v6121
    %7378 = vmatprep.subr.bf16.mxu0 %v6114
    %7379 = vmatpush1.bf16.msra.mxu0 %v6113
    %7380 = vmatprep.subr.bf16.mxu0 %v6106
    %7381 = vmatpush1.bf16.msra.mxu0 %v6105
    %7382 = vmatprep.subr.bf16.mxu0 %v6226
    %7383 = vmatpush2.bf16.msra.mxu0 %v6225
    %7384 = vmatprep.subr.bf16.mxu0 %v6218
    %7385 = vmatpush2.bf16.msra.mxu0 %v6217
    %7386 = vmatprep.subr.bf16.mxu0 %v6210
    %7387 = vmatpush2.bf16.msra.mxu0 %v6209
    %7388 = vmatprep.subr.bf16.mxu0 %v6202
    %7389 = vmatpush2.bf16.msra.mxu0 %v6201
    %7390 = vmatprep.subr.bf16.mxu0 %v6194
    %7391 = vmatpush2.bf16.msra.mxu0 %v6193
    %7392 = vmatprep.subr.bf16.mxu0 %v6186
    %7393 = vmatpush2.bf16.msra.mxu0 %v6185
    %7394 = vmatprep.subr.bf16.mxu0 %v6178
    %7395 = vmatpush2.bf16.msra.mxu0 %v6177
    %7396 = vmatprep.subr.bf16.mxu0 %v6170
    %7397 = vmatpush2.bf16.msra.mxu0 %v6169
    %7398 = vmatprep.mubr.bf16.mxu0 %v3920
    %7399 = vmatmul.mubr.bf16.gmra.mxu0 %v3919
    %v7400 = vpop.f32.mrf.mxu0
    %v7401 = vadd.f32 %v7360, %v7400
    %v7402 = vpop.f32.mrf.mxu0
    %v7403 = vadd.f32 %v7362, %v7402
    %v7404 = vpop.f32.mrf.mxu0
    %v7405 = vpop.f32.mrf.mxu0
    %7406 = vdwg.mxu0
    %7407 = vmatprep.subr.bf16.mxu0 %v6290
    %7408 = vmatpush1.bf16.msra.mxu0 %v6289
    %7409 = vmatprep.subr.bf16.mxu0 %v6282
    %7410 = vmatpush1.bf16.msra.mxu0 %v6281
    %7411 = vmatprep.subr.bf16.mxu0 %v6274
    %7412 = vmatpush1.bf16.msra.mxu0 %v6273
    %7413 = vmatprep.subr.bf16.mxu0 %v6266
    %7414 = vmatpush1.bf16.msra.mxu0 %v6265
    %7415 = vmatprep.subr.bf16.mxu0 %v6258
    %7416 = vmatpush1.bf16.msra.mxu0 %v6257
    %7417 = vmatprep.subr.bf16.mxu0 %v6250
    %7418 = vmatpush1.bf16.msra.mxu0 %v6249
    %7419 = vmatprep.subr.bf16.mxu0 %v6242
    %7420 = vmatpush1.bf16.msra.mxu0 %v6241
    %7421 = vmatprep.subr.bf16.mxu0 %v6234
    %7422 = vmatpush1.bf16.msra.mxu0 %v6233
    %7423 = vmatprep.subr.bf16.mxu0 %v6354
    %7424 = vmatpush2.bf16.msra.mxu0 %v6353
    %7425 = vmatprep.subr.bf16.mxu0 %v6346
    %7426 = vmatpush2.bf16.msra.mxu0 %v6345
    %7427 = vmatprep.subr.bf16.mxu0 %v6338
    %7428 = vmatpush2.bf16.msra.mxu0 %v6337
    %7429 = vmatprep.subr.bf16.mxu0 %v6330
    %7430 = vmatpush2.bf16.msra.mxu0 %v6329
    %7431 = vmatprep.subr.bf16.mxu0 %v6322
    %7432 = vmatpush2.bf16.msra.mxu0 %v6321
    %7433 = vmatprep.subr.bf16.mxu0 %v6314
    %7434 = vmatpush2.bf16.msra.mxu0 %v6313
    %7435 = vmatprep.subr.bf16.mxu0 %v6306
    %7436 = vmatpush2.bf16.msra.mxu0 %v6305
    %7437 = vmatprep.subr.bf16.mxu0 %v6298
    %7438 = vmatpush2.bf16.msra.mxu0 %v6297
    %7439 = vmatprep.mubr.bf16.mxu0 %v3922
    %7440 = vmatmul.mubr.bf16.gmra.mxu0 %v3921
    %v7441 = vpop.f32.mrf.mxu0
    %v7442 = vadd.f32 %v7401, %v7441
    %v7443 = vpop.f32.mrf.mxu0
    %v7444 = vadd.f32 %v7403, %v7443
    %v7445 = vpop.f32.mrf.mxu0
    %v7446 = vpop.f32.mrf.mxu0
    %7447 = vdwg.mxu0
    %7448 = vmatprep.subr.bf16.mxu0 %v6418
    %7449 = vmatpush1.bf16.msra.mxu0 %v6417
    %7450 = vmatprep.subr.bf16.mxu0 %v6410
    %7451 = vmatpush1.bf16.msra.mxu0 %v6409
    %7452 = vmatprep.subr.bf16.mxu0 %v6402
    %7453 = vmatpush1.bf16.msra.mxu0 %v6401
    %7454 = vmatprep.subr.bf16.mxu0 %v6394
    %7455 = vmatpush1.bf16.msra.mxu0 %v6393
    %7456 = vmatprep.subr.bf16.mxu0 %v6386
    %7457 = vmatpush1.bf16.msra.mxu0 %v6385
    %7458 = vmatprep.subr.bf16.mxu0 %v6378
    %7459 = vmatpush1.bf16.msra.mxu0 %v6377
    %7460 = vmatprep.subr.bf16.mxu0 %v6370
    %7461 = vmatpush1.bf16.msra.mxu0 %v6369
    %7462 = vmatprep.subr.bf16.mxu0 %v6362
    %7463 = vmatpush1.bf16.msra.mxu0 %v6361
    %7464 = vmatprep.subr.bf16.mxu0 %v6482
    %7465 = vmatpush2.bf16.msra.mxu0 %v6481
    %7466 = vmatprep.subr.bf16.mxu0 %v6474
    %7467 = vmatpush2.bf16.msra.mxu0 %v6473
    %7468 = vmatprep.subr.bf16.mxu0 %v6466
    %7469 = vmatpush2.bf16.msra.mxu0 %v6465
    %7470 = vmatprep.subr.bf16.mxu0 %v6458
    %7471 = vmatpush2.bf16.msra.mxu0 %v6457
    %7472 = vmatprep.subr.bf16.mxu0 %v6450
    %7473 = vmatpush2.bf16.msra.mxu0 %v6449
    %7474 = vmatprep.subr.bf16.mxu0 %v6442
    %7475 = vmatpush2.bf16.msra.mxu0 %v6441
    %7476 = vmatprep.subr.bf16.mxu0 %v6434
    %7477 = vmatpush2.bf16.msra.mxu0 %v6433
    %7478 = vmatprep.subr.bf16.mxu0 %v6426
    %7479 = vmatpush2.bf16.msra.mxu0 %v6425
    %7480 = vmatprep.mubr.bf16.mxu0 %v3924
    %7481 = vmatmul.mubr.bf16.gmra.mxu0 %v3923
    %v7482 = vpop.f32.mrf.mxu0
    %v7483 = vadd.f32 %v7442, %v7482
    %v7484 = vpop.f32.mrf.mxu0
    %v7485 = vadd.f32 %v7444, %v7484
    %v7486 = vpop.f32.mrf.mxu0
    %v7487 = vpop.f32.mrf.mxu0
    %7488 = vdwg.mxu0
    %7489 = vmatprep.subr.bf16.mxu0 %v6036
    %7490 = vmatpush1.bf16.msra.mxu0 %v6035
    %7491 = vmatprep.subr.bf16.mxu0 %v6028
    %7492 = vmatpush1.bf16.msra.mxu0 %v6027
    %7493 = vmatprep.subr.bf16.mxu0 %v6020
    %7494 = vmatpush1.bf16.msra.mxu0 %v6019
    %7495 = vmatprep.subr.bf16.mxu0 %v6012
    %7496 = vmatpush1.bf16.msra.mxu0 %v6011
    %7497 = vmatprep.subr.bf16.mxu0 %v6004
    %7498 = vmatpush1.bf16.msra.mxu0 %v6003
    %7499 = vmatprep.subr.bf16.mxu0 %v5996
    %7500 = vmatpush1.bf16.msra.mxu0 %v5995
    %7501 = vmatprep.subr.bf16.mxu0 %v5988
    %7502 = vmatpush1.bf16.msra.mxu0 %v5987
    %7503 = vmatprep.subr.bf16.mxu0 %v5980
    %7504 = vmatpush1.bf16.msra.mxu0 %v5979
    %7505 = vmatprep.subr.bf16.mxu0 %v6100
    %7506 = vmatpush2.bf16.msra.mxu0 %v6099
    %7507 = vmatprep.subr.bf16.mxu0 %v6092
    %7508 = vmatpush2.bf16.msra.mxu0 %v6091
    %7509 = vmatprep.subr.bf16.mxu0 %v6084
    %7510 = vmatpush2.bf16.msra.mxu0 %v6083
    %7511 = vmatprep.subr.bf16.mxu0 %v6076
    %7512 = vmatpush2.bf16.msra.mxu0 %v6075
    %7513 = vmatprep.subr.bf16.mxu0 %v6068
    %7514 = vmatpush2.bf16.msra.mxu0 %v6067
    %7515 = vmatprep.subr.bf16.mxu0 %v6060
    %7516 = vmatpush2.bf16.msra.mxu0 %v6059
    %7517 = vmatprep.subr.bf16.mxu0 %v6052
    %7518 = vmatpush2.bf16.msra.mxu0 %v6051
    %7519 = vmatprep.subr.bf16.mxu0 %v6044
    %7520 = vmatpush2.bf16.msra.mxu0 %v6043
    %7521 = vmatprep.mubr.bf16.mxu0 %v3918
    %7522 = vmatmul.mubr.bf16.gmra.mxu0 %v3917
    %v7523 = vpop.f32.mrf.mxu0
    %v7524 = vadd.f32 0.0, %v7523
    %v7525 = vpop.f32.mrf.mxu0
    %v7526 = vadd.f32 0.0, %v7525
    %v7527 = vpop.f32.mrf.mxu0
    %v7528 = vpop.f32.mrf.mxu0
    %7529 = vdwg.mxu0
    %7530 = vmatprep.subr.bf16.mxu0 %v6164
    %7531 = vmatpush1.bf16.msra.mxu0 %v6163
    %7532 = vmatprep.subr.bf16.mxu0 %v6156
    %7533 = vmatpush1.bf16.msra.mxu0 %v6155
    %7534 = vmatprep.subr.bf16.mxu0 %v6148
    %7535 = vmatpush1.bf16.msra.mxu0 %v6147
    %7536 = vmatprep.subr.bf16.mxu0 %v6140
    %7537 = vmatpush1.bf16.msra.mxu0 %v6139
    %7538 = vmatprep.subr.bf16.mxu0 %v6132
    %7539 = vmatpush1.bf16.msra.mxu0 %v6131
    %7540 = vmatprep.subr.bf16.mxu0 %v6124
    %7541 = vmatpush1.bf16.msra.mxu0 %v6123
    %7542 = vmatprep.subr.bf16.mxu0 %v6116
    %7543 = vmatpush1.bf16.msra.mxu0 %v6115
    %7544 = vmatprep.subr.bf16.mxu0 %v6108
    %7545 = vmatpush1.bf16.msra.mxu0 %v6107
    %7546 = vmatprep.subr.bf16.mxu0 %v6228
    %7547 = vmatpush2.bf16.msra.mxu0 %v6227
    %7548 = vmatprep.subr.bf16.mxu0 %v6220
    %7549 = vmatpush2.bf16.msra.mxu0 %v6219
    %7550 = vmatprep.subr.bf16.mxu0 %v6212
    %7551 = vmatpush2.bf16.msra.mxu0 %v6211
    %7552 = vmatprep.subr.bf16.mxu0 %v6204
    %7553 = vmatpush2.bf16.msra.mxu0 %v6203
    %7554 = vmatprep.subr.bf16.mxu0 %v6196
    %7555 = vmatpush2.bf16.msra.mxu0 %v6195
    %7556 = vmatprep.subr.bf16.mxu0 %v6188
    %7557 = vmatpush2.bf16.msra.mxu0 %v6187
    %7558 = vmatprep.subr.bf16.mxu0 %v6180
    %7559 = vmatpush2.bf16.msra.mxu0 %v6179
    %7560 = vmatprep.subr.bf16.mxu0 %v6172
    %7561 = vmatpush2.bf16.msra.mxu0 %v6171
    %7562 = vmatprep.mubr.bf16.mxu0 %v3920
    %7563 = vmatmul.mubr.bf16.gmra.mxu0 %v3919
    %v7564 = vpop.f32.mrf.mxu0
    %v7565 = vadd.f32 %v7524, %v7564
    %v7566 = vpop.f32.mrf.mxu0
    %v7567 = vadd.f32 %v7526, %v7566
    %v7568 = vpop.f32.mrf.mxu0
    %v7569 = vpop.f32.mrf.mxu0
    %7570 = vdwg.mxu0
    %7571 = vmatprep.subr.bf16.mxu0 %v6292
    %7572 = vmatpush1.bf16.msra.mxu0 %v6291
    %7573 = vmatprep.subr.bf16.mxu0 %v6284
    %7574 = vmatpush1.bf16.msra.mxu0 %v6283
    %7575 = vmatprep.subr.bf16.mxu0 %v6276
    %7576 = vmatpush1.bf16.msra.mxu0 %v6275
    %7577 = vmatprep.subr.bf16.mxu0 %v6268
    %7578 = vmatpush1.bf16.msra.mxu0 %v6267
    %7579 = vmatprep.subr.bf16.mxu0 %v6260
    %7580 = vmatpush1.bf16.msra.mxu0 %v6259
    %7581 = vmatprep.subr.bf16.mxu0 %v6252
    %7582 = vmatpush1.bf16.msra.mxu0 %v6251
    %7583 = vmatprep.subr.bf16.mxu0 %v6244
    %7584 = vmatpush1.bf16.msra.mxu0 %v6243
    %7585 = vmatprep.subr.bf16.mxu0 %v6236
    %7586 = vmatpush1.bf16.msra.mxu0 %v6235
    %7587 = vmatprep.subr.bf16.mxu0 %v6356
    %7588 = vmatpush2.bf16.msra.mxu0 %v6355
    %7589 = vmatprep.subr.bf16.mxu0 %v6348
    %7590 = vmatpush2.bf16.msra.mxu0 %v6347
    %7591 = vmatprep.subr.bf16.mxu0 %v6340
    %7592 = vmatpush2.bf16.msra.mxu0 %v6339
    %7593 = vmatprep.subr.bf16.mxu0 %v6332
    %7594 = vmatpush2.bf16.msra.mxu0 %v6331
    %7595 = vmatprep.subr.bf16.mxu0 %v6324
    %7596 = vmatpush2.bf16.msra.mxu0 %v6323
    %7597 = vmatprep.subr.bf16.mxu0 %v6316
    %7598 = vmatpush2.bf16.msra.mxu0 %v6315
    %7599 = vmatprep.subr.bf16.mxu0 %v6308
    %7600 = vmatpush2.bf16.msra.mxu0 %v6307
    %7601 = vmatprep.subr.bf16.mxu0 %v6300
    %7602 = vmatpush2.bf16.msra.mxu0 %v6299
    %7603 = vmatprep.mubr.bf16.mxu0 %v3922
    %7604 = vmatmul.mubr.bf16.gmra.mxu0 %v3921
    %v7605 = vpop.f32.mrf.mxu0
    %v7606 = vadd.f32 %v7565, %v7605
    %v7607 = vpop.f32.mrf.mxu0
    %v7608 = vadd.f32 %v7567, %v7607
    %v7609 = vpop.f32.mrf.mxu0
    %v7610 = vpop.f32.mrf.mxu0
    %7611 = vdwg.mxu0
    %7612 = vmatprep.subr.bf16.mxu0 %v6420
    %7613 = vmatpush1.bf16.msra.mxu0 %v6419
    %7614 = vmatprep.subr.bf16.mxu0 %v6412
    %7615 = vmatpush1.bf16.msra.mxu0 %v6411
    %7616 = vmatprep.subr.bf16.mxu0 %v6404
    %7617 = vmatpush1.bf16.msra.mxu0 %v6403
    %7618 = vmatprep.subr.bf16.mxu0 %v6396
    %7619 = vmatpush1.bf16.msra.mxu0 %v6395
    %7620 = vmatprep.subr.bf16.mxu0 %v6388
    %7621 = vmatpush1.bf16.msra.mxu0 %v6387
    %7622 = vmatprep.subr.bf16.mxu0 %v6380
    %7623 = vmatpush1.bf16.msra.mxu0 %v6379
    %7624 = vmatprep.subr.bf16.mxu0 %v6372
    %7625 = vmatpush1.bf16.msra.mxu0 %v6371
    %7626 = vmatprep.subr.bf16.mxu0 %v6364
    %7627 = vmatpush1.bf16.msra.mxu0 %v6363
    %7628 = vmatprep.subr.bf16.mxu0 %v6484
    %7629 = vmatpush2.bf16.msra.mxu0 %v6483
    %7630 = vmatprep.subr.bf16.mxu0 %v6476
    %7631 = vmatpush2.bf16.msra.mxu0 %v6475
    %7632 = vmatprep.subr.bf16.mxu0 %v6468
    %7633 = vmatpush2.bf16.msra.mxu0 %v6467
    %7634 = vmatprep.subr.bf16.mxu0 %v6460
    %7635 = vmatpush2.bf16.msra.mxu0 %v6459
    %7636 = vmatprep.subr.bf16.mxu0 %v6452
    %7637 = vmatpush2.bf16.msra.mxu0 %v6451
    %7638 = vmatprep.subr.bf16.mxu0 %v6444
    %7639 = vmatpush2.bf16.msra.mxu0 %v6443
    %7640 = vmatprep.subr.bf16.mxu0 %v6436
    %7641 = vmatpush2.bf16.msra.mxu0 %v6435
    %7642 = vmatprep.subr.bf16.mxu0 %v6428
    %7643 = vmatpush2.bf16.msra.mxu0 %v6427
    %7644 = vmatprep.mubr.bf16.mxu0 %v3924
    %7645 = vmatmul.mubr.bf16.gmra.mxu0 %v3923
    %v7646 = vpop.f32.mrf.mxu0
    %v7647 = vadd.f32 %v7606, %v7646
    %v7648 = vpop.f32.mrf.mxu0
    %v7649 = vadd.f32 %v7608, %v7648
    %v7650 = vpop.f32.mrf.mxu0
    %v7651 = vpop.f32.mrf.mxu0
    %7652 = vdwg.mxu0
    %v7653 = vld [vmem:[#allocation11] sm:$0xff]
    %v7654 = vld [vmem:[#allocation11 + $0x8] sm:$0xff]
    %v7655 = vld [vmem:[#allocation11 + $0x10] sm:$0xff]
    %v7656 = vld [vmem:[#allocation11 + $0x18] sm:$0xff]
    %v7657 = vld [vmem:[#allocation11 + $0x20] sm:$0xff]
    %v7658 = vld [vmem:[#allocation11 + $0x28] sm:$0xff]
    %v7659 = vld [vmem:[#allocation11 + $0x30] sm:$0xff]
    %v7660 = vld [vmem:[#allocation11 + $0x38] sm:$0xff]
    %v7661 = vadd.f32 %v7653, %v7155
    %v7662 = vadd.f32 %v7654, %v7157
    %v7663 = vadd.f32 %v7655, %v7319
    %v7664 = vadd.f32 %v7656, %v7321
    %v7665 = vadd.f32 %v7657, %v7483
    %v7666 = vadd.f32 %v7658, %v7485
    %v7667 = vadd.f32 %v7659, %v7647
    %v7668 = vadd.f32 %v7660, %v7649
    %7669 = vst [vmem:[#allocation11] sm:$0xff] %v7661
    %7670 = vst [vmem:[#allocation11 + $0x8] sm:$0xff] %v7662
    %7671 = vst [vmem:[#allocation11 + $0x10] sm:$0xff] %v7663
    %7672 = vst [vmem:[#allocation11 + $0x18] sm:$0xff] %v7664
    %7673 = vst [vmem:[#allocation11 + $0x20] sm:$0xff] %v7665
    %7674 = vst [vmem:[#allocation11 + $0x28] sm:$0xff] %v7666
    %7675 = vst [vmem:[#allocation11 + $0x30] sm:$0xff] %v7667
    %7676 = vst [vmem:[#allocation11 + $0x38] sm:$0xff] %v7668
    // Predicated region
    $region42: #{tpu_custom_call.1} parent=1 // pred_check
      _
    $region43: #{tpu_custom_call.1} parent=1 // pred_check_branch
      %7678 = sbr.rel (0) target = $region45
    $region44: #{tpu_custom_call.1} parent=1 // pred_region
      %s7680 = ssub.s32 1024, 1024
      %7681 = vsyncadd [#allocation4], %s7680
      %s7683 = sshll.u32 [#allocation11], 4
      %s7684 = int_to_ptr.vmem [resolvable:$true] %s7683
      %7686 = dma.vmem_to_hbm [thread:$0]  %s7684, 1024, %s5, [#allocation4]
    $region45: #{tpu_custom_call.1} parent=1 // pred_fallthru
      _
    // Predicated region
    $region46: #{tpu_custom_call.1} parent=1 // pred_check
      _
    $region47: #{tpu_custom_call.1} parent=1 // pred_check_branch
      %7688 = sbr.rel (0) target = $region49
    $region48: #{tpu_custom_call.1} parent=1 // pred_region
      %7689 = dma.done [#allocation4], 1024
    $region49: #{tpu_custom_call.1} parent=1 // pred_fallthru
      _
    %7690 = vsyncpa [#allocation3], 1
    %7691 = vsyncpa [#allocation6], 1
    %7692 = vsyncpa [#allocation9], 1
    %7693 = vsyncpa [#allocation4], 1

</llo_original>
